<compile_context>
chip_gen: v5e
topology: v5e:2x2
jax: 0.10.0
libtpu: 0.0.40
codegen_flags: <defaults>
</compile_context>

<pallas_src>
import functools

import jax
import jax.numpy as jnp
from jax import lax
from jax.experimental import pallas as pl
from jax.experimental.pallas import tpu as pltpu


def _round_up(x, m):
    return (x + m - 1) // m * m


_MAX_BATCH_SHARDS = 2  # v7x has 2 TensorCores per chip; 1 on v5e/v6e.


def _detect_tensorcores():
    """Best-effort TensorCore count of the local device (megacore -> 2)."""
    try:
        dev = jax.devices()[0]
        for attr in ("num_cores", "core_count"):
            v = getattr(dev, attr, None)
            if isinstance(v, int) and v >= 1:
                return v
    except Exception:
        pass
    return 1


def _tile_bytes(shape, itemsize=4):
    """Rough VMEM footprint of an array, accounting for (8,128) tiling."""
    s = list(shape)
    s[-1] = _round_up(s[-1], 128)
    if len(s) >= 2:
        s[-2] = _round_up(s[-2], 8)
    n = 1
    for d in s:
        n *= int(d)
    return n * itemsize


def _gru_stack_kernel(x_ref, wih0_ref, wihr_ref, whh_ref, bih_ref, bhhn_ref,
                      out_ref, hN_ref, xtm_ref, act_ref, gi_ref,
                      *, T, F, Bpc, Hp, L):
    """One batch shard, all GRU layers fused, full sequence.

    x_ref    : (Bpc, T*F)          raw batch-major input shard (batch-padded only)
    wih0_ref : (Fp, 3Hp)           layer-0 input->hidden weights (rows >= F zero)
    wihr_ref : (max(L-1,1),Hp,3Hp) layers >= 1 input->hidden weights
    whh_ref  : (L, Hp, 3Hp)        hidden->hidden weights
    bih_ref  : (L, 1, 3Hp)         b_ih with b_hh folded in for the r,z gates
    bhhn_ref : (L, 1, Hp)          b_hh of the n gate (multiplied by r per step)
    out_ref  : (Bpc, T*Hp)         last layer hidden states, batch-major,
                                   timestep t at lane offset t*Hp (dense vst)
    hN_ref   : (L, Bpc, Hp)        final hidden state of every layer
    xtm_ref  : (T*Bpc, Fp)         scratch: time-major feature-padded layer-0 input
    act_ref  : (T*Bpc, Hp)         scratch: inter-layer activations (time-major)
    gi_ref   : (T*Bpc, 3Hp)        scratch: hoisted input->hidden gate pre-acts
    """
    f32 = jnp.float32
    cdt = xtm_ref.dtype                     # compute dtype of the MXU operands

    # Build the time-major, feature-padded layer-0 operand in VMEM. The raw
    # input is never padded/transposed in HBM; the pad columns must be zero so
    # they annihilate against the zero rows of wih0 (cheap: Fp-wide slab).
    xtm_ref[...] = jnp.zeros_like(xtm_ref)
    for t in range(T):                                       # static, small T
        xtm_ref[t * Bpc:(t + 1) * Bpc, 0:F] = (
            x_ref[:, t * F:(t + 1) * F].astype(cdt))

    for l in range(L):                                       # static layer loop
        whh_l = whh_ref[l]                                   # (Hp, 3Hp)
        bih_l = bih_ref[l].astype(f32)                       # (1, 3Hp)
        # Hoist the (1,Hp)->(Bpc,Hp) broadcast out of the unrolled time loop
        # (JAX does not CSE broadcast_in_dim).
        bhhn_b = jnp.broadcast_to(bhhn_ref[l].astype(f32), (Bpc, Hp))

        # Hoisted input->hidden matmul: one large MXU op covering every
        # timestep, instead of T tiny matmuls inside the recurrence.
        if l == 0:
            gi_ref[...] = jnp.dot(xtm_ref[...], wih0_ref[...],
                                  preferred_element_type=f32) + bih_l
        else:
            gi_ref[...] = jnp.dot(act_ref[...], wihr_ref[l - 1],
                                  preferred_element_type=f32) + bih_l

        last = (l == L - 1)

        def store_h(t, h):
            if last:
                # batch-major, lane-offset store: t*Hp is 128-aligned -> dense vst
                out_ref[:, t * Hp:(t + 1) * Hp] = h.astype(out_ref.dtype)
            else:
                act_ref[t * Bpc:(t + 1) * Bpc, :] = h.astype(act_ref.dtype)

        # t = 0 specialization: h0 == 0, so the recurrent matmul and the z*h
        # term vanish (gh = 0); saves one MXU op at the head of the chain.
        gi = gi_ref[0:Bpc, :]
        r = jax.nn.sigmoid(gi[:, 0:Hp])
        z = jax.nn.sigmoid(gi[:, Hp:2 * Hp])
        n = jnp.tanh(gi[:, 2 * Hp:3 * Hp] + r * bhhn_b)
        h = n - z * n                                        # == (1 - z) * n
        store_h(0, h)

        # t >= 1: fully unrolled (T is static and small here); only the small
        # recurrent dot and the gate math remain on the serial chain.
        # TODO(synk): for long sequences switch to a chunk-unrolled
        #             lax.fori_loop and/or a grid over T with streamed tiles.
        for t in range(1, T):
            gi = gi_ref[t * Bpc:(t + 1) * Bpc, :]            # (Bpc, 3Hp)
            gh = jnp.dot(h.astype(cdt), whh_l, preferred_element_type=f32)
            r = jax.nn.sigmoid(gi[:, 0:Hp] + gh[:, 0:Hp])
            z = jax.nn.sigmoid(gi[:, Hp:2 * Hp] + gh[:, Hp:2 * Hp])
            n = jnp.tanh(gi[:, 2 * Hp:3 * Hp]
                         + r * (gh[:, 2 * Hp:3 * Hp] + bhhn_b))
            h = n + z * (h - n)                              # == (1-z)*n + z*h
            store_h(t, h)

        hN_ref[l] = h.astype(hN_ref.dtype)


class RNNEncoderPallas:
    """GRU encoder matching nn.GRU(batch_first=True) with zero initial state."""

    def __init__(self, rnn_num_layers, input_feature_len, sequence_len,
                 hidden_size, rnn_dropout=0.0, arch='GRU', seed=0,
                 param_dtype=jnp.float32, batch_shards=None):
        assert arch == 'GRU', "only the GRU branch is implemented"
        self.num_layers = L = rnn_num_layers
        self.input_feature_len = F = input_feature_len
        self.sequence_len = sequence_len
        self.hidden_size = H = hidden_size
        self.param_dtype = param_dtype
        self.batch_shards = batch_shards
        self.Hp = Hp = _round_up(H, 128)          # lane-aligned hidden / gates
        self.Fp = Fp = _round_up(F, 128)          # layer-0 matmul K dim

        # Deterministic parameter init (PyTorch default U(-1/sqrt(H), 1/sqrt(H))),
        # kept in torch layout for the reference check.
        bound = 1.0 / float(H) ** 0.5
        key = jax.random.PRNGKey(seed)
        self.params = []
        for layer in range(L):
            in_dim = F if layer == 0 else H
            key, k1, k2, k3, k4 = jax.random.split(key, 5)
            w_ih = jax.random.uniform(k1, (3 * H, in_dim), jnp.float32, -bound, bound)
            w_hh = jax.random.uniform(k2, (3 * H, H), jnp.float32, -bound, bound)
            b_ih = jax.random.uniform(k3, (3 * H,), jnp.float32, -bound, bound)
            b_hh = jax.random.uniform(k4, (3 * H,), jnp.float32, -bound, bound)
            self.params.append((w_ih, w_hh, b_ih, b_hh))

        # Pre-transpose / pad / fold biases ONCE. Layer 0's W_ih keeps its own
        # (Fp, 3Hp) shape; layers >= 1 use (Hp, 3Hp) (no Kp-wide waste).
        wihr_list, whh_list, bih_list, bhhn_list = [], [], [], []
        wih0_p = None
        for layer, (w_ih, w_hh, b_ih, b_hh) in enumerate(self.params):
            in_dim = F if layer == 0 else H
            kdim = Fp if layer == 0 else Hp
            wih_t = w_ih.T                                   # (in_dim, 3H)
            whh_t = w_hh.T                                   # (H, 3H)
            wih_p = jnp.zeros((kdim, 3 * Hp), jnp.float32)
            whh_p = jnp.zeros((Hp, 3 * Hp), jnp.float32)
            bih_p = jnp.zeros((1, 3 * Hp), jnp.float32)
            bhhn_p = jnp.zeros((1, Hp), jnp.float32)
            for g in range(3):                               # gate order: r, z, n
                wih_p = wih_p.at[:in_dim, g * Hp:g * Hp + H].set(
                    wih_t[:, g * H:(g + 1) * H])
                whh_p = whh_p.at[:H, g * Hp:g * Hp + H].set(
                    whh_t[:, g * H:(g + 1) * H])
            # Fold b_hh into b_ih for the r and z gates (hoisted bias add);
            # keep b_hh_n separate since it is multiplied by r in the step.
            bih_p = bih_p.at[0, 0 * Hp:0 * Hp + H].set(b_ih[0:H] + b_hh[0:H])
            bih_p = bih_p.at[0, 1 * Hp:1 * Hp + H].set(b_ih[H:2 * H] + b_hh[H:2 * H])
            bih_p = bih_p.at[0, 2 * Hp:2 * Hp + H].set(b_ih[2 * H:3 * H])
            bhhn_p = bhhn_p.at[0, :H].set(b_hh[2 * H:3 * H])
            if layer == 0:
                wih0_p = wih_p
            else:
                wihr_list.append(wih_p)
            whh_list.append(whh_p)
            bih_list.append(bih_p)
            bhhn_list.append(bhhn_p)
        if not wihr_list:                        # L == 1: dummy, never read
            wihr_list.append(jnp.zeros((Hp, 3 * Hp), jnp.float32))

        self.wih0 = wih0_p.astype(param_dtype)               # (Fp, 3Hp)
        self.wihr = jnp.stack(wihr_list).astype(param_dtype)  # (max(L-1,1),Hp,3Hp)
        self.whh = jnp.stack(whh_list).astype(param_dtype)    # (L, Hp, 3Hp)
        self.bih = jnp.stack(bih_list)                         # (L, 1, 3Hp) f32
        self.bhhn = jnp.stack(bhhn_list)                       # (L, 1, Hp)  f32

    def __call__(self, input_seq):
        """input_seq: (B, T, F) batch-first, float32.

        Returns (gru_out: (B, T, H), hidden: (num_layers, B, H))."""
        B, T, F = input_seq.shape
        assert F == self.input_feature_len
        H, Hp, Fp, L = self.hidden_size, self.Hp, self.Fp, self.num_layers
        Lr = max(L - 1, 1)

        # Megacore batch split (v7x): shard the batch across TensorCores with a
        # "parallel" grid axis. Only used when >1 core is detected AND the
        # batch is big enough, so single-TC chips / tiny batches are untouched.
        num_shards = self.batch_shards
        if num_shards is None:
            num_shards = max(1, min(_detect_tensorcores(),
                                    _MAX_BATCH_SHARDS, B // 8))
        Bpc = _round_up(-(-B // num_shards), 8)   # per-shard batch, 8-aligned
        Bpt = num_shards * Bpc

        # Host side: ONLY a cheap batch pad + free reshape. No feature padding
        # (old: ~32x HBM inflation) and no (B,T)->(T,B) transpose pass.
        x2d = input_seq.astype(jnp.float32).reshape(B, T * F)
        if Bpt != B:
            x2d = jnp.zeros((Bpt, T * F), jnp.float32).at[:B].set(x2d)

        # Per-generation VMEM budget: derive the scoped limit from the device
        # instead of a hard-coded threshold.
        wb = jnp.dtype(self.param_dtype).itemsize
        vmem_need = (
            2 * _tile_bytes((Bpc, T * F)) +            # input block (dbl buf)
            2 * _tile_bytes((Bpc, T * Hp)) +           # gru_out block
            2 * _tile_bytes((L, Bpc, Hp)) +            # hidden block
            _tile_bytes((Fp, 3 * Hp), wb) +            # wih0
            _tile_bytes((Lr, Hp, 3 * Hp), wb) +        # wihr
            _tile_bytes((L, Hp, 3 * Hp), wb) +         # whh
            _tile_bytes((L, 1, 3 * Hp)) +              # bih
            _tile_bytes((L, 1, Hp)) +                  # bhhn
            _tile_bytes((T * Bpc, Fp), wb) +           # xtm scratch
            _tile_bytes((T * Bpc, Hp), wb) +           # act scratch
            _tile_bytes((T * Bpc, 3 * Hp)))            # gi scratch
        try:
            cap = int(getattr(pltpu.get_tpu_info(), "vmem_capacity_bytes", 0))
        except Exception:
            cap = 0
        if not cap or cap <= 0:
            cap = 64 * 1024 * 1024                     # conservative fallback
        vmem_limit = int(min(0.9 * cap, max(32 * 1024 * 1024, 1.5 * vmem_need)))
        if vmem_need > vmem_limit:
            # TODO(synk): stream over T (grid over time chunks, double-buffered
            # x/gi tiles, h and act carried in scratch) for very long sequences
            # instead of whole-sequence VMEM residency.
            raise ValueError(
                f"sequence too long for whole-sequence VMEM residency "
                f"(need ~{vmem_need} bytes, limit {vmem_limit} bytes)")

        kernel = functools.partial(_gru_stack_kernel,
                                   T=T, F=F, Bpc=Bpc, Hp=Hp, L=L)
        out2d, hN = pl.pallas_call(
            kernel,
            out_shape=(jax.ShapeDtypeStruct((Bpt, T * Hp), jnp.float32),
                       jax.ShapeDtypeStruct((L, Bpt, Hp), jnp.float32)),
            grid=(num_shards,),
            in_specs=[
                pl.BlockSpec((Bpc, T * F), lambda s: (s, 0)),         # x2d
                pl.BlockSpec((Fp, 3 * Hp), lambda s: (0, 0)),         # wih0
                pl.BlockSpec((Lr, Hp, 3 * Hp), lambda s: (0, 0, 0)),  # wihr
                pl.BlockSpec((L, Hp, 3 * Hp), lambda s: (0, 0, 0)),   # whh
                pl.BlockSpec((L, 1, 3 * Hp), lambda s: (0, 0, 0)),    # bih
                pl.BlockSpec((L, 1, Hp), lambda s: (0, 0, 0)),        # bhhn
            ],
            out_specs=(pl.BlockSpec((Bpc, T * Hp), lambda s: (s, 0)),
                       pl.BlockSpec((L, Bpc, Hp), lambda s: (0, s, 0))),
            scratch_shapes=[pltpu.VMEM((T * Bpc, Fp), self.param_dtype),   # xtm
                            pltpu.VMEM((T * Bpc, Hp), self.param_dtype),   # act
                            pltpu.VMEM((T * Bpc, 3 * Hp), jnp.float32)],   # gi
            compiler_params=pltpu.CompilerParams(
                dimension_semantics=("parallel",),
                vmem_limit_bytes=vmem_limit),
        )(x2d, self.wih0, self.wihr, self.whh, self.bih, self.bhhn)

        # Batch-major output: only a free reshape + slice, no transpose pass.
        gru_out = out2d.reshape(Bpt, T, Hp)[:B, :, :H]       # (B, T, H)
        hidden = hN[:, :B, :H]                               # (L, B, H)
        return gru_out, hidden


def _gru_reference(x, params):
    """Pure-JAX reference (same gate equations as torch.nn.GRU)."""
    x_tm = jnp.transpose(x, (1, 0, 2))
    B = x.shape[0]
    finals = []
    for (w_ih, w_hh, b_ih, b_hh) in params:
        H = w_hh.shape[1]
        h = jnp.zeros((B, H), jnp.float32)

        def step(h, x_t):
            gi = x_t @ w_ih.T + b_ih
            gh = h @ w_hh.T + b_hh
            i_r, i_z, i_n = jnp.split(gi, 3, axis=-1)
            h_r, h_z, h_n = jnp.split(gh, 3, axis=-1)
            r = jax.nn.sigmoid(i_r + h_r)
            z = jax.nn.sigmoid(i_z + h_z)
            n = jnp.tanh(i_n + r * h_n)
            h_new = (1.0 - z) * n + z * h
            return h_new, h_new

        h_last, out_tm = lax.scan(step, h, x_tm)
        x_tm = out_tm
        finals.append(h_last)
    return jnp.transpose(x_tm, (1, 0, 2)), jnp.stack(finals, axis=0)


if __name__ == "__main__":
    # Small shapes consistent with the module's forward:
    batch, seq_len, input_feat, hidden, num_layers = 2, 8, 4, 32, 2

    enc = RNNEncoderPallas(rnn_num_layers=num_layers,
                           input_feature_len=input_feat,
                           sequence_len=seq_len,
                           hidden_size=hidden,
                           rnn_dropout=0.0,
                           arch='GRU',
                           seed=0)

    key = jax.random.PRNGKey(0)
    x = jax.random.normal(key, (batch, seq_len, input_feat), dtype=jnp.float32)

    gru_out, hidden_state = enc(x)
    gru_out = jax.block_until_ready(gru_out)
    hidden_state = jax.block_until_ready(hidden_state)

    # Correctness check against a pure-JAX GRU reference.
    ref_out, ref_hidden = _gru_reference(x, enc.params)
    assert gru_out.shape == (batch, seq_len, hidden)
    assert hidden_state.shape == (num_layers, batch, hidden)
    assert jnp.allclose(gru_out, ref_out, atol=3e-5), "gru_out mismatch"
    assert jnp.allclose(hidden_state, ref_hidden, atol=3e-5), "hidden mismatch"

    print("KERNEL_OK")
</pallas_src>

<mosaic_0001>
module attributes {stable_mosaic.version = 11 : i64} {
  func.func @_gru_stack_kernel(%arg0: i32, %arg1: memref<8x32xf32, #tpu.memory_space<vmem>>, %arg2: memref<128x384xf32, #tpu.memory_space<vmem>>, %arg3: memref<1x128x384xf32, #tpu.memory_space<vmem>>, %arg4: memref<2x128x384xf32, #tpu.memory_space<vmem>>, %arg5: memref<2x1x384xf32, #tpu.memory_space<vmem>>, %arg6: memref<2x1x128xf32, #tpu.memory_space<vmem>>, %arg7: memref<8x1024xf32, #tpu.memory_space<vmem>>, %arg8: memref<2x8x128xf32, #tpu.memory_space<vmem>>, %arg9: memref<64x128xf32, #tpu.memory_space<vmem>>, %arg10: memref<64x128xf32, #tpu.memory_space<vmem>>, %arg11: memref<64x384xf32, #tpu.memory_space<vmem>>) attributes {dimension_semantics = [#tpu.dimension_semantics<parallel>], iteration_bounds = array<i64: 1>, scalar_prefetch = 0 : i64, scratch_operands = 3 : i64, tpu.core_type = #tpu.core_type<tc>, window_params = [{transform_indices = @transform_0, window_bounds = array<i64: 8, 32>}, {pipeline_mode = #tpu.pipeline_mode<synchronous>, transform_indices = @transform_1, window_bounds = array<i64: 128, 384>}, {pipeline_mode = #tpu.pipeline_mode<synchronous>, transform_indices = @transform_2, window_bounds = array<i64: 1, 128, 384>}, {pipeline_mode = #tpu.pipeline_mode<synchronous>, transform_indices = @transform_3, window_bounds = array<i64: 2, 128, 384>}, {pipeline_mode = #tpu.pipeline_mode<synchronous>, transform_indices = @transform_4, window_bounds = array<i64: 2, 1, 384>}, {pipeline_mode = #tpu.pipeline_mode<synchronous>, transform_indices = @transform_5, window_bounds = array<i64: 2, 1, 128>}, {transform_indices = @transform_6, window_bounds = array<i64: 8, 1024>}, {transform_indices = @transform_7, window_bounds = array<i64: 2, 8, 128>}]} {
    %cst = arith.constant 0.000000e+00 : f32
    %0 = vector.broadcast %cst : f32 to vector<64x128xf32>
    %c0 = arith.constant 0 : index
    %c0_0 = arith.constant 0 : index
    %1 = vector.load %arg9[%c0, %c0_0] : memref<64x128xf32, #tpu.memory_space<vmem>>, vector<64x128xf32>
    tpu.vector_store %arg9[%c0, %c0_0], %0 {strides = array<i32>} : memref<64x128xf32, #tpu.memory_space<vmem>>, vector<64x128xf32>,
    %c0_1 = arith.constant 0 : index
    %c0_2 = arith.constant 0 : index
    %2 = vector.load %arg1[%c0_1, %c0_2] : memref<8x32xf32, #tpu.memory_space<vmem>>, vector<8x4xf32>
    %c0_3 = arith.constant 0 : index
    %c0_4 = arith.constant 0 : index
    %3 = vector.load %arg9[%c0_3, %c0_4] : memref<64x128xf32, #tpu.memory_space<vmem>>, vector<8x4xf32>
    tpu.vector_store %arg9[%c0_3, %c0_4], %2 {strides = array<i32>} : memref<64x128xf32, #tpu.memory_space<vmem>>, vector<8x4xf32>,
    %c0_5 = arith.constant 0 : index
    %c4 = arith.constant 4 : index
    %4 = vector.load %arg1[%c0_5, %c4] : memref<8x32xf32, #tpu.memory_space<vmem>>, vector<8x4xf32>
    %c8 = arith.constant 8 : index
    %c0_6 = arith.constant 0 : index
    %5 = vector.load %arg9[%c8, %c0_6] : memref<64x128xf32, #tpu.memory_space<vmem>>, vector<8x4xf32>
    tpu.vector_store %arg9[%c8, %c0_6], %4 {strides = array<i32>} : memref<64x128xf32, #tpu.memory_space<vmem>>, vector<8x4xf32>,
    %c0_7 = arith.constant 0 : index
    %c8_8 = arith.constant 8 : index
    %6 = vector.load %arg1[%c0_7, %c8_8] : memref<8x32xf32, #tpu.memory_space<vmem>>, vector<8x4xf32>
    %c16 = arith.constant 16 : index
    %c0_9 = arith.constant 0 : index
    %7 = vector.load %arg9[%c16, %c0_9] : memref<64x128xf32, #tpu.memory_space<vmem>>, vector<8x4xf32>
    tpu.vector_store %arg9[%c16, %c0_9], %6 {strides = array<i32>} : memref<64x128xf32, #tpu.memory_space<vmem>>, vector<8x4xf32>,
    %c0_10 = arith.constant 0 : index
    %c12 = arith.constant 12 : index
    %8 = vector.load %arg1[%c0_10, %c12] : memref<8x32xf32, #tpu.memory_space<vmem>>, vector<8x4xf32>
    %c24 = arith.constant 24 : index
    %c0_11 = arith.constant 0 : index
    %9 = vector.load %arg9[%c24, %c0_11] : memref<64x128xf32, #tpu.memory_space<vmem>>, vector<8x4xf32>
    tpu.vector_store %arg9[%c24, %c0_11], %8 {strides = array<i32>} : memref<64x128xf32, #tpu.memory_space<vmem>>, vector<8x4xf32>,
    %c0_12 = arith.constant 0 : index
    %c16_13 = arith.constant 16 : index
    %10 = vector.load %arg1[%c0_12, %c16_13] : memref<8x32xf32, #tpu.memory_space<vmem>>, vector<8x4xf32>
    %c32 = arith.constant 32 : index
    %c0_14 = arith.constant 0 : index
    %11 = vector.load %arg9[%c32, %c0_14] : memref<64x128xf32, #tpu.memory_space<vmem>>, vector<8x4xf32>
    tpu.vector_store %arg9[%c32, %c0_14], %10 {strides = array<i32>} : memref<64x128xf32, #tpu.memory_space<vmem>>, vector<8x4xf32>,
    %c0_15 = arith.constant 0 : index
    %c20 = arith.constant 20 : index
    %12 = vector.load %arg1[%c0_15, %c20] : memref<8x32xf32, #tpu.memory_space<vmem>>, vector<8x4xf32>
    %c40 = arith.constant 40 : index
    %c0_16 = arith.constant 0 : index
    %13 = vector.load %arg9[%c40, %c0_16] : memref<64x128xf32, #tpu.memory_space<vmem>>, vector<8x4xf32>
    tpu.vector_store %arg9[%c40, %c0_16], %12 {strides = array<i32>} : memref<64x128xf32, #tpu.memory_space<vmem>>, vector<8x4xf32>,
    %c0_17 = arith.constant 0 : index
    %c24_18 = arith.constant 24 : index
    %14 = vector.load %arg1[%c0_17, %c24_18] : memref<8x32xf32, #tpu.memory_space<vmem>>, vector<8x4xf32>
    %c48 = arith.constant 48 : index
    %c0_19 = arith.constant 0 : index
    %15 = vector.load %arg9[%c48, %c0_19] : memref<64x128xf32, #tpu.memory_space<vmem>>, vector<8x4xf32>
    tpu.vector_store %arg9[%c48, %c0_19], %14 {strides = array<i32>} : memref<64x128xf32, #tpu.memory_space<vmem>>, vector<8x4xf32>,
    %c0_20 = arith.constant 0 : index
    %c28 = arith.constant 28 : index
    %16 = vector.load %arg1[%c0_20, %c28] : memref<8x32xf32, #tpu.memory_space<vmem>>, vector<8x4xf32>
    %c56 = arith.constant 56 : index
    %c0_21 = arith.constant 0 : index
    %17 = vector.load %arg9[%c56, %c0_21] : memref<64x128xf32, #tpu.memory_space<vmem>>, vector<8x4xf32>
    tpu.vector_store %arg9[%c56, %c0_21], %16 {strides = array<i32>} : memref<64x128xf32, #tpu.memory_space<vmem>>, vector<8x4xf32>,
    %c0_22 = arith.constant 0 : index
    %c0_23 = arith.constant 0 : index
    %c0_24 = arith.constant 0 : index
    %18 = vector.load %arg4[%c0_22, %c0_23, %c0_24] : memref<2x128x384xf32, #tpu.memory_space<vmem>>, vector<1x128x384xf32>
    %19 = vector.shape_cast %18 : vector<1x128x384xf32> to vector<128x384xf32>
    %c0_25 = arith.constant 0 : index
    %c0_26 = arith.constant 0 : index
    %c0_27 = arith.constant 0 : index
    %20 = vector.load %arg5[%c0_25, %c0_26, %c0_27] : memref<2x1x384xf32, #tpu.memory_space<vmem>>, vector<1x1x384xf32>
    %21 = vector.shape_cast %20 : vector<1x1x384xf32> to vector<1x384xf32>
    %c0_28 = arith.constant 0 : index
    %c0_29 = arith.constant 0 : index
    %c0_30 = arith.constant 0 : index
    %22 = vector.load %arg6[%c0_28, %c0_29, %c0_30] : memref<2x1x128xf32, #tpu.memory_space<vmem>>, vector<1x1x128xf32>
    %23 = vector.shape_cast %22 : vector<1x1x128xf32> to vector<1x128xf32>
    %24 = vector.shape_cast %23 : vector<1x128xf32> to vector<1x128xf32>
    %25 = vector.broadcast %24 : vector<1x128xf32> to vector<8x128xf32>
    %c0_31 = arith.constant 0 : index
    %c0_32 = arith.constant 0 : index
    %26 = vector.load %arg9[%c0_31, %c0_32] : memref<64x128xf32, #tpu.memory_space<vmem>>, vector<64x128xf32>
    %c0_33 = arith.constant 0 : index
    %c0_34 = arith.constant 0 : index
    %27 = vector.load %arg2[%c0_33, %c0_34] : memref<128x384xf32, #tpu.memory_space<vmem>>, vector<128x384xf32>
    %cst_35 = arith.constant dense<0.000000e+00> : vector<64x384xf32>
    %28 = tpu.matmul %26, %27, %cst_35 {dimension_numbers = #tpu.dot_dimension_numbers<[1], [0], [0], [1], [0, 0, 1, 1], [], []>} : vector<64x128xf32>, vector<128x384xf32>, vector<64x384xf32> -> vector<64x384xf32>
    %29 = vector.broadcast %21 : vector<1x384xf32> to vector<64x384xf32>
    %30 = arith.addf %28, %29 : vector<64x384xf32>
    %c0_36 = arith.constant 0 : index
    %c0_37 = arith.constant 0 : index
    %31 = vector.load %arg11[%c0_36, %c0_37] : memref<64x384xf32, #tpu.memory_space<vmem>>, vector<64x384xf32>
    tpu.vector_store %arg11[%c0_36, %c0_37], %30 {strides = array<i32>} : memref<64x384xf32, #tpu.memory_space<vmem>>, vector<64x384xf32>,
    %c0_38 = arith.constant 0 : index
    %c0_39 = arith.constant 0 : index
    %32 = vector.load %arg11[%c0_38, %c0_39] : memref<64x384xf32, #tpu.memory_space<vmem>>, vector<8x384xf32>
    %33 = vector.extract_strided_slice %32 {offsets = [0, 0], sizes = [8, 128], strides = [1, 1]} : vector<8x384xf32> to vector<8x128xf32>
    %34 = arith.negf %33 : vector<8x128xf32>
    %35 = math.exp %34 : vector<8x128xf32>
    %cst_40 = arith.constant 1.000000e+00 : f32
    %36 = vector.broadcast %cst_40 : f32 to vector<8x128xf32>
    %37 = arith.addf %36, %35 : vector<8x128xf32>
    %38 = arith.divf %36, %37 : vector<8x128xf32>
    %39 = vector.extract_strided_slice %32 {offsets = [0, 128], sizes = [8, 128], strides = [1, 1]} : vector<8x384xf32> to vector<8x128xf32>
    %40 = arith.negf %39 : vector<8x128xf32>
    %41 = math.exp %40 : vector<8x128xf32>
    %cst_41 = arith.constant 1.000000e+00 : f32
    %42 = vector.broadcast %cst_41 : f32 to vector<8x128xf32>
    %43 = arith.addf %42, %41 : vector<8x128xf32>
    %44 = arith.divf %42, %43 : vector<8x128xf32>
    %45 = vector.extract_strided_slice %32 {offsets = [0, 256], sizes = [8, 128], strides = [1, 1]} : vector<8x384xf32> to vector<8x128xf32>
    %46 = arith.mulf %38, %25 : vector<8x128xf32>
    %47 = arith.addf %45, %46 : vector<8x128xf32>
    %48 = math.tanh %47 : vector<8x128xf32>
    %49 = arith.mulf %44, %48 : vector<8x128xf32>
    %50 = arith.subf %48, %49 : vector<8x128xf32>
    %c0_42 = arith.constant 0 : index
    %c0_43 = arith.constant 0 : index
    %51 = vector.load %arg10[%c0_42, %c0_43] : memref<64x128xf32, #tpu.memory_space<vmem>>, vector<8x128xf32>
    tpu.vector_store %arg10[%c0_42, %c0_43], %50 {strides = array<i32>} : memref<64x128xf32, #tpu.memory_space<vmem>>, vector<8x128xf32>,
    %c8_44 = arith.constant 8 : index
    %c0_45 = arith.constant 0 : index
    %52 = vector.load %arg11[%c8_44, %c0_45] : memref<64x384xf32, #tpu.memory_space<vmem>>, vector<8x384xf32>
    %cst_46 = arith.constant dense<0.000000e+00> : vector<8x384xf32>
    %53 = tpu.matmul %50, %19, %cst_46 {dimension_numbers = #tpu.dot_dimension_numbers<[1], [0], [0], [1], [0, 0, 1, 1], [], []>} : vector<8x128xf32>, vector<128x384xf32>, vector<8x384xf32> -> vector<8x384xf32>
    %54 = vector.extract_strided_slice %52 {offsets = [0, 0], sizes = [8, 128], strides = [1, 1]} : vector<8x384xf32> to vector<8x128xf32>
    %55 = vector.extract_strided_slice %53 {offsets = [0, 0], sizes = [8, 128], strides = [1, 1]} : vector<8x384xf32> to vector<8x128xf32>
    %56 = arith.addf %54, %55 : vector<8x128xf32>
    %57 = arith.negf %56 : vector<8x128xf32>
    %58 = math.exp %57 : vector<8x128xf32>
    %cst_47 = arith.constant 1.000000e+00 : f32
    %59 = vector.broadcast %cst_47 : f32 to vector<8x128xf32>
    %60 = arith.addf %59, %58 : vector<8x128xf32>
    %61 = arith.divf %59, %60 : vector<8x128xf32>
    %62 = vector.extract_strided_slice %52 {offsets = [0, 128], sizes = [8, 128], strides = [1, 1]} : vector<8x384xf32> to vector<8x128xf32>
    %63 = vector.extract_strided_slice %53 {offsets = [0, 128], sizes = [8, 128], strides = [1, 1]} : vector<8x384xf32> to vector<8x128xf32>
    %64 = arith.addf %62, %63 : vector<8x128xf32>
    %65 = arith.negf %64 : vector<8x128xf32>
    %66 = math.exp %65 : vector<8x128xf32>
    %cst_48 = arith.constant 1.000000e+00 : f32
    %67 = vector.broadcast %cst_48 : f32 to vector<8x128xf32>
    %68 = arith.addf %67, %66 : vector<8x128xf32>
    %69 = arith.divf %67, %68 : vector<8x128xf32>
    %70 = vector.extract_strided_slice %52 {offsets = [0, 256], sizes = [8, 128], strides = [1, 1]} : vector<8x384xf32> to vector<8x128xf32>
    %71 = vector.extract_strided_slice %53 {offsets = [0, 256], sizes = [8, 128], strides = [1, 1]} : vector<8x384xf32> to vector<8x128xf32>
    %72 = arith.addf %71, %25 : vector<8x128xf32>
    %73 = arith.mulf %61, %72 : vector<8x128xf32>
    %74 = arith.addf %70, %73 : vector<8x128xf32>
    %75 = math.tanh %74 : vector<8x128xf32>
    %76 = arith.subf %50, %75 : vector<8x128xf32>
    %77 = arith.mulf %69, %76 : vector<8x128xf32>
    %78 = arith.addf %75, %77 : vector<8x128xf32>
    %c8_49 = arith.constant 8 : index
    %c0_50 = arith.constant 0 : index
    %79 = vector.load %arg10[%c8_49, %c0_50] : memref<64x128xf32, #tpu.memory_space<vmem>>, vector<8x128xf32>
    tpu.vector_store %arg10[%c8_49, %c0_50], %78 {strides = array<i32>} : memref<64x128xf32, #tpu.memory_space<vmem>>, vector<8x128xf32>,
    %c16_51 = arith.constant 16 : index
    %c0_52 = arith.constant 0 : index
    %80 = vector.load %arg11[%c16_51, %c0_52] : memref<64x384xf32, #tpu.memory_space<vmem>>, vector<8x384xf32>
    %cst_53 = arith.constant dense<0.000000e+00> : vector<8x384xf32>
    %81 = tpu.matmul %78, %19, %cst_53 {dimension_numbers = #tpu.dot_dimension_numbers<[1], [0], [0], [1], [0, 0, 1, 1], [], []>} : vector<8x128xf32>, vector<128x384xf32>, vector<8x384xf32> -> vector<8x384xf32>
    %82 = vector.extract_strided_slice %80 {offsets = [0, 0], sizes = [8, 128], strides = [1, 1]} : vector<8x384xf32> to vector<8x128xf32>
    %83 = vector.extract_strided_slice %81 {offsets = [0, 0], sizes = [8, 128], strides = [1, 1]} : vector<8x384xf32> to vector<8x128xf32>
    %84 = arith.addf %82, %83 : vector<8x128xf32>
    %85 = arith.negf %84 : vector<8x128xf32>
    %86 = math.exp %85 : vector<8x128xf32>
    %cst_54 = arith.constant 1.000000e+00 : f32
    %87 = vector.broadcast %cst_54 : f32 to vector<8x128xf32>
    %88 = arith.addf %87, %86 : vector<8x128xf32>
    %89 = arith.divf %87, %88 : vector<8x128xf32>
    %90 = vector.extract_strided_slice %80 {offsets = [0, 128], sizes = [8, 128], strides = [1, 1]} : vector<8x384xf32> to vector<8x128xf32>
    %91 = vector.extract_strided_slice %81 {offsets = [0, 128], sizes = [8, 128], strides = [1, 1]} : vector<8x384xf32> to vector<8x128xf32>
    %92 = arith.addf %90, %91 : vector<8x128xf32>
    %93 = arith.negf %92 : vector<8x128xf32>
    %94 = math.exp %93 : vector<8x128xf32>
    %cst_55 = arith.constant 1.000000e+00 : f32
    %95 = vector.broadcast %cst_55 : f32 to vector<8x128xf32>
    %96 = arith.addf %95, %94 : vector<8x128xf32>
    %97 = arith.divf %95, %96 : vector<8x128xf32>
    %98 = vector.extract_strided_slice %80 {offsets = [0, 256], sizes = [8, 128], strides = [1, 1]} : vector<8x384xf32> to vector<8x128xf32>
    %99 = vector.extract_strided_slice %81 {offsets = [0, 256], sizes = [8, 128], strides = [1, 1]} : vector<8x384xf32> to vector<8x128xf32>
    %100 = arith.addf %99, %25 : vector<8x128xf32>
    %101 = arith.mulf %89, %100 : vector<8x128xf32>
    %102 = arith.addf %98, %101 : vector<8x128xf32>
    %103 = math.tanh %102 : vector<8x128xf32>
    %104 = arith.subf %78, %103 : vector<8x128xf32>
    %105 = arith.mulf %97, %104 : vector<8x128xf32>
    %106 = arith.addf %103, %105 : vector<8x128xf32>
    %c16_56 = arith.constant 16 : index
    %c0_57 = arith.constant 0 : index
    %107 = vector.load %arg10[%c16_56, %c0_57] : memref<64x128xf32, #tpu.memory_space<vmem>>, vector<8x128xf32>
    tpu.vector_store %arg10[%c16_56, %c0_57], %106 {strides = array<i32>} : memref<64x128xf32, #tpu.memory_space<vmem>>, vector<8x128xf32>,
    %c24_58 = arith.constant 24 : index
    %c0_59 = arith.constant 0 : index
    %108 = vector.load %arg11[%c24_58, %c0_59] : memref<64x384xf32, #tpu.memory_space<vmem>>, vector<8x384xf32>
    %cst_60 = arith.constant dense<0.000000e+00> : vector<8x384xf32>
    %109 = tpu.matmul %106, %19, %cst_60 {dimension_numbers = #tpu.dot_dimension_numbers<[1], [0], [0], [1], [0, 0, 1, 1], [], []>} : vector<8x128xf32>, vector<128x384xf32>, vector<8x384xf32> -> vector<8x384xf32>
    %110 = vector.extract_strided_slice %108 {offsets = [0, 0], sizes = [8, 128], strides = [1, 1]} : vector<8x384xf32> to vector<8x128xf32>
    %111 = vector.extract_strided_slice %109 {offsets = [0, 0], sizes = [8, 128], strides = [1, 1]} : vector<8x384xf32> to vector<8x128xf32>
    %112 = arith.addf %110, %111 : vector<8x128xf32>
    %113 = arith.negf %112 : vector<8x128xf32>
    %114 = math.exp %113 : vector<8x128xf32>
    %cst_61 = arith.constant 1.000000e+00 : f32
    %115 = vector.broadcast %cst_61 : f32 to vector<8x128xf32>
    %116 = arith.addf %115, %114 : vector<8x128xf32>
    %117 = arith.divf %115, %116 : vector<8x128xf32>
    %118 = vector.extract_strided_slice %108 {offsets = [0, 128], sizes = [8, 128], strides = [1, 1]} : vector<8x384xf32> to vector<8x128xf32>
    %119 = vector.extract_strided_slice %109 {offsets = [0, 128], sizes = [8, 128], strides = [1, 1]} : vector<8x384xf32> to vector<8x128xf32>
    %120 = arith.addf %118, %119 : vector<8x128xf32>
    %121 = arith.negf %120 : vector<8x128xf32>
    %122 = math.exp %121 : vector<8x128xf32>
    %cst_62 = arith.constant 1.000000e+00 : f32
    %123 = vector.broadcast %cst_62 : f32 to vector<8x128xf32>
    %124 = arith.addf %123, %122 : vector<8x128xf32>
    %125 = arith.divf %123, %124 : vector<8x128xf32>
    %126 = vector.extract_strided_slice %108 {offsets = [0, 256], sizes = [8, 128], strides = [1, 1]} : vector<8x384xf32> to vector<8x128xf32>
    %127 = vector.extract_strided_slice %109 {offsets = [0, 256], sizes = [8, 128], strides = [1, 1]} : vector<8x384xf32> to vector<8x128xf32>
    %128 = arith.addf %127, %25 : vector<8x128xf32>
    %129 = arith.mulf %117, %128 : vector<8x128xf32>
    %130 = arith.addf %126, %129 : vector<8x128xf32>
    %131 = math.tanh %130 : vector<8x128xf32>
    %132 = arith.subf %106, %131 : vector<8x128xf32>
    %133 = arith.mulf %125, %132 : vector<8x128xf32>
    %134 = arith.addf %131, %133 : vector<8x128xf32>
    %c24_63 = arith.constant 24 : index
    %c0_64 = arith.constant 0 : index
    %135 = vector.load %arg10[%c24_63, %c0_64] : memref<64x128xf32, #tpu.memory_space<vmem>>, vector<8x128xf32>
    tpu.vector_store %arg10[%c24_63, %c0_64], %134 {strides = array<i32>} : memref<64x128xf32, #tpu.memory_space<vmem>>, vector<8x128xf32>,
    %c32_65 = arith.constant 32 : index
    %c0_66 = arith.constant 0 : index
    %136 = vector.load %arg11[%c32_65, %c0_66] : memref<64x384xf32, #tpu.memory_space<vmem>>, vector<8x384xf32>
    %cst_67 = arith.constant dense<0.000000e+00> : vector<8x384xf32>
    %137 = tpu.matmul %134, %19, %cst_67 {dimension_numbers = #tpu.dot_dimension_numbers<[1], [0], [0], [1], [0, 0, 1, 1], [], []>} : vector<8x128xf32>, vector<128x384xf32>, vector<8x384xf32> -> vector<8x384xf32>
    %138 = vector.extract_strided_slice %136 {offsets = [0, 0], sizes = [8, 128], strides = [1, 1]} : vector<8x384xf32> to vector<8x128xf32>
    %139 = vector.extract_strided_slice %137 {offsets = [0, 0], sizes = [8, 128], strides = [1, 1]} : vector<8x384xf32> to vector<8x128xf32>
    %140 = arith.addf %138, %139 : vector<8x128xf32>
    %141 = arith.negf %140 : vector<8x128xf32>
    %142 = math.exp %141 : vector<8x128xf32>
    %cst_68 = arith.constant 1.000000e+00 : f32
    %143 = vector.broadcast %cst_68 : f32 to vector<8x128xf32>
    %144 = arith.addf %143, %142 : vector<8x128xf32>
    %145 = arith.divf %143, %144 : vector<8x128xf32>
    %146 = vector.extract_strided_slice %136 {offsets = [0, 128], sizes = [8, 128], strides = [1, 1]} : vector<8x384xf32> to vector<8x128xf32>
    %147 = vector.extract_strided_slice %137 {offsets = [0, 128], sizes = [8, 128], strides = [1, 1]} : vector<8x384xf32> to vector<8x128xf32>
    %148 = arith.addf %146, %147 : vector<8x128xf32>
    %149 = arith.negf %148 : vector<8x128xf32>
    %150 = math.exp %149 : vector<8x128xf32>
    %cst_69 = arith.constant 1.000000e+00 : f32
    %151 = vector.broadcast %cst_69 : f32 to vector<8x128xf32>
    %152 = arith.addf %151, %150 : vector<8x128xf32>
    %153 = arith.divf %151, %152 : vector<8x128xf32>
    %154 = vector.extract_strided_slice %136 {offsets = [0, 256], sizes = [8, 128], strides = [1, 1]} : vector<8x384xf32> to vector<8x128xf32>
    %155 = vector.extract_strided_slice %137 {offsets = [0, 256], sizes = [8, 128], strides = [1, 1]} : vector<8x384xf32> to vector<8x128xf32>
    %156 = arith.addf %155, %25 : vector<8x128xf32>
    %157 = arith.mulf %145, %156 : vector<8x128xf32>
    %158 = arith.addf %154, %157 : vector<8x128xf32>
    %159 = math.tanh %158 : vector<8x128xf32>
    %160 = arith.subf %134, %159 : vector<8x128xf32>
    %161 = arith.mulf %153, %160 : vector<8x128xf32>
    %162 = arith.addf %159, %161 : vector<8x128xf32>
    %c32_70 = arith.constant 32 : index
    %c0_71 = arith.constant 0 : index
    %163 = vector.load %arg10[%c32_70, %c0_71] : memref<64x128xf32, #tpu.memory_space<vmem>>, vector<8x128xf32>
    tpu.vector_store %arg10[%c32_70, %c0_71], %162 {strides = array<i32>} : memref<64x128xf32, #tpu.memory_space<vmem>>, vector<8x128xf32>,
    %c40_72 = arith.constant 40 : index
    %c0_73 = arith.constant 0 : index
    %164 = vector.load %arg11[%c40_72, %c0_73] : memref<64x384xf32, #tpu.memory_space<vmem>>, vector<8x384xf32>
    %cst_74 = arith.constant dense<0.000000e+00> : vector<8x384xf32>
    %165 = tpu.matmul %162, %19, %cst_74 {dimension_numbers = #tpu.dot_dimension_numbers<[1], [0], [0], [1], [0, 0, 1, 1], [], []>} : vector<8x128xf32>, vector<128x384xf32>, vector<8x384xf32> -> vector<8x384xf32>
    %166 = vector.extract_strided_slice %164 {offsets = [0, 0], sizes = [8, 128], strides = [1, 1]} : vector<8x384xf32> to vector<8x128xf32>
    %167 = vector.extract_strided_slice %165 {offsets = [0, 0], sizes = [8, 128], strides = [1, 1]} : vector<8x384xf32> to vector<8x128xf32>
    %168 = arith.addf %166, %167 : vector<8x128xf32>
    %169 = arith.negf %168 : vector<8x128xf32>
    %170 = math.exp %169 : vector<8x128xf32>
    %cst_75 = arith.constant 1.000000e+00 : f32
    %171 = vector.broadcast %cst_75 : f32 to vector<8x128xf32>
    %172 = arith.addf %171, %170 : vector<8x128xf32>
    %173 = arith.divf %171, %172 : vector<8x128xf32>
    %174 = vector.extract_strided_slice %164 {offsets = [0, 128], sizes = [8, 128], strides = [1, 1]} : vector<8x384xf32> to vector<8x128xf32>
    %175 = vector.extract_strided_slice %165 {offsets = [0, 128], sizes = [8, 128], strides = [1, 1]} : vector<8x384xf32> to vector<8x128xf32>
    %176 = arith.addf %174, %175 : vector<8x128xf32>
    %177 = arith.negf %176 : vector<8x128xf32>
    %178 = math.exp %177 : vector<8x128xf32>
    %cst_76 = arith.constant 1.000000e+00 : f32
    %179 = vector.broadcast %cst_76 : f32 to vector<8x128xf32>
    %180 = arith.addf %179, %178 : vector<8x128xf32>
    %181 = arith.divf %179, %180 : vector<8x128xf32>
    %182 = vector.extract_strided_slice %164 {offsets = [0, 256], sizes = [8, 128], strides = [1, 1]} : vector<8x384xf32> to vector<8x128xf32>
    %183 = vector.extract_strided_slice %165 {offsets = [0, 256], sizes = [8, 128], strides = [1, 1]} : vector<8x384xf32> to vector<8x128xf32>
    %184 = arith.addf %183, %25 : vector<8x128xf32>
    %185 = arith.mulf %173, %184 : vector<8x128xf32>
    %186 = arith.addf %182, %185 : vector<8x128xf32>
    %187 = math.tanh %186 : vector<8x128xf32>
    %188 = arith.subf %162, %187 : vector<8x128xf32>
    %189 = arith.mulf %181, %188 : vector<8x128xf32>
    %190 = arith.addf %187, %189 : vector<8x128xf32>
    %c40_77 = arith.constant 40 : index
    %c0_78 = arith.constant 0 : index
    %191 = vector.load %arg10[%c40_77, %c0_78] : memref<64x128xf32, #tpu.memory_space<vmem>>, vector<8x128xf32>
    tpu.vector_store %arg10[%c40_77, %c0_78], %190 {strides = array<i32>} : memref<64x128xf32, #tpu.memory_space<vmem>>, vector<8x128xf32>,
    %c48_79 = arith.constant 48 : index
    %c0_80 = arith.constant 0 : index
    %192 = vector.load %arg11[%c48_79, %c0_80] : memref<64x384xf32, #tpu.memory_space<vmem>>, vector<8x384xf32>
    %cst_81 = arith.constant dense<0.000000e+00> : vector<8x384xf32>
    %193 = tpu.matmul %190, %19, %cst_81 {dimension_numbers = #tpu.dot_dimension_numbers<[1], [0], [0], [1], [0, 0, 1, 1], [], []>} : vector<8x128xf32>, vector<128x384xf32>, vector<8x384xf32> -> vector<8x384xf32>
    %194 = vector.extract_strided_slice %192 {offsets = [0, 0], sizes = [8, 128], strides = [1, 1]} : vector<8x384xf32> to vector<8x128xf32>
    %195 = vector.extract_strided_slice %193 {offsets = [0, 0], sizes = [8, 128], strides = [1, 1]} : vector<8x384xf32> to vector<8x128xf32>
    %196 = arith.addf %194, %195 : vector<8x128xf32>
    %197 = arith.negf %196 : vector<8x128xf32>
    %198 = math.exp %197 : vector<8x128xf32>
    %cst_82 = arith.constant 1.000000e+00 : f32
    %199 = vector.broadcast %cst_82 : f32 to vector<8x128xf32>
    %200 = arith.addf %199, %198 : vector<8x128xf32>
    %201 = arith.divf %199, %200 : vector<8x128xf32>
    %202 = vector.extract_strided_slice %192 {offsets = [0, 128], sizes = [8, 128], strides = [1, 1]} : vector<8x384xf32> to vector<8x128xf32>
    %203 = vector.extract_strided_slice %193 {offsets = [0, 128], sizes = [8, 128], strides = [1, 1]} : vector<8x384xf32> to vector<8x128xf32>
    %204 = arith.addf %202, %203 : vector<8x128xf32>
    %205 = arith.negf %204 : vector<8x128xf32>
    %206 = math.exp %205 : vector<8x128xf32>
    %cst_83 = arith.constant 1.000000e+00 : f32
    %207 = vector.broadcast %cst_83 : f32 to vector<8x128xf32>
    %208 = arith.addf %207, %206 : vector<8x128xf32>
    %209 = arith.divf %207, %208 : vector<8x128xf32>
    %210 = vector.extract_strided_slice %192 {offsets = [0, 256], sizes = [8, 128], strides = [1, 1]} : vector<8x384xf32> to vector<8x128xf32>
    %211 = vector.extract_strided_slice %193 {offsets = [0, 256], sizes = [8, 128], strides = [1, 1]} : vector<8x384xf32> to vector<8x128xf32>
    %212 = arith.addf %211, %25 : vector<8x128xf32>
    %213 = arith.mulf %201, %212 : vector<8x128xf32>
    %214 = arith.addf %210, %213 : vector<8x128xf32>
    %215 = math.tanh %214 : vector<8x128xf32>
    %216 = arith.subf %190, %215 : vector<8x128xf32>
    %217 = arith.mulf %209, %216 : vector<8x128xf32>
    %218 = arith.addf %215, %217 : vector<8x128xf32>
    %c48_84 = arith.constant 48 : index
    %c0_85 = arith.constant 0 : index
    %219 = vector.load %arg10[%c48_84, %c0_85] : memref<64x128xf32, #tpu.memory_space<vmem>>, vector<8x128xf32>
    tpu.vector_store %arg10[%c48_84, %c0_85], %218 {strides = array<i32>} : memref<64x128xf32, #tpu.memory_space<vmem>>, vector<8x128xf32>,
    %c56_86 = arith.constant 56 : index
    %c0_87 = arith.constant 0 : index
    %220 = vector.load %arg11[%c56_86, %c0_87] : memref<64x384xf32, #tpu.memory_space<vmem>>, vector<8x384xf32>
    %cst_88 = arith.constant dense<0.000000e+00> : vector<8x384xf32>
    %221 = tpu.matmul %218, %19, %cst_88 {dimension_numbers = #tpu.dot_dimension_numbers<[1], [0], [0], [1], [0, 0, 1, 1], [], []>} : vector<8x128xf32>, vector<128x384xf32>, vector<8x384xf32> -> vector<8x384xf32>
    %222 = vector.extract_strided_slice %220 {offsets = [0, 0], sizes = [8, 128], strides = [1, 1]} : vector<8x384xf32> to vector<8x128xf32>
    %223 = vector.extract_strided_slice %221 {offsets = [0, 0], sizes = [8, 128], strides = [1, 1]} : vector<8x384xf32> to vector<8x128xf32>
    %224 = arith.addf %222, %223 : vector<8x128xf32>
    %225 = arith.negf %224 : vector<8x128xf32>
    %226 = math.exp %225 : vector<8x128xf32>
    %cst_89 = arith.constant 1.000000e+00 : f32
    %227 = vector.broadcast %cst_89 : f32 to vector<8x128xf32>
    %228 = arith.addf %227, %226 : vector<8x128xf32>
    %229 = arith.divf %227, %228 : vector<8x128xf32>
    %230 = vector.extract_strided_slice %220 {offsets = [0, 128], sizes = [8, 128], strides = [1, 1]} : vector<8x384xf32> to vector<8x128xf32>
    %231 = vector.extract_strided_slice %221 {offsets = [0, 128], sizes = [8, 128], strides = [1, 1]} : vector<8x384xf32> to vector<8x128xf32>
    %232 = arith.addf %230, %231 : vector<8x128xf32>
    %233 = arith.negf %232 : vector<8x128xf32>
    %234 = math.exp %233 : vector<8x128xf32>
    %cst_90 = arith.constant 1.000000e+00 : f32
    %235 = vector.broadcast %cst_90 : f32 to vector<8x128xf32>
    %236 = arith.addf %235, %234 : vector<8x128xf32>
    %237 = arith.divf %235, %236 : vector<8x128xf32>
    %238 = vector.extract_strided_slice %220 {offsets = [0, 256], sizes = [8, 128], strides = [1, 1]} : vector<8x384xf32> to vector<8x128xf32>
    %239 = vector.extract_strided_slice %221 {offsets = [0, 256], sizes = [8, 128], strides = [1, 1]} : vector<8x384xf32> to vector<8x128xf32>
    %240 = arith.addf %239, %25 : vector<8x128xf32>
    %241 = arith.mulf %229, %240 : vector<8x128xf32>
    %242 = arith.addf %238, %241 : vector<8x128xf32>
    %243 = math.tanh %242 : vector<8x128xf32>
    %244 = arith.subf %218, %243 : vector<8x128xf32>
    %245 = arith.mulf %237, %244 : vector<8x128xf32>
    %246 = arith.addf %243, %245 : vector<8x128xf32>
    %c56_91 = arith.constant 56 : index
    %c0_92 = arith.constant 0 : index
    %247 = vector.load %arg10[%c56_91, %c0_92] : memref<64x128xf32, #tpu.memory_space<vmem>>, vector<8x128xf32>
    tpu.vector_store %arg10[%c56_91, %c0_92], %246 {strides = array<i32>} : memref<64x128xf32, #tpu.memory_space<vmem>>, vector<8x128xf32>,
    %c0_93 = arith.constant 0 : index
    %c0_94 = arith.constant 0 : index
    %c0_95 = arith.constant 0 : index
    %248 = vector.load %arg8[%c0_93, %c0_94, %c0_95] : memref<2x8x128xf32, #tpu.memory_space<vmem>>, vector<1x8x128xf32>
    %249 = vector.shape_cast %248 : vector<1x8x128xf32> to vector<8x128xf32>
    %250 = vector.shape_cast %246 : vector<8x128xf32> to vector<1x8x128xf32>
    tpu.vector_store %arg8[%c0_93, %c0_94, %c0_95], %250 {strides = array<i32>} : memref<2x8x128xf32, #tpu.memory_space<vmem>>, vector<1x8x128xf32>,
    %c1 = arith.constant 1 : index
    %c0_96 = arith.constant 0 : index
    %c0_97 = arith.constant 0 : index
    %251 = vector.load %arg4[%c1, %c0_96, %c0_97] : memref<2x128x384xf32, #tpu.memory_space<vmem>>, vector<1x128x384xf32>
    %252 = vector.shape_cast %251 : vector<1x128x384xf32> to vector<128x384xf32>
    %c1_98 = arith.constant 1 : index
    %c0_99 = arith.constant 0 : index
    %c0_100 = arith.constant 0 : index
    %253 = vector.load %arg5[%c1_98, %c0_99, %c0_100] : memref<2x1x384xf32, #tpu.memory_space<vmem>>, vector<1x1x384xf32>
    %254 = vector.shape_cast %253 : vector<1x1x384xf32> to vector<1x384xf32>
    %c1_101 = arith.constant 1 : index
    %c0_102 = arith.constant 0 : index
    %c0_103 = arith.constant 0 : index
    %255 = vector.load %arg6[%c1_101, %c0_102, %c0_103] : memref<2x1x128xf32, #tpu.memory_space<vmem>>, vector<1x1x128xf32>
    %256 = vector.shape_cast %255 : vector<1x1x128xf32> to vector<1x128xf32>
    %257 = vector.shape_cast %256 : vector<1x128xf32> to vector<1x128xf32>
    %258 = vector.broadcast %257 : vector<1x128xf32> to vector<8x128xf32>
    %c0_104 = arith.constant 0 : index
    %c0_105 = arith.constant 0 : index
    %259 = vector.load %arg10[%c0_104, %c0_105] : memref<64x128xf32, #tpu.memory_space<vmem>>, vector<64x128xf32>
    %c0_106 = arith.constant 0 : index
    %c0_107 = arith.constant 0 : index
    %c0_108 = arith.constant 0 : index
    %260 = vector.load %arg3[%c0_106, %c0_107, %c0_108] : memref<1x128x384xf32, #tpu.memory_space<vmem>>, vector<1x128x384xf32>
    %261 = vector.shape_cast %260 : vector<1x128x384xf32> to vector<128x384xf32>
    %cst_109 = arith.constant dense<0.000000e+00> : vector<64x384xf32>
    %262 = tpu.matmul %259, %261, %cst_109 {dimension_numbers = #tpu.dot_dimension_numbers<[1], [0], [0], [1], [0, 0, 1, 1], [], []>} : vector<64x128xf32>, vector<128x384xf32>, vector<64x384xf32> -> vector<64x384xf32>
    %263 = vector.broadcast %254 : vector<1x384xf32> to vector<64x384xf32>
    %264 = arith.addf %262, %263 : vector<64x384xf32>
    %c0_110 = arith.constant 0 : index
    %c0_111 = arith.constant 0 : index
    %265 = vector.load %arg11[%c0_110, %c0_111] : memref<64x384xf32, #tpu.memory_space<vmem>>, vector<64x384xf32>
    tpu.vector_store %arg11[%c0_110, %c0_111], %264 {strides = array<i32>} : memref<64x384xf32, #tpu.memory_space<vmem>>, vector<64x384xf32>,
    %c0_112 = arith.constant 0 : index
    %c0_113 = arith.constant 0 : index
    %266 = vector.load %arg11[%c0_112, %c0_113] : memref<64x384xf32, #tpu.memory_space<vmem>>, vector<8x384xf32>
    %267 = vector.extract_strided_slice %266 {offsets = [0, 0], sizes = [8, 128], strides = [1, 1]} : vector<8x384xf32> to vector<8x128xf32>
    %268 = arith.negf %267 : vector<8x128xf32>
    %269 = math.exp %268 : vector<8x128xf32>
    %cst_114 = arith.constant 1.000000e+00 : f32
    %270 = vector.broadcast %cst_114 : f32 to vector<8x128xf32>
    %271 = arith.addf %270, %269 : vector<8x128xf32>
    %272 = arith.divf %270, %271 : vector<8x128xf32>
    %273 = vector.extract_strided_slice %266 {offsets = [0, 128], sizes = [8, 128], strides = [1, 1]} : vector<8x384xf32> to vector<8x128xf32>
    %274 = arith.negf %273 : vector<8x128xf32>
    %275 = math.exp %274 : vector<8x128xf32>
    %cst_115 = arith.constant 1.000000e+00 : f32
    %276 = vector.broadcast %cst_115 : f32 to vector<8x128xf32>
    %277 = arith.addf %276, %275 : vector<8x128xf32>
    %278 = arith.divf %276, %277 : vector<8x128xf32>
    %279 = vector.extract_strided_slice %266 {offsets = [0, 256], sizes = [8, 128], strides = [1, 1]} : vector<8x384xf32> to vector<8x128xf32>
    %280 = arith.mulf %272, %258 : vector<8x128xf32>
    %281 = arith.addf %279, %280 : vector<8x128xf32>
    %282 = math.tanh %281 : vector<8x128xf32>
    %283 = arith.mulf %278, %282 : vector<8x128xf32>
    %284 = arith.subf %282, %283 : vector<8x128xf32>
    %c0_116 = arith.constant 0 : index
    %c0_117 = arith.constant 0 : index
    %285 = vector.load %arg7[%c0_116, %c0_117] : memref<8x1024xf32, #tpu.memory_space<vmem>>, vector<8x128xf32>
    tpu.vector_store %arg7[%c0_116, %c0_117], %284 {strides = array<i32>} : memref<8x1024xf32, #tpu.memory_space<vmem>>, vector<8x128xf32>,
    %c8_118 = arith.constant 8 : index
    %c0_119 = arith.constant 0 : index
    %286 = vector.load %arg11[%c8_118, %c0_119] : memref<64x384xf32, #tpu.memory_space<vmem>>, vector<8x384xf32>
    %cst_120 = arith.constant dense<0.000000e+00> : vector<8x384xf32>
    %287 = tpu.matmul %284, %252, %cst_120 {dimension_numbers = #tpu.dot_dimension_numbers<[1], [0], [0], [1], [0, 0, 1, 1], [], []>} : vector<8x128xf32>, vector<128x384xf32>, vector<8x384xf32> -> vector<8x384xf32>
    %288 = vector.extract_strided_slice %286 {offsets = [0, 0], sizes = [8, 128], strides = [1, 1]} : vector<8x384xf32> to vector<8x128xf32>
    %289 = vector.extract_strided_slice %287 {offsets = [0, 0], sizes = [8, 128], strides = [1, 1]} : vector<8x384xf32> to vector<8x128xf32>
    %290 = arith.addf %288, %289 : vector<8x128xf32>
    %291 = arith.negf %290 : vector<8x128xf32>
    %292 = math.exp %291 : vector<8x128xf32>
    %cst_121 = arith.constant 1.000000e+00 : f32
    %293 = vector.broadcast %cst_121 : f32 to vector<8x128xf32>
    %294 = arith.addf %293, %292 : vector<8x128xf32>
    %295 = arith.divf %293, %294 : vector<8x128xf32>
    %296 = vector.extract_strided_slice %286 {offsets = [0, 128], sizes = [8, 128], strides = [1, 1]} : vector<8x384xf32> to vector<8x128xf32>
    %297 = vector.extract_strided_slice %287 {offsets = [0, 128], sizes = [8, 128], strides = [1, 1]} : vector<8x384xf32> to vector<8x128xf32>
    %298 = arith.addf %296, %297 : vector<8x128xf32>
    %299 = arith.negf %298 : vector<8x128xf32>
    %300 = math.exp %299 : vector<8x128xf32>
    %cst_122 = arith.constant 1.000000e+00 : f32
    %301 = vector.broadcast %cst_122 : f32 to vector<8x128xf32>
    %302 = arith.addf %301, %300 : vector<8x128xf32>
    %303 = arith.divf %301, %302 : vector<8x128xf32>
    %304 = vector.extract_strided_slice %286 {offsets = [0, 256], sizes = [8, 128], strides = [1, 1]} : vector<8x384xf32> to vector<8x128xf32>
    %305 = vector.extract_strided_slice %287 {offsets = [0, 256], sizes = [8, 128], strides = [1, 1]} : vector<8x384xf32> to vector<8x128xf32>
    %306 = arith.addf %305, %258 : vector<8x128xf32>
    %307 = arith.mulf %295, %306 : vector<8x128xf32>
    %308 = arith.addf %304, %307 : vector<8x128xf32>
    %309 = math.tanh %308 : vector<8x128xf32>
    %310 = arith.subf %284, %309 : vector<8x128xf32>
    %311 = arith.mulf %303, %310 : vector<8x128xf32>
    %312 = arith.addf %309, %311 : vector<8x128xf32>
    %c0_123 = arith.constant 0 : index
    %c128 = arith.constant 128 : index
    %313 = vector.load %arg7[%c0_123, %c128] : memref<8x1024xf32, #tpu.memory_space<vmem>>, vector<8x128xf32>
    tpu.vector_store %arg7[%c0_123, %c128], %312 {strides = array<i32>} : memref<8x1024xf32, #tpu.memory_space<vmem>>, vector<8x128xf32>,
    %c16_124 = arith.constant 16 : index
    %c0_125 = arith.constant 0 : index
    %314 = vector.load %arg11[%c16_124, %c0_125] : memref<64x384xf32, #tpu.memory_space<vmem>>, vector<8x384xf32>
    %cst_126 = arith.constant dense<0.000000e+00> : vector<8x384xf32>
    %315 = tpu.matmul %312, %252, %cst_126 {dimension_numbers = #tpu.dot_dimension_numbers<[1], [0], [0], [1], [0, 0, 1, 1], [], []>} : vector<8x128xf32>, vector<128x384xf32>, vector<8x384xf32> -> vector<8x384xf32>
    %316 = vector.extract_strided_slice %314 {offsets = [0, 0], sizes = [8, 128], strides = [1, 1]} : vector<8x384xf32> to vector<8x128xf32>
    %317 = vector.extract_strided_slice %315 {offsets = [0, 0], sizes = [8, 128], strides = [1, 1]} : vector<8x384xf32> to vector<8x128xf32>
    %318 = arith.addf %316, %317 : vector<8x128xf32>
    %319 = arith.negf %318 : vector<8x128xf32>
    %320 = math.exp %319 : vector<8x128xf32>
    %cst_127 = arith.constant 1.000000e+00 : f32
    %321 = vector.broadcast %cst_127 : f32 to vector<8x128xf32>
    %322 = arith.addf %321, %320 : vector<8x128xf32>
    %323 = arith.divf %321, %322 : vector<8x128xf32>
    %324 = vector.extract_strided_slice %314 {offsets = [0, 128], sizes = [8, 128], strides = [1, 1]} : vector<8x384xf32> to vector<8x128xf32>
    %325 = vector.extract_strided_slice %315 {offsets = [0, 128], sizes = [8, 128], strides = [1, 1]} : vector<8x384xf32> to vector<8x128xf32>
    %326 = arith.addf %324, %325 : vector<8x128xf32>
    %327 = arith.negf %326 : vector<8x128xf32>
    %328 = math.exp %327 : vector<8x128xf32>
    %cst_128 = arith.constant 1.000000e+00 : f32
    %329 = vector.broadcast %cst_128 : f32 to vector<8x128xf32>
    %330 = arith.addf %329, %328 : vector<8x128xf32>
    %331 = arith.divf %329, %330 : vector<8x128xf32>
    %332 = vector.extract_strided_slice %314 {offsets = [0, 256], sizes = [8, 128], strides = [1, 1]} : vector<8x384xf32> to vector<8x128xf32>
    %333 = vector.extract_strided_slice %315 {offsets = [0, 256], sizes = [8, 128], strides = [1, 1]} : vector<8x384xf32> to vector<8x128xf32>
    %334 = arith.addf %333, %258 : vector<8x128xf32>
    %335 = arith.mulf %323, %334 : vector<8x128xf32>
    %336 = arith.addf %332, %335 : vector<8x128xf32>
    %337 = math.tanh %336 : vector<8x128xf32>
    %338 = arith.subf %312, %337 : vector<8x128xf32>
    %339 = arith.mulf %331, %338 : vector<8x128xf32>
    %340 = arith.addf %337, %339 : vector<8x128xf32>
    %c0_129 = arith.constant 0 : index
    %c256 = arith.constant 256 : index
    %341 = vector.load %arg7[%c0_129, %c256] : memref<8x1024xf32, #tpu.memory_space<vmem>>, vector<8x128xf32>
    tpu.vector_store %arg7[%c0_129, %c256], %340 {strides = array<i32>} : memref<8x1024xf32, #tpu.memory_space<vmem>>, vector<8x128xf32>,
    %c24_130 = arith.constant 24 : index
    %c0_131 = arith.constant 0 : index
    %342 = vector.load %arg11[%c24_130, %c0_131] : memref<64x384xf32, #tpu.memory_space<vmem>>, vector<8x384xf32>
    %cst_132 = arith.constant dense<0.000000e+00> : vector<8x384xf32>
    %343 = tpu.matmul %340, %252, %cst_132 {dimension_numbers = #tpu.dot_dimension_numbers<[1], [0], [0], [1], [0, 0, 1, 1], [], []>} : vector<8x128xf32>, vector<128x384xf32>, vector<8x384xf32> -> vector<8x384xf32>
    %344 = vector.extract_strided_slice %342 {offsets = [0, 0], sizes = [8, 128], strides = [1, 1]} : vector<8x384xf32> to vector<8x128xf32>
    %345 = vector.extract_strided_slice %343 {offsets = [0, 0], sizes = [8, 128], strides = [1, 1]} : vector<8x384xf32> to vector<8x128xf32>
    %346 = arith.addf %344, %345 : vector<8x128xf32>
    %347 = arith.negf %346 : vector<8x128xf32>
    %348 = math.exp %347 : vector<8x128xf32>
    %cst_133 = arith.constant 1.000000e+00 : f32
    %349 = vector.broadcast %cst_133 : f32 to vector<8x128xf32>
    %350 = arith.addf %349, %348 : vector<8x128xf32>
    %351 = arith.divf %349, %350 : vector<8x128xf32>
    %352 = vector.extract_strided_slice %342 {offsets = [0, 128], sizes = [8, 128], strides = [1, 1]} : vector<8x384xf32> to vector<8x128xf32>
    %353 = vector.extract_strided_slice %343 {offsets = [0, 128], sizes = [8, 128], strides = [1, 1]} : vector<8x384xf32> to vector<8x128xf32>
    %354 = arith.addf %352, %353 : vector<8x128xf32>
    %355 = arith.negf %354 : vector<8x128xf32>
    %356 = math.exp %355 : vector<8x128xf32>
    %cst_134 = arith.constant 1.000000e+00 : f32
    %357 = vector.broadcast %cst_134 : f32 to vector<8x128xf32>
    %358 = arith.addf %357, %356 : vector<8x128xf32>
    %359 = arith.divf %357, %358 : vector<8x128xf32>
    %360 = vector.extract_strided_slice %342 {offsets = [0, 256], sizes = [8, 128], strides = [1, 1]} : vector<8x384xf32> to vector<8x128xf32>
    %361 = vector.extract_strided_slice %343 {offsets = [0, 256], sizes = [8, 128], strides = [1, 1]} : vector<8x384xf32> to vector<8x128xf32>
    %362 = arith.addf %361, %258 : vector<8x128xf32>
    %363 = arith.mulf %351, %362 : vector<8x128xf32>
    %364 = arith.addf %360, %363 : vector<8x128xf32>
    %365 = math.tanh %364 : vector<8x128xf32>
    %366 = arith.subf %340, %365 : vector<8x128xf32>
    %367 = arith.mulf %359, %366 : vector<8x128xf32>
    %368 = arith.addf %365, %367 : vector<8x128xf32>
    %c0_135 = arith.constant 0 : index
    %c384 = arith.constant 384 : index
    %369 = vector.load %arg7[%c0_135, %c384] : memref<8x1024xf32, #tpu.memory_space<vmem>>, vector<8x128xf32>
    tpu.vector_store %arg7[%c0_135, %c384], %368 {strides = array<i32>} : memref<8x1024xf32, #tpu.memory_space<vmem>>, vector<8x128xf32>,
    %c32_136 = arith.constant 32 : index
    %c0_137 = arith.constant 0 : index
    %370 = vector.load %arg11[%c32_136, %c0_137] : memref<64x384xf32, #tpu.memory_space<vmem>>, vector<8x384xf32>
    %cst_138 = arith.constant dense<0.000000e+00> : vector<8x384xf32>
    %371 = tpu.matmul %368, %252, %cst_138 {dimension_numbers = #tpu.dot_dimension_numbers<[1], [0], [0], [1], [0, 0, 1, 1], [], []>} : vector<8x128xf32>, vector<128x384xf32>, vector<8x384xf32> -> vector<8x384xf32>
    %372 = vector.extract_strided_slice %370 {offsets = [0, 0], sizes = [8, 128], strides = [1, 1]} : vector<8x384xf32> to vector<8x128xf32>
    %373 = vector.extract_strided_slice %371 {offsets = [0, 0], sizes = [8, 128], strides = [1, 1]} : vector<8x384xf32> to vector<8x128xf32>
    %374 = arith.addf %372, %373 : vector<8x128xf32>
    %375 = arith.negf %374 : vector<8x128xf32>
    %376 = math.exp %375 : vector<8x128xf32>
    %cst_139 = arith.constant 1.000000e+00 : f32
    %377 = vector.broadcast %cst_139 : f32 to vector<8x128xf32>
    %378 = arith.addf %377, %376 : vector<8x128xf32>
    %379 = arith.divf %377, %378 : vector<8x128xf32>
    %380 = vector.extract_strided_slice %370 {offsets = [0, 128], sizes = [8, 128], strides = [1, 1]} : vector<8x384xf32> to vector<8x128xf32>
    %381 = vector.extract_strided_slice %371 {offsets = [0, 128], sizes = [8, 128], strides = [1, 1]} : vector<8x384xf32> to vector<8x128xf32>
    %382 = arith.addf %380, %381 : vector<8x128xf32>
    %383 = arith.negf %382 : vector<8x128xf32>
    %384 = math.exp %383 : vector<8x128xf32>
    %cst_140 = arith.constant 1.000000e+00 : f32
    %385 = vector.broadcast %cst_140 : f32 to vector<8x128xf32>
    %386 = arith.addf %385, %384 : vector<8x128xf32>
    %387 = arith.divf %385, %386 : vector<8x128xf32>
    %388 = vector.extract_strided_slice %370 {offsets = [0, 256], sizes = [8, 128], strides = [1, 1]} : vector<8x384xf32> to vector<8x128xf32>
    %389 = vector.extract_strided_slice %371 {offsets = [0, 256], sizes = [8, 128], strides = [1, 1]} : vector<8x384xf32> to vector<8x128xf32>
    %390 = arith.addf %389, %258 : vector<8x128xf32>
    %391 = arith.mulf %379, %390 : vector<8x128xf32>
    %392 = arith.addf %388, %391 : vector<8x128xf32>
    %393 = math.tanh %392 : vector<8x128xf32>
    %394 = arith.subf %368, %393 : vector<8x128xf32>
    %395 = arith.mulf %387, %394 : vector<8x128xf32>
    %396 = arith.addf %393, %395 : vector<8x128xf32>
    %c0_141 = arith.constant 0 : index
    %c512 = arith.constant 512 : index
    %397 = vector.load %arg7[%c0_141, %c512] : memref<8x1024xf32, #tpu.memory_space<vmem>>, vector<8x128xf32>
    tpu.vector_store %arg7[%c0_141, %c512], %396 {strides = array<i32>} : memref<8x1024xf32, #tpu.memory_space<vmem>>, vector<8x128xf32>,
    %c40_142 = arith.constant 40 : index
    %c0_143 = arith.constant 0 : index
    %398 = vector.load %arg11[%c40_142, %c0_143] : memref<64x384xf32, #tpu.memory_space<vmem>>, vector<8x384xf32>
    %cst_144 = arith.constant dense<0.000000e+00> : vector<8x384xf32>
    %399 = tpu.matmul %396, %252, %cst_144 {dimension_numbers = #tpu.dot_dimension_numbers<[1], [0], [0], [1], [0, 0, 1, 1], [], []>} : vector<8x128xf32>, vector<128x384xf32>, vector<8x384xf32> -> vector<8x384xf32>
    %400 = vector.extract_strided_slice %398 {offsets = [0, 0], sizes = [8, 128], strides = [1, 1]} : vector<8x384xf32> to vector<8x128xf32>
    %401 = vector.extract_strided_slice %399 {offsets = [0, 0], sizes = [8, 128], strides = [1, 1]} : vector<8x384xf32> to vector<8x128xf32>
    %402 = arith.addf %400, %401 : vector<8x128xf32>
    %403 = arith.negf %402 : vector<8x128xf32>
    %404 = math.exp %403 : vector<8x128xf32>
    %cst_145 = arith.constant 1.000000e+00 : f32
    %405 = vector.broadcast %cst_145 : f32 to vector<8x128xf32>
    %406 = arith.addf %405, %404 : vector<8x128xf32>
    %407 = arith.divf %405, %406 : vector<8x128xf32>
    %408 = vector.extract_strided_slice %398 {offsets = [0, 128], sizes = [8, 128], strides = [1, 1]} : vector<8x384xf32> to vector<8x128xf32>
    %409 = vector.extract_strided_slice %399 {offsets = [0, 128], sizes = [8, 128], strides = [1, 1]} : vector<8x384xf32> to vector<8x128xf32>
    %410 = arith.addf %408, %409 : vector<8x128xf32>
    %411 = arith.negf %410 : vector<8x128xf32>
    %412 = math.exp %411 : vector<8x128xf32>
    %cst_146 = arith.constant 1.000000e+00 : f32
    %413 = vector.broadcast %cst_146 : f32 to vector<8x128xf32>
    %414 = arith.addf %413, %412 : vector<8x128xf32>
    %415 = arith.divf %413, %414 : vector<8x128xf32>
    %416 = vector.extract_strided_slice %398 {offsets = [0, 256], sizes = [8, 128], strides = [1, 1]} : vector<8x384xf32> to vector<8x128xf32>
    %417 = vector.extract_strided_slice %399 {offsets = [0, 256], sizes = [8, 128], strides = [1, 1]} : vector<8x384xf32> to vector<8x128xf32>
    %418 = arith.addf %417, %258 : vector<8x128xf32>
    %419 = arith.mulf %407, %418 : vector<8x128xf32>
    %420 = arith.addf %416, %419 : vector<8x128xf32>
    %421 = math.tanh %420 : vector<8x128xf32>
    %422 = arith.subf %396, %421 : vector<8x128xf32>
    %423 = arith.mulf %415, %422 : vector<8x128xf32>
    %424 = arith.addf %421, %423 : vector<8x128xf32>
    %c0_147 = arith.constant 0 : index
    %c640 = arith.constant 640 : index
    %425 = vector.load %arg7[%c0_147, %c640] : memref<8x1024xf32, #tpu.memory_space<vmem>>, vector<8x128xf32>
    tpu.vector_store %arg7[%c0_147, %c640], %424 {strides = array<i32>} : memref<8x1024xf32, #tpu.memory_space<vmem>>, vector<8x128xf32>,
    %c48_148 = arith.constant 48 : index
    %c0_149 = arith.constant 0 : index
    %426 = vector.load %arg11[%c48_148, %c0_149] : memref<64x384xf32, #tpu.memory_space<vmem>>, vector<8x384xf32>
    %cst_150 = arith.constant dense<0.000000e+00> : vector<8x384xf32>
    %427 = tpu.matmul %424, %252, %cst_150 {dimension_numbers = #tpu.dot_dimension_numbers<[1], [0], [0], [1], [0, 0, 1, 1], [], []>} : vector<8x128xf32>, vector<128x384xf32>, vector<8x384xf32> -> vector<8x384xf32>
    %428 = vector.extract_strided_slice %426 {offsets = [0, 0], sizes = [8, 128], strides = [1, 1]} : vector<8x384xf32> to vector<8x128xf32>
    %429 = vector.extract_strided_slice %427 {offsets = [0, 0], sizes = [8, 128], strides = [1, 1]} : vector<8x384xf32> to vector<8x128xf32>
    %430 = arith.addf %428, %429 : vector<8x128xf32>
    %431 = arith.negf %430 : vector<8x128xf32>
    %432 = math.exp %431 : vector<8x128xf32>
    %cst_151 = arith.constant 1.000000e+00 : f32
    %433 = vector.broadcast %cst_151 : f32 to vector<8x128xf32>
    %434 = arith.addf %433, %432 : vector<8x128xf32>
    %435 = arith.divf %433, %434 : vector<8x128xf32>
    %436 = vector.extract_strided_slice %426 {offsets = [0, 128], sizes = [8, 128], strides = [1, 1]} : vector<8x384xf32> to vector<8x128xf32>
    %437 = vector.extract_strided_slice %427 {offsets = [0, 128], sizes = [8, 128], strides = [1, 1]} : vector<8x384xf32> to vector<8x128xf32>
    %438 = arith.addf %436, %437 : vector<8x128xf32>
    %439 = arith.negf %438 : vector<8x128xf32>
    %440 = math.exp %439 : vector<8x128xf32>
    %cst_152 = arith.constant 1.000000e+00 : f32
    %441 = vector.broadcast %cst_152 : f32 to vector<8x128xf32>
    %442 = arith.addf %441, %440 : vector<8x128xf32>
    %443 = arith.divf %441, %442 : vector<8x128xf32>
    %444 = vector.extract_strided_slice %426 {offsets = [0, 256], sizes = [8, 128], strides = [1, 1]} : vector<8x384xf32> to vector<8x128xf32>
    %445 = vector.extract_strided_slice %427 {offsets = [0, 256], sizes = [8, 128], strides = [1, 1]} : vector<8x384xf32> to vector<8x128xf32>
    %446 = arith.addf %445, %258 : vector<8x128xf32>
    %447 = arith.mulf %435, %446 : vector<8x128xf32>
    %448 = arith.addf %444, %447 : vector<8x128xf32>
    %449 = math.tanh %448 : vector<8x128xf32>
    %450 = arith.subf %424, %449 : vector<8x128xf32>
    %451 = arith.mulf %443, %450 : vector<8x128xf32>
    %452 = arith.addf %449, %451 : vector<8x128xf32>
    %c0_153 = arith.constant 0 : index
    %c768 = arith.constant 768 : index
    %453 = vector.load %arg7[%c0_153, %c768] : memref<8x1024xf32, #tpu.memory_space<vmem>>, vector<8x128xf32>
    tpu.vector_store %arg7[%c0_153, %c768], %452 {strides = array<i32>} : memref<8x1024xf32, #tpu.memory_space<vmem>>, vector<8x128xf32>,
    %c56_154 = arith.constant 56 : index
    %c0_155 = arith.constant 0 : index
    %454 = vector.load %arg11[%c56_154, %c0_155] : memref<64x384xf32, #tpu.memory_space<vmem>>, vector<8x384xf32>
    %cst_156 = arith.constant dense<0.000000e+00> : vector<8x384xf32>
    %455 = tpu.matmul %452, %252, %cst_156 {dimension_numbers = #tpu.dot_dimension_numbers<[1], [0], [0], [1], [0, 0, 1, 1], [], []>} : vector<8x128xf32>, vector<128x384xf32>, vector<8x384xf32> -> vector<8x384xf32>
    %456 = vector.extract_strided_slice %454 {offsets = [0, 0], sizes = [8, 128], strides = [1, 1]} : vector<8x384xf32> to vector<8x128xf32>
    %457 = vector.extract_strided_slice %455 {offsets = [0, 0], sizes = [8, 128], strides = [1, 1]} : vector<8x384xf32> to vector<8x128xf32>
    %458 = arith.addf %456, %457 : vector<8x128xf32>
    %459 = arith.negf %458 : vector<8x128xf32>
    %460 = math.exp %459 : vector<8x128xf32>
    %cst_157 = arith.constant 1.000000e+00 : f32
    %461 = vector.broadcast %cst_157 : f32 to vector<8x128xf32>
    %462 = arith.addf %461, %460 : vector<8x128xf32>
    %463 = arith.divf %461, %462 : vector<8x128xf32>
    %464 = vector.extract_strided_slice %454 {offsets = [0, 128], sizes = [8, 128], strides = [1, 1]} : vector<8x384xf32> to vector<8x128xf32>
    %465 = vector.extract_strided_slice %455 {offsets = [0, 128], sizes = [8, 128], strides = [1, 1]} : vector<8x384xf32> to vector<8x128xf32>
    %466 = arith.addf %464, %465 : vector<8x128xf32>
    %467 = arith.negf %466 : vector<8x128xf32>
    %468 = math.exp %467 : vector<8x128xf32>
    %cst_158 = arith.constant 1.000000e+00 : f32
    %469 = vector.broadcast %cst_158 : f32 to vector<8x128xf32>
    %470 = arith.addf %469, %468 : vector<8x128xf32>
    %471 = arith.divf %469, %470 : vector<8x128xf32>
    %472 = vector.extract_strided_slice %454 {offsets = [0, 256], sizes = [8, 128], strides = [1, 1]} : vector<8x384xf32> to vector<8x128xf32>
    %473 = vector.extract_strided_slice %455 {offsets = [0, 256], sizes = [8, 128], strides = [1, 1]} : vector<8x384xf32> to vector<8x128xf32>
    %474 = arith.addf %473, %258 : vector<8x128xf32>
    %475 = arith.mulf %463, %474 : vector<8x128xf32>
    %476 = arith.addf %472, %475 : vector<8x128xf32>
    %477 = math.tanh %476 : vector<8x128xf32>
    %478 = arith.subf %452, %477 : vector<8x128xf32>
    %479 = arith.mulf %471, %478 : vector<8x128xf32>
    %480 = arith.addf %477, %479 : vector<8x128xf32>
    %c0_159 = arith.constant 0 : index
    %c896 = arith.constant 896 : index
    %481 = vector.load %arg7[%c0_159, %c896] : memref<8x1024xf32, #tpu.memory_space<vmem>>, vector<8x128xf32>
    tpu.vector_store %arg7[%c0_159, %c896], %480 {strides = array<i32>} : memref<8x1024xf32, #tpu.memory_space<vmem>>, vector<8x128xf32>,
    %c1_160 = arith.constant 1 : index
    %c0_161 = arith.constant 0 : index
    %c0_162 = arith.constant 0 : index
    %482 = vector.load %arg8[%c1_160, %c0_161, %c0_162] : memref<2x8x128xf32, #tpu.memory_space<vmem>>, vector<1x8x128xf32>
    %483 = vector.shape_cast %482 : vector<1x8x128xf32> to vector<8x128xf32>
    %484 = vector.shape_cast %480 : vector<8x128xf32> to vector<1x8x128xf32>
    tpu.vector_store %arg8[%c1_160, %c0_161, %c0_162], %484 {strides = array<i32>} : memref<2x8x128xf32, #tpu.memory_space<vmem>>, vector<1x8x128xf32>,
    return
  }
  func.func @transform_0(%arg0: i32) -> (i32, i32) {
    %c0_i32 = arith.constant 0 : i32
    %c0_i32_0 = arith.constant 0 : i32
    return %arg0, %c0_i32 : i32, i32
  }
  func.func @transform_1(%arg0: i32) -> (i32, i32) {
    %c0_i32 = arith.constant 0 : i32
    %c0_i32_0 = arith.constant 0 : i32
    %c0_i32_1 = arith.constant 0 : i32
    return %c0_i32, %c0_i32_0 : i32, i32
  }
  func.func @transform_2(%arg0: i32) -> (i32, i32, i32) {
    %c0_i32 = arith.constant 0 : i32
    %c0_i32_0 = arith.constant 0 : i32
    %c0_i32_1 = arith.constant 0 : i32
    %c0_i32_2 = arith.constant 0 : i32
    return %c0_i32, %c0_i32_0, %c0_i32_1 : i32, i32, i32
  }
  func.func @transform_3(%arg0: i32) -> (i32, i32, i32) {
    %c0_i32 = arith.constant 0 : i32
    %c0_i32_0 = arith.constant 0 : i32
    %c0_i32_1 = arith.constant 0 : i32
    %c0_i32_2 = arith.constant 0 : i32
    return %c0_i32, %c0_i32_0, %c0_i32_1 : i32, i32, i32
  }
  func.func @transform_4(%arg0: i32) -> (i32, i32, i32) {
    %c0_i32 = arith.constant 0 : i32
    %c0_i32_0 = arith.constant 0 : i32
    %c0_i32_1 = arith.constant 0 : i32
    %c0_i32_2 = arith.constant 0 : i32
    return %c0_i32, %c0_i32_0, %c0_i32_1 : i32, i32, i32
  }
  func.func @transform_5(%arg0: i32) -> (i32, i32, i32) {
    %c0_i32 = arith.constant 0 : i32
    %c0_i32_0 = arith.constant 0 : i32
    %c0_i32_1 = arith.constant 0 : i32
    %c0_i32_2 = arith.constant 0 : i32
    return %c0_i32, %c0_i32_0, %c0_i32_1 : i32, i32, i32
  }
  func.func @transform_6(%arg0: i32) -> (i32, i32) {
    %c0_i32 = arith.constant 0 : i32
    %c0_i32_0 = arith.constant 0 : i32
    return %arg0, %c0_i32 : i32, i32
  }
  func.func @transform_7(%arg0: i32) -> (i32, i32, i32) {
    %c0_i32 = arith.constant 0 : i32
    %c0_i32_0 = arith.constant 0 : i32
    %c0_i32_1 = arith.constant 0 : i32
    return %c0_i32, %arg0, %c0_i32_0 : i32, i32, i32
  }
}

</mosaic_0001>

<llo_original>
// kernel: tpu_custom_call.1
$region0: #{tpu_custom_call.1}
  #allocation0 [shape = 'u32[]', space=smem, size = 0x4, offset = 0x4, fixed_abs, tag = 'smem constant byte address 0x4 - core index']
  #allocation1 [shape = 'u32[72,128]{1,0:T(1,128)}', space=vmem, size = 0x9000, scoped, tag = 'internal scratch']
  #allocation2 [shape = 'f32[64,128]{1,0:T(8,128)}', space=vmem, size = 0x8000, scoped, tag = 'scratch operand']
  #allocation3 [shape = 'f32[64,128]{1,0:T(8,128)}', space=vmem, size = 0x8000, scoped, tag = 'scratch operand']
  #allocation4 [shape = 'f32[64,384]{1,0:T(8,128)}', space=vmem, size = 0x18000, scoped, tag = 'scratch operand']
  %s0 = inlined_call_operand.hbm [shape: f32[8,32], index: 0, kind: input, shape index: {}]
  %s1 = inlined_call_operand.hbm [shape: f32[128,384], index: 1, kind: input, shape index: {}]
  %s2 = inlined_call_operand.hbm [shape: f32[1,128,384], index: 2, kind: input, shape index: {}]
  %s3 = inlined_call_operand.hbm [shape: f32[2,128,384], index: 3, kind: input, shape index: {}]
  %s4 = inlined_call_operand.hbm [shape: f32[2,1,384], index: 4, kind: input, shape index: {}]
  %s5 = inlined_call_operand.vmem [shape: f32[2,1,128], index: 5, kind: input, shape index: {}]
  %s6 = inlined_call_operand.hbm [shape: f32[8,1024], index: 6, kind: output, shape index: {0}]
  %s7 = inlined_call_operand.hbm [shape: f32[2,8,128], index: 7, kind: output, shape index: {1}]
  %8 = xla_tuple %s6, %s7
  %s9 = sld [smem:[#allocation0]]
  $region62: #{tpu_custom_call.1} parent=0
    _
  %s11 = ssub.s32 1, %s9
  %s12 = scalar_select 0, %s11, %s9
  $region1: #{tpu_custom_call.1} parent=0
    #allocation5 [shape = 'u8[4096]{0}', space=vmem, size = 0x1000, scoped, tag = 'input window, operand 0, single buffered']
    #allocation6 [shape = 's32[1]{0}', space=sflag, size = 0x4, scoped, tag = 'scoped memory for tpu_custom_call.1']
    #allocation7 [shape = 's32[1]{0}', space=sflag, size = 0x4, scoped, tag = 'scoped memory for tpu_custom_call.1']
    #allocation8 [shape = 'u8[196608]{0}', space=vmem, size = 0x30000, scoped, tag = 'input window, operand 1, single buffered']
    #allocation9 [shape = 's32[1]{0}', space=sflag, size = 0x4, scoped, tag = 'scoped memory for tpu_custom_call.1']
    #allocation10 [shape = 'u8[196608]{0}', space=vmem, size = 0x30000, scoped, tag = 'input window, operand 2, single buffered']
    #allocation11 [shape = 'u8[393216]{0}', space=vmem, size = 0x60000, scoped, tag = 'input window, operand 3, single buffered']
    #allocation12 [shape = 's32[1]{0}', space=sflag, size = 0x4, scoped, tag = 'scoped memory for tpu_custom_call.1']
    #allocation13 [shape = 'u8[3072]{0}', space=vmem, size = 0xc00, scoped, tag = 'input window, operand 4, single buffered']
    #allocation14 [shape = 'u8[32768]{0}', space=vmem, size = 0x8000, scoped, tag = 'output window, operand 0, single buffered']
    #allocation15 [shape = 'u8[8192]{0}', space=vmem, size = 0x2000, scoped, tag = 'output window, operand 1, single buffered']
    #allocation16 [shape = 's32[1]{0}', space=sflag, size = 0x4, scoped, tag = 'scoped memory for tpu_custom_call.1']
    %13 = vsyncpa [#allocation6], 0
    %14 = vsyncpa [#allocation9], 0
    %15 = vsyncpa [#allocation12], 0
    %16 = vsyncpa [#allocation7], 0
    %17 = vsyncpa [#allocation16], 0
    // Predicated region
    $region2: #{tpu_custom_call.1} parent=1 // pred_check
      _
    $region3: #{tpu_custom_call.1} parent=1 // pred_check_branch
      %19 = sbr.rel (0) target = $region5
    $region4: #{tpu_custom_call.1} parent=1 // pred_region
      %21 = vsyncadd [#allocation6], 0
      %s23 = sshll.u32 %s0, 4
      %s24 = int_to_ptr.hbm [resolvable:$true] %s23
      %s25 = sshll.u32 [#allocation5], 4
      %s26 = int_to_ptr.vmem [resolvable:$true] %s25
      %28 = dma.hbm_to_vmem [thread:$0]  %s24, 128, %s26, [#allocation6]
    $region5: #{tpu_custom_call.1} parent=1 // pred_fallthru
      _
    // Predicated region
    $region6: #{tpu_custom_call.1} parent=1 // pred_check
      _
    $region7: #{tpu_custom_call.1} parent=1 // pred_check_branch
      %30 = sbr.rel (0) target = $region9
    $region8: #{tpu_custom_call.1} parent=1 // pred_region
      %32 = vsyncadd [#allocation9], 0
      %s33 = sshll.u32 %s1, 4
      %s34 = int_to_ptr.hbm [resolvable:$true] %s33
      %s35 = sshll.u32 [#allocation8], 4
      %s36 = int_to_ptr.vmem [resolvable:$true] %s35
      %41 = dma.hbm_to_vmem [thread:$0]  %s34, 6144, %s36, [#allocation9], 384, 384, 24
    $region9: #{tpu_custom_call.1} parent=1 // pred_fallthru
      _
    // Predicated region
    $region10: #{tpu_custom_call.1} parent=1 // pred_check
      _
    $region11: #{tpu_custom_call.1} parent=1 // pred_check_branch
      %43 = sbr.rel (0) target = $region13
    $region12: #{tpu_custom_call.1} parent=1 // pred_region
      %45 = vsyncadd [#allocation9], 0
      %s46 = sshll.u32 %s2, 4
      %s47 = int_to_ptr.hbm [resolvable:$true] %s46
      %s48 = sshll.u32 [#allocation10], 4
      %s49 = int_to_ptr.vmem [resolvable:$true] %s48
      %54 = dma.hbm_to_vmem [thread:$0]  %s47, 6144, %s49, [#allocation9], 384, 384, 24
    $region13: #{tpu_custom_call.1} parent=1 // pred_fallthru
      _
    // Predicated region
    $region14: #{tpu_custom_call.1} parent=1 // pred_check
      _
    $region15: #{tpu_custom_call.1} parent=1 // pred_check_branch
      %56 = sbr.rel (0) target = $region17
    $region16: #{tpu_custom_call.1} parent=1 // pred_region
      %58 = vsyncadd [#allocation12], 0
      %s59 = sshll.u32 %s3, 4
      %s60 = int_to_ptr.hbm [resolvable:$true] %s59
      %s61 = sshll.u32 [#allocation11], 4
      %s62 = int_to_ptr.vmem [resolvable:$true] %s61
      %67 = dma.hbm_to_vmem [thread:$0]  %s60, 12288, %s62, [#allocation12], 384, 384, 24
    $region17: #{tpu_custom_call.1} parent=1 // pred_fallthru
      _
    // Predicated region
    $region18: #{tpu_custom_call.1} parent=1 // pred_check
      _
    $region19: #{tpu_custom_call.1} parent=1 // pred_check_branch
      %69 = sbr.rel (0) target = $region21
    $region20: #{tpu_custom_call.1} parent=1 // pred_region
      %71 = vsyncadd [#allocation12], 0
      %s72 = sshll.u32 %s4, 4
      %s73 = int_to_ptr.hbm [resolvable:$true] %s72
      %s74 = sshll.u32 [#allocation13], 4
      %s75 = int_to_ptr.vmem [resolvable:$true] %s74
      %80 = dma.hbm_to_vmem [thread:$0]  %s73, 96, %s75, [#allocation12], 48, 48, 3
    $region21: #{tpu_custom_call.1} parent=1 // pred_fallthru
      _
    // Predicated region
    $region22: #{tpu_custom_call.1} parent=1 // pred_check
      _
    $region23: #{tpu_custom_call.1} parent=1 // pred_check_branch
      %82 = sbr.rel (0) target = $region25
    $region24: #{tpu_custom_call.1} parent=1 // pred_region
      _
    $region25: #{tpu_custom_call.1} parent=1 // pred_fallthru
      _
    // Predicated region
    $region26: #{tpu_custom_call.1} parent=1 // pred_check
      _
    $region27: #{tpu_custom_call.1} parent=1 // pred_check_branch
      %84 = sbr.rel (0) target = $region29
    $region28: #{tpu_custom_call.1} parent=1 // pred_region
      %86 = dma.done [#allocation6], 128
    $region29: #{tpu_custom_call.1} parent=1 // pred_fallthru
      _
    // Predicated region
    $region30: #{tpu_custom_call.1} parent=1 // pred_check
      _
    $region31: #{tpu_custom_call.1} parent=1 // pred_check_branch
      %88 = sbr.rel (0) target = $region33
    $region32: #{tpu_custom_call.1} parent=1 // pred_region
      %90 = dma.done [#allocation9], 6144
    $region33: #{tpu_custom_call.1} parent=1 // pred_fallthru
      _
    // Predicated region
    $region34: #{tpu_custom_call.1} parent=1 // pred_check
      _
    $region35: #{tpu_custom_call.1} parent=1 // pred_check_branch
      %92 = sbr.rel (0) target = $region37
    $region36: #{tpu_custom_call.1} parent=1 // pred_region
      %94 = dma.done [#allocation9], 6144
    $region37: #{tpu_custom_call.1} parent=1 // pred_fallthru
      _
    // Predicated region
    $region38: #{tpu_custom_call.1} parent=1 // pred_check
      _
    $region39: #{tpu_custom_call.1} parent=1 // pred_check_branch
      %96 = sbr.rel (0) target = $region41
    $region40: #{tpu_custom_call.1} parent=1 // pred_region
      %98 = dma.done [#allocation12], 12288
    $region41: #{tpu_custom_call.1} parent=1 // pred_fallthru
      _
    // Predicated region
    $region42: #{tpu_custom_call.1} parent=1 // pred_check
      _
    $region43: #{tpu_custom_call.1} parent=1 // pred_check_branch
      %100 = sbr.rel (0) target = $region45
    $region44: #{tpu_custom_call.1} parent=1 // pred_region
      %102 = dma.done [#allocation12], 96
    $region45: #{tpu_custom_call.1} parent=1 // pred_fallthru
      _
    %103 = vst [vmem:[#allocation2] sm:$0xff] 0.0
    %104 = vst [vmem:[#allocation2 + $0x8] sm:$0xff] 0.0
    %105 = vst [vmem:[#allocation2 + $0x10] sm:$0xff] 0.0
    %106 = vst [vmem:[#allocation2 + $0x18] sm:$0xff] 0.0
    %107 = vst [vmem:[#allocation2 + $0x20] sm:$0xff] 0.0
    %108 = vst [vmem:[#allocation2 + $0x28] sm:$0xff] 0.0
    %109 = vst [vmem:[#allocation2 + $0x30] sm:$0xff] 0.0
    %110 = vst [vmem:[#allocation2 + $0x38] sm:$0xff] 0.0
    %v111 = vld [vmem:[#allocation5] sm:$0xff]
    %vm112 = vcmask 31744
    %113 = vst.msk [vmem:[#allocation2] sm:$0xff] %vm112, %v111
    %v114 = vld [vmem:[#allocation5] sm:$0xff]
    %116 = vrot.lane.b32.xlu0 %v114, 124
    %v117 = vpop.permute.xlu0 %116
    %119 = vst.msk [vmem:[#allocation2 + $0x8] sm:$0xff] %vm112, %v117
    %v120 = vld [vmem:[#allocation5] sm:$0xff]
    %122 = vrot.lane.b32.xlu0 %v120, 120
    %v123 = vpop.permute.xlu0 %122
    %125 = vst.msk [vmem:[#allocation2 + $0x10] sm:$0xff] %vm112, %v123
    %v126 = vld [vmem:[#allocation5] sm:$0xff]
    %128 = vrot.lane.b32.xlu0 %v126, 116
    %v129 = vpop.permute.xlu0 %128
    %131 = vst.msk [vmem:[#allocation2 + $0x18] sm:$0xff] %vm112, %v129
    %v132 = vld [vmem:[#allocation5] sm:$0xff]
    %134 = vrot.lane.b32.xlu0 %v132, 112
    %v135 = vpop.permute.xlu0 %134
    %137 = vst.msk [vmem:[#allocation2 + $0x20] sm:$0xff] %vm112, %v135
    %v138 = vld [vmem:[#allocation5] sm:$0xff]
    %140 = vrot.lane.b32.xlu0 %v138, 108
    %v141 = vpop.permute.xlu0 %140
    %143 = vst.msk [vmem:[#allocation2 + $0x28] sm:$0xff] %vm112, %v141
    %v144 = vld [vmem:[#allocation5] sm:$0xff]
    %146 = vrot.lane.b32.xlu0 %v144, 104
    %v147 = vpop.permute.xlu0 %146
    %149 = vst.msk [vmem:[#allocation2 + $0x30] sm:$0xff] %vm112, %v147
    %v150 = vld [vmem:[#allocation5] sm:$0xff]
    %152 = vrot.lane.b32.xlu0 %v150, 100
    %v153 = vpop.permute.xlu0 %152
    %155 = vst.msk [vmem:[#allocation2 + $0x38] sm:$0xff] %vm112, %v153
    %v156 = vld [vmem:[#allocation11] sm:$0xff]
    %v157 = vld [vmem:[#allocation11 + $0x8] sm:$0xff]
    %v158 = vld [vmem:[#allocation11 + $0x10] sm:$0xff]
    %v159 = vld [vmem:[#allocation11 + $0x18] sm:$0xff]
    %v160 = vld [vmem:[#allocation11 + $0x20] sm:$0xff]
    %v161 = vld [vmem:[#allocation11 + $0x28] sm:$0xff]
    %v162 = vld [vmem:[#allocation11 + $0x30] sm:$0xff]
    %v163 = vld [vmem:[#allocation11 + $0x38] sm:$0xff]
    %v164 = vld [vmem:[#allocation11 + $0x40] sm:$0xff]
    %v165 = vld [vmem:[#allocation11 + $0x48] sm:$0xff]
    %v166 = vld [vmem:[#allocation11 + $0x50] sm:$0xff]
    %v167 = vld [vmem:[#allocation11 + $0x58] sm:$0xff]
    %v168 = vld [vmem:[#allocation11 + $0x60] sm:$0xff]
    %v169 = vld [vmem:[#allocation11 + $0x68] sm:$0xff]
    %v170 = vld [vmem:[#allocation11 + $0x70] sm:$0xff]
    %v171 = vld [vmem:[#allocation11 + $0x78] sm:$0xff]
    %v172 = vld [vmem:[#allocation11 + $0x80] sm:$0xff]
    %v173 = vld [vmem:[#allocation11 + $0x88] sm:$0xff]
    %v174 = vld [vmem:[#allocation11 + $0x90] sm:$0xff]
    %v175 = vld [vmem:[#allocation11 + $0x98] sm:$0xff]
    %v176 = vld [vmem:[#allocation11 + $0xa0] sm:$0xff]
    %v177 = vld [vmem:[#allocation11 + $0xa8] sm:$0xff]
    %v178 = vld [vmem:[#allocation11 + $0xb0] sm:$0xff]
    %v179 = vld [vmem:[#allocation11 + $0xb8] sm:$0xff]
    %v180 = vld [vmem:[#allocation11 + $0xc0] sm:$0xff]
    %v181 = vld [vmem:[#allocation11 + $0xc8] sm:$0xff]
    %v182 = vld [vmem:[#allocation11 + $0xd0] sm:$0xff]
    %v183 = vld [vmem:[#allocation11 + $0xd8] sm:$0xff]
    %v184 = vld [vmem:[#allocation11 + $0xe0] sm:$0xff]
    %v185 = vld [vmem:[#allocation11 + $0xe8] sm:$0xff]
    %v186 = vld [vmem:[#allocation11 + $0xf0] sm:$0xff]
    %v187 = vld [vmem:[#allocation11 + $0xf8] sm:$0xff]
    %v188 = vld [vmem:[#allocation11 + $0x100] sm:$0xff]
    %v189 = vld [vmem:[#allocation11 + $0x108] sm:$0xff]
    %v190 = vld [vmem:[#allocation11 + $0x110] sm:$0xff]
    %v191 = vld [vmem:[#allocation11 + $0x118] sm:$0xff]
    %v192 = vld [vmem:[#allocation11 + $0x120] sm:$0xff]
    %v193 = vld [vmem:[#allocation11 + $0x128] sm:$0xff]
    %v194 = vld [vmem:[#allocation11 + $0x130] sm:$0xff]
    %v195 = vld [vmem:[#allocation11 + $0x138] sm:$0xff]
    %v196 = vld [vmem:[#allocation11 + $0x140] sm:$0xff]
    %v197 = vld [vmem:[#allocation11 + $0x148] sm:$0xff]
    %v198 = vld [vmem:[#allocation11 + $0x150] sm:$0xff]
    %v199 = vld [vmem:[#allocation11 + $0x158] sm:$0xff]
    %v200 = vld [vmem:[#allocation11 + $0x160] sm:$0xff]
    %v201 = vld [vmem:[#allocation11 + $0x168] sm:$0xff]
    %v202 = vld [vmem:[#allocation11 + $0x170] sm:$0xff]
    %v203 = vld [vmem:[#allocation11 + $0x178] sm:$0xff]
    %v204 = vld [vmem:[#allocation13] sm:$0x7]
    %v205 = vld [vmem:[%s5] sm:$0x1]
    %v207 = vperm.slane %v205, 0
    %v209 = vld [vmem:[#allocation2] sm:$0xff]
    %v210 = vld [vmem:[#allocation2 + $0x8] sm:$0xff]
    %v211 = vld [vmem:[#allocation2 + $0x10] sm:$0xff]
    %v212 = vld [vmem:[#allocation2 + $0x18] sm:$0xff]
    %v213 = vld [vmem:[#allocation2 + $0x20] sm:$0xff]
    %v214 = vld [vmem:[#allocation2 + $0x28] sm:$0xff]
    %v215 = vld [vmem:[#allocation2 + $0x30] sm:$0xff]
    %v216 = vld [vmem:[#allocation2 + $0x38] sm:$0xff]
    %v217 = vld [vmem:[#allocation8] sm:$0xff]
    %v218 = vld [vmem:[#allocation8 + $0x8] sm:$0xff]
    %v219 = vld [vmem:[#allocation8 + $0x10] sm:$0xff]
    %v220 = vld [vmem:[#allocation8 + $0x18] sm:$0xff]
    %v221 = vld [vmem:[#allocation8 + $0x20] sm:$0xff]
    %v222 = vld [vmem:[#allocation8 + $0x28] sm:$0xff]
    %v223 = vld [vmem:[#allocation8 + $0x30] sm:$0xff]
    %v224 = vld [vmem:[#allocation8 + $0x38] sm:$0xff]
    %v225 = vld [vmem:[#allocation8 + $0x40] sm:$0xff]
    %v226 = vld [vmem:[#allocation8 + $0x48] sm:$0xff]
    %v227 = vld [vmem:[#allocation8 + $0x50] sm:$0xff]
    %v228 = vld [vmem:[#allocation8 + $0x58] sm:$0xff]
    %v229 = vld [vmem:[#allocation8 + $0x60] sm:$0xff]
    %v230 = vld [vmem:[#allocation8 + $0x68] sm:$0xff]
    %v231 = vld [vmem:[#allocation8 + $0x70] sm:$0xff]
    %v232 = vld [vmem:[#allocation8 + $0x78] sm:$0xff]
    %v233 = vld [vmem:[#allocation8 + $0x80] sm:$0xff]
    %v234 = vld [vmem:[#allocation8 + $0x88] sm:$0xff]
    %v235 = vld [vmem:[#allocation8 + $0x90] sm:$0xff]
    %v236 = vld [vmem:[#allocation8 + $0x98] sm:$0xff]
    %v237 = vld [vmem:[#allocation8 + $0xa0] sm:$0xff]
    %v238 = vld [vmem:[#allocation8 + $0xa8] sm:$0xff]
    %v239 = vld [vmem:[#allocation8 + $0xb0] sm:$0xff]
    %v240 = vld [vmem:[#allocation8 + $0xb8] sm:$0xff]
    %v241 = vld [vmem:[#allocation8 + $0xc0] sm:$0xff]
    %v242 = vld [vmem:[#allocation8 + $0xc8] sm:$0xff]
    %v243 = vld [vmem:[#allocation8 + $0xd0] sm:$0xff]
    %v244 = vld [vmem:[#allocation8 + $0xd8] sm:$0xff]
    %v245 = vld [vmem:[#allocation8 + $0xe0] sm:$0xff]
    %v246 = vld [vmem:[#allocation8 + $0xe8] sm:$0xff]
    %v247 = vld [vmem:[#allocation8 + $0xf0] sm:$0xff]
    %v248 = vld [vmem:[#allocation8 + $0xf8] sm:$0xff]
    %v249 = vld [vmem:[#allocation8 + $0x100] sm:$0xff]
    %v250 = vld [vmem:[#allocation8 + $0x108] sm:$0xff]
    %v251 = vld [vmem:[#allocation8 + $0x110] sm:$0xff]
    %v252 = vld [vmem:[#allocation8 + $0x118] sm:$0xff]
    %v253 = vld [vmem:[#allocation8 + $0x120] sm:$0xff]
    %v254 = vld [vmem:[#allocation8 + $0x128] sm:$0xff]
    %v255 = vld [vmem:[#allocation8 + $0x130] sm:$0xff]
    %v256 = vld [vmem:[#allocation8 + $0x138] sm:$0xff]
    %v257 = vld [vmem:[#allocation8 + $0x140] sm:$0xff]
    %v258 = vld [vmem:[#allocation8 + $0x148] sm:$0xff]
    %v259 = vld [vmem:[#allocation8 + $0x150] sm:$0xff]
    %v260 = vld [vmem:[#allocation8 + $0x158] sm:$0xff]
    %v261 = vld [vmem:[#allocation8 + $0x160] sm:$0xff]
    %v262 = vld [vmem:[#allocation8 + $0x168] sm:$0xff]
    %v263 = vld [vmem:[#allocation8 + $0x170] sm:$0xff]
    %v264 = vld [vmem:[#allocation8 + $0x178] sm:$0xff]
    %v266 = vperm.slane %v204, 0
    %v267 = vperm.slane %v204, 1
    %v268 = vperm.slane %v204, 2
    %272 = vmatpush.msra.mxu0 %v262
    %273 = vmatpush.msra.mxu0 %v259
    %274 = vmatpush.msra.mxu0 %v256
    %275 = vmatpush.msra.mxu0 %v253
    %276 = vmatpush.msra.mxu0 %v250
    %277 = vmatpush.msra.mxu0 %v247
    %278 = vmatpush.msra.mxu0 %v244
    %279 = vmatpush.msra.mxu0 %v241
    %280 = vmatpush.msra.mxu0 %v238
    %281 = vmatpush.msra.mxu0 %v235
    %282 = vmatpush.msra.mxu0 %v232
    %283 = vmatpush.msra.mxu0 %v229
    %284 = vmatpush.msra.mxu0 %v226
    %285 = vmatpush.msra.mxu0 %v223
    %286 = vmatpush.msra.mxu0 %v220
    %287 = vmatpush.msra.mxu0 %v217
    %288 = vmatmul.f32.gmra.mxu0 %v209
    %v289 = vpop.f32.mrf.mxu0
    %v290 = vadd.f32 %v266, %v289
    %291 = vmatmul.f32.gmra.mxu0 %v210
    %v292 = vpop.f32.mrf.mxu0
    %v293 = vadd.f32 %v266, %v292
    %294 = vmatmul.f32.gmra.mxu0 %v211
    %v295 = vpop.f32.mrf.mxu0
    %v296 = vadd.f32 %v266, %v295
    %297 = vmatmul.f32.gmra.mxu0 %v212
    %v298 = vpop.f32.mrf.mxu0
    %v299 = vadd.f32 %v266, %v298
    %300 = vmatmul.f32.gmra.mxu0 %v213
    %v301 = vpop.f32.mrf.mxu0
    %v302 = vadd.f32 %v266, %v301
    %303 = vmatmul.f32.gmra.mxu0 %v214
    %v304 = vpop.f32.mrf.mxu0
    %v305 = vadd.f32 %v266, %v304
    %306 = vmatmul.f32.gmra.mxu0 %v215
    %v307 = vpop.f32.mrf.mxu0
    %v308 = vadd.f32 %v266, %v307
    %309 = vmatmul.f32.gmra.mxu0 %v216
    %v310 = vpop.f32.mrf.mxu0
    %v311 = vadd.f32 %v266, %v310
    %312 = vdwg.mxu0
    %313 = vmatpush.msra.mxu0 %v263
    %314 = vmatpush.msra.mxu0 %v260
    %315 = vmatpush.msra.mxu0 %v257
    %316 = vmatpush.msra.mxu0 %v254
    %317 = vmatpush.msra.mxu0 %v251
    %318 = vmatpush.msra.mxu0 %v248
    %319 = vmatpush.msra.mxu0 %v245
    %320 = vmatpush.msra.mxu0 %v242
    %321 = vmatpush.msra.mxu0 %v239
    %322 = vmatpush.msra.mxu0 %v236
    %323 = vmatpush.msra.mxu0 %v233
    %324 = vmatpush.msra.mxu0 %v230
    %325 = vmatpush.msra.mxu0 %v227
    %326 = vmatpush.msra.mxu0 %v224
    %327 = vmatpush.msra.mxu0 %v221
    %328 = vmatpush.msra.mxu0 %v218
    %329 = vmatmul.f32.gmra.mxu0 %v209
    %v330 = vpop.f32.mrf.mxu0
    %v331 = vadd.f32 %v267, %v330
    %332 = vmatmul.f32.gmra.mxu0 %v210
    %v333 = vpop.f32.mrf.mxu0
    %v334 = vadd.f32 %v267, %v333
    %335 = vmatmul.f32.gmra.mxu0 %v211
    %v336 = vpop.f32.mrf.mxu0
    %v337 = vadd.f32 %v267, %v336
    %338 = vmatmul.f32.gmra.mxu0 %v212
    %v339 = vpop.f32.mrf.mxu0
    %v340 = vadd.f32 %v267, %v339
    %341 = vmatmul.f32.gmra.mxu0 %v213
    %v342 = vpop.f32.mrf.mxu0
    %v343 = vadd.f32 %v267, %v342
    %344 = vmatmul.f32.gmra.mxu0 %v214
    %v345 = vpop.f32.mrf.mxu0
    %v346 = vadd.f32 %v267, %v345
    %347 = vmatmul.f32.gmra.mxu0 %v215
    %v348 = vpop.f32.mrf.mxu0
    %v349 = vadd.f32 %v267, %v348
    %350 = vmatmul.f32.gmra.mxu0 %v216
    %v351 = vpop.f32.mrf.mxu0
    %v352 = vadd.f32 %v267, %v351
    %353 = vdwg.mxu0
    %354 = vmatpush.msra.mxu0 %v264
    %355 = vmatpush.msra.mxu0 %v261
    %356 = vmatpush.msra.mxu0 %v258
    %357 = vmatpush.msra.mxu0 %v255
    %358 = vmatpush.msra.mxu0 %v252
    %359 = vmatpush.msra.mxu0 %v249
    %360 = vmatpush.msra.mxu0 %v246
    %361 = vmatpush.msra.mxu0 %v243
    %362 = vmatpush.msra.mxu0 %v240
    %363 = vmatpush.msra.mxu0 %v237
    %364 = vmatpush.msra.mxu0 %v234
    %365 = vmatpush.msra.mxu0 %v231
    %366 = vmatpush.msra.mxu0 %v228
    %367 = vmatpush.msra.mxu0 %v225
    %368 = vmatpush.msra.mxu0 %v222
    %369 = vmatpush.msra.mxu0 %v219
    %370 = vmatmul.f32.gmra.mxu0 %v209
    %v371 = vpop.f32.mrf.mxu0
    %v372 = vadd.f32 %v268, %v371
    %373 = vmatmul.f32.gmra.mxu0 %v210
    %v374 = vpop.f32.mrf.mxu0
    %v375 = vadd.f32 %v268, %v374
    %376 = vmatmul.f32.gmra.mxu0 %v211
    %v377 = vpop.f32.mrf.mxu0
    %v378 = vadd.f32 %v268, %v377
    %379 = vmatmul.f32.gmra.mxu0 %v212
    %v380 = vpop.f32.mrf.mxu0
    %v381 = vadd.f32 %v268, %v380
    %382 = vmatmul.f32.gmra.mxu0 %v213
    %v383 = vpop.f32.mrf.mxu0
    %v384 = vadd.f32 %v268, %v383
    %385 = vmatmul.f32.gmra.mxu0 %v214
    %v386 = vpop.f32.mrf.mxu0
    %v387 = vadd.f32 %v268, %v386
    %388 = vmatmul.f32.gmra.mxu0 %v215
    %v389 = vpop.f32.mrf.mxu0
    %v390 = vadd.f32 %v268, %v389
    %391 = vmatmul.f32.gmra.mxu0 %v216
    %v392 = vpop.f32.mrf.mxu0
    %v393 = vadd.f32 %v268, %v392
    %394 = vdwg.mxu0
    %395 = vst [vmem:[#allocation4] sm:$0xff] %v290
    %396 = vst [vmem:[#allocation4 + $0x8] sm:$0xff] %v331
    %397 = vst [vmem:[#allocation4 + $0x10] sm:$0xff] %v372
    %398 = vst [vmem:[#allocation4 + $0x18] sm:$0xff] %v293
    %399 = vst [vmem:[#allocation4 + $0x20] sm:$0xff] %v334
    %400 = vst [vmem:[#allocation4 + $0x28] sm:$0xff] %v375
    %401 = vst [vmem:[#allocation4 + $0x30] sm:$0xff] %v296
    %402 = vst [vmem:[#allocation4 + $0x38] sm:$0xff] %v337
    %403 = vst [vmem:[#allocation4 + $0x40] sm:$0xff] %v378
    %404 = vst [vmem:[#allocation4 + $0x48] sm:$0xff] %v299
    %405 = vst [vmem:[#allocation4 + $0x50] sm:$0xff] %v340
    %406 = vst [vmem:[#allocation4 + $0x58] sm:$0xff] %v381
    %407 = vst [vmem:[#allocation4 + $0x60] sm:$0xff] %v302
    %408 = vst [vmem:[#allocation4 + $0x68] sm:$0xff] %v343
    %409 = vst [vmem:[#allocation4 + $0x70] sm:$0xff] %v384
    %410 = vst [vmem:[#allocation4 + $0x78] sm:$0xff] %v305
    %411 = vst [vmem:[#allocation4 + $0x80] sm:$0xff] %v346
    %412 = vst [vmem:[#allocation4 + $0x88] sm:$0xff] %v387
    %413 = vst [vmem:[#allocation4 + $0x90] sm:$0xff] %v308
    %414 = vst [vmem:[#allocation4 + $0x98] sm:$0xff] %v349
    %415 = vst [vmem:[#allocation4 + $0xa0] sm:$0xff] %v390
    %416 = vst [vmem:[#allocation4 + $0xa8] sm:$0xff] %v311
    %417 = vst [vmem:[#allocation4 + $0xb0] sm:$0xff] %v352
    %418 = vst [vmem:[#allocation4 + $0xb8] sm:$0xff] %v393
    %v419 = vld [vmem:[#allocation4] sm:$0xff]
    %v420 = vld [vmem:[#allocation4 + $0x8] sm:$0xff]
    %v421 = vld [vmem:[#allocation4 + $0x10] sm:$0xff]
    %v422 = vxor.u32 %v419, 2147483648
    %v423 = vmul.f32 %v422, 1.442695
    %v424 = vpow.pop %v423
    %v425 = vadd.f32 %v424, 1.0
    %v426 = vrcp.pop %v425
    %v427 = vmul.f32 %v425, %v426
    %v428 = vsub.f32 1.0, %v427
    %v429 = vmul.f32 %v426, %v428
    %v430 = vadd.f32 %v426, %v429
    %vm431 = vweird.f32 %v425
    %vm432 = vweird.f32 %v426
    %vm433 = vmor %vm431, %vm432
    %v434 = vsel %vm433, %v426, %v430
    %v435 = vand.u32 2147483647, %v425
    %vm436 = vcmp.eq.f32.partialorder %v435, 8.507059e+37
    %v437 = vand.u32 %v425, 2147483648
    %v438 = vor.u32 1.1754944e-38, %v437
    %v439 = vsel %vm436, %v438, %v434
    %v440 = vmul.f32 1.0, %v439
    %v441 = vxor.u32 %v420, 2147483648
    %v442 = vmul.f32 %v441, 1.442695
    %v443 = vpow.pop %v442
    %v444 = vadd.f32 %v443, 1.0
    %v445 = vrcp.pop %v444
    %v446 = vmul.f32 %v444, %v445
    %v447 = vsub.f32 1.0, %v446
    %v448 = vmul.f32 %v445, %v447
    %v449 = vadd.f32 %v445, %v448
    %vm450 = vweird.f32 %v444
    %vm451 = vweird.f32 %v445
    %vm452 = vmor %vm450, %vm451
    %v453 = vsel %vm452, %v445, %v449
    %v454 = vand.u32 2147483647, %v444
    %vm455 = vcmp.eq.f32.partialorder %v454, 8.507059e+37
    %v456 = vand.u32 %v444, 2147483648
    %v457 = vor.u32 1.1754944e-38, %v456
    %v458 = vsel %vm455, %v457, %v453
    %v459 = vmul.f32 1.0, %v458
    %v460 = vmul.f32 %v440, %v207
    %v461 = vadd.f32 %v421, %v460
    %v462 = vtanh.pop %v461
    %v463 = vmul.f32 %v459, %v462
    %v464 = vsub.f32 %v462, %v463
    %465 = vst [vmem:[#allocation3] sm:$0xff] %v464
    %v466 = vld [vmem:[#allocation4 + $0x18] sm:$0xff]
    %v467 = vld [vmem:[#allocation4 + $0x20] sm:$0xff]
    %v468 = vld [vmem:[#allocation4 + $0x28] sm:$0xff]
    %469 = vmatpush.msra.mxu0 %v201
    %470 = vmatpush.msra.mxu0 %v198
    %471 = vmatpush.msra.mxu0 %v195
    %472 = vmatpush.msra.mxu0 %v192
    %473 = vmatpush.msra.mxu0 %v189
    %474 = vmatpush.msra.mxu0 %v186
    %475 = vmatpush.msra.mxu0 %v183
    %476 = vmatpush.msra.mxu0 %v180
    %477 = vmatpush.msra.mxu0 %v177
    %478 = vmatpush.msra.mxu0 %v174
    %479 = vmatpush.msra.mxu0 %v171
    %480 = vmatpush.msra.mxu0 %v168
    %481 = vmatpush.msra.mxu0 %v165
    %482 = vmatpush.msra.mxu0 %v162
    %483 = vmatpush.msra.mxu0 %v159
    %484 = vmatpush.msra.mxu0 %v156
    %485 = vmatmul.f32.gmra.mxu0 %v464
    %v486 = vpop.f32.mrf.mxu0
    %v487 = vadd.f32 0.0, %v486
    %488 = vdwg.mxu0
    %489 = vmatpush.msra.mxu0 %v202
    %490 = vmatpush.msra.mxu0 %v199
    %491 = vmatpush.msra.mxu0 %v196
    %492 = vmatpush.msra.mxu0 %v193
    %493 = vmatpush.msra.mxu0 %v190
    %494 = vmatpush.msra.mxu0 %v187
    %495 = vmatpush.msra.mxu0 %v184
    %496 = vmatpush.msra.mxu0 %v181
    %497 = vmatpush.msra.mxu0 %v178
    %498 = vmatpush.msra.mxu0 %v175
    %499 = vmatpush.msra.mxu0 %v172
    %500 = vmatpush.msra.mxu0 %v169
    %501 = vmatpush.msra.mxu0 %v166
    %502 = vmatpush.msra.mxu0 %v163
    %503 = vmatpush.msra.mxu0 %v160
    %504 = vmatpush.msra.mxu0 %v157
    %505 = vmatmul.f32.gmra.mxu0 %v464
    %v506 = vpop.f32.mrf.mxu0
    %v507 = vadd.f32 0.0, %v506
    %508 = vdwg.mxu0
    %509 = vmatpush.msra.mxu0 %v203
    %510 = vmatpush.msra.mxu0 %v200
    %511 = vmatpush.msra.mxu0 %v197
    %512 = vmatpush.msra.mxu0 %v194
    %513 = vmatpush.msra.mxu0 %v191
    %514 = vmatpush.msra.mxu0 %v188
    %515 = vmatpush.msra.mxu0 %v185
    %516 = vmatpush.msra.mxu0 %v182
    %517 = vmatpush.msra.mxu0 %v179
    %518 = vmatpush.msra.mxu0 %v176
    %519 = vmatpush.msra.mxu0 %v173
    %520 = vmatpush.msra.mxu0 %v170
    %521 = vmatpush.msra.mxu0 %v167
    %522 = vmatpush.msra.mxu0 %v164
    %523 = vmatpush.msra.mxu0 %v161
    %524 = vmatpush.msra.mxu0 %v158
    %525 = vmatmul.f32.gmra.mxu0 %v464
    %v526 = vpop.f32.mrf.mxu0
    %v527 = vadd.f32 0.0, %v526
    %528 = vdwg.mxu0
    %v529 = vadd.f32 %v466, %v487
    %v530 = vxor.u32 %v529, 2147483648
    %v531 = vmul.f32 %v530, 1.442695
    %v532 = vpow.pop %v531
    %v533 = vadd.f32 %v532, 1.0
    %v534 = vrcp.pop %v533
    %v535 = vmul.f32 %v533, %v534
    %v536 = vsub.f32 1.0, %v535
    %v537 = vmul.f32 %v534, %v536
    %v538 = vadd.f32 %v534, %v537
    %vm539 = vweird.f32 %v533
    %vm540 = vweird.f32 %v534
    %vm541 = vmor %vm539, %vm540
    %v542 = vsel %vm541, %v534, %v538
    %v543 = vand.u32 2147483647, %v533
    %vm544 = vcmp.eq.f32.partialorder %v543, 8.507059e+37
    %v545 = vand.u32 %v533, 2147483648
    %v546 = vor.u32 1.1754944e-38, %v545
    %v547 = vsel %vm544, %v546, %v542
    %v548 = vmul.f32 1.0, %v547
    %v549 = vadd.f32 %v467, %v507
    %v550 = vxor.u32 %v549, 2147483648
    %v551 = vmul.f32 %v550, 1.442695
    %v552 = vpow.pop %v551
    %v553 = vadd.f32 %v552, 1.0
    %v554 = vrcp.pop %v553
    %v555 = vmul.f32 %v553, %v554
    %v556 = vsub.f32 1.0, %v555
    %v557 = vmul.f32 %v554, %v556
    %v558 = vadd.f32 %v554, %v557
    %vm559 = vweird.f32 %v553
    %vm560 = vweird.f32 %v554
    %vm561 = vmor %vm559, %vm560
    %v562 = vsel %vm561, %v554, %v558
    %v563 = vand.u32 2147483647, %v553
    %vm564 = vcmp.eq.f32.partialorder %v563, 8.507059e+37
    %v565 = vand.u32 %v553, 2147483648
    %v566 = vor.u32 1.1754944e-38, %v565
    %v567 = vsel %vm564, %v566, %v562
    %v568 = vmul.f32 1.0, %v567
    %v569 = vadd.f32 %v527, %v207
    %v570 = vmul.f32 %v548, %v569
    %v571 = vadd.f32 %v468, %v570
    %v572 = vtanh.pop %v571
    %v573 = vsub.f32 %v464, %v572
    %v574 = vmul.f32 %v568, %v573
    %v575 = vadd.f32 %v572, %v574
    %576 = vst [vmem:[#allocation3 + $0x8] sm:$0xff] %v575
    %v577 = vld [vmem:[#allocation4 + $0x30] sm:$0xff]
    %v578 = vld [vmem:[#allocation4 + $0x38] sm:$0xff]
    %v579 = vld [vmem:[#allocation4 + $0x40] sm:$0xff]
    %580 = vmatpush.msra.mxu0 %v201
    %581 = vmatpush.msra.mxu0 %v198
    %582 = vmatpush.msra.mxu0 %v195
    %583 = vmatpush.msra.mxu0 %v192
    %584 = vmatpush.msra.mxu0 %v189
    %585 = vmatpush.msra.mxu0 %v186
    %586 = vmatpush.msra.mxu0 %v183
    %587 = vmatpush.msra.mxu0 %v180
    %588 = vmatpush.msra.mxu0 %v177
    %589 = vmatpush.msra.mxu0 %v174
    %590 = vmatpush.msra.mxu0 %v171
    %591 = vmatpush.msra.mxu0 %v168
    %592 = vmatpush.msra.mxu0 %v165
    %593 = vmatpush.msra.mxu0 %v162
    %594 = vmatpush.msra.mxu0 %v159
    %595 = vmatpush.msra.mxu0 %v156
    %596 = vmatmul.f32.gmra.mxu0 %v575
    %v597 = vpop.f32.mrf.mxu0
    %v598 = vadd.f32 0.0, %v597
    %599 = vdwg.mxu0
    %600 = vmatpush.msra.mxu0 %v202
    %601 = vmatpush.msra.mxu0 %v199
    %602 = vmatpush.msra.mxu0 %v196
    %603 = vmatpush.msra.mxu0 %v193
    %604 = vmatpush.msra.mxu0 %v190
    %605 = vmatpush.msra.mxu0 %v187
    %606 = vmatpush.msra.mxu0 %v184
    %607 = vmatpush.msra.mxu0 %v181
    %608 = vmatpush.msra.mxu0 %v178
    %609 = vmatpush.msra.mxu0 %v175
    %610 = vmatpush.msra.mxu0 %v172
    %611 = vmatpush.msra.mxu0 %v169
    %612 = vmatpush.msra.mxu0 %v166
    %613 = vmatpush.msra.mxu0 %v163
    %614 = vmatpush.msra.mxu0 %v160
    %615 = vmatpush.msra.mxu0 %v157
    %616 = vmatmul.f32.gmra.mxu0 %v575
    %v617 = vpop.f32.mrf.mxu0
    %v618 = vadd.f32 0.0, %v617
    %619 = vdwg.mxu0
    %620 = vmatpush.msra.mxu0 %v203
    %621 = vmatpush.msra.mxu0 %v200
    %622 = vmatpush.msra.mxu0 %v197
    %623 = vmatpush.msra.mxu0 %v194
    %624 = vmatpush.msra.mxu0 %v191
    %625 = vmatpush.msra.mxu0 %v188
    %626 = vmatpush.msra.mxu0 %v185
    %627 = vmatpush.msra.mxu0 %v182
    %628 = vmatpush.msra.mxu0 %v179
    %629 = vmatpush.msra.mxu0 %v176
    %630 = vmatpush.msra.mxu0 %v173
    %631 = vmatpush.msra.mxu0 %v170
    %632 = vmatpush.msra.mxu0 %v167
    %633 = vmatpush.msra.mxu0 %v164
    %634 = vmatpush.msra.mxu0 %v161
    %635 = vmatpush.msra.mxu0 %v158
    %636 = vmatmul.f32.gmra.mxu0 %v575
    %v637 = vpop.f32.mrf.mxu0
    %v638 = vadd.f32 0.0, %v637
    %639 = vdwg.mxu0
    %v640 = vadd.f32 %v577, %v598
    %v641 = vxor.u32 %v640, 2147483648
    %v642 = vmul.f32 %v641, 1.442695
    %v643 = vpow.pop %v642
    %v644 = vadd.f32 %v643, 1.0
    %v645 = vrcp.pop %v644
    %v646 = vmul.f32 %v644, %v645
    %v647 = vsub.f32 1.0, %v646
    %v648 = vmul.f32 %v645, %v647
    %v649 = vadd.f32 %v645, %v648
    %vm650 = vweird.f32 %v644
    %vm651 = vweird.f32 %v645
    %vm652 = vmor %vm650, %vm651
    %v653 = vsel %vm652, %v645, %v649
    %v654 = vand.u32 2147483647, %v644
    %vm655 = vcmp.eq.f32.partialorder %v654, 8.507059e+37
    %v656 = vand.u32 %v644, 2147483648
    %v657 = vor.u32 1.1754944e-38, %v656
    %v658 = vsel %vm655, %v657, %v653
    %v659 = vmul.f32 1.0, %v658
    %v660 = vadd.f32 %v578, %v618
    %v661 = vxor.u32 %v660, 2147483648
    %v662 = vmul.f32 %v661, 1.442695
    %v663 = vpow.pop %v662
    %v664 = vadd.f32 %v663, 1.0
    %v665 = vrcp.pop %v664
    %v666 = vmul.f32 %v664, %v665
    %v667 = vsub.f32 1.0, %v666
    %v668 = vmul.f32 %v665, %v667
    %v669 = vadd.f32 %v665, %v668
    %vm670 = vweird.f32 %v664
    %vm671 = vweird.f32 %v665
    %vm672 = vmor %vm670, %vm671
    %v673 = vsel %vm672, %v665, %v669
    %v674 = vand.u32 2147483647, %v664
    %vm675 = vcmp.eq.f32.partialorder %v674, 8.507059e+37
    %v676 = vand.u32 %v664, 2147483648
    %v677 = vor.u32 1.1754944e-38, %v676
    %v678 = vsel %vm675, %v677, %v673
    %v679 = vmul.f32 1.0, %v678
    %v680 = vadd.f32 %v638, %v207
    %v681 = vmul.f32 %v659, %v680
    %v682 = vadd.f32 %v579, %v681
    %v683 = vtanh.pop %v682
    %v684 = vsub.f32 %v575, %v683
    %v685 = vmul.f32 %v679, %v684
    %v686 = vadd.f32 %v683, %v685
    %687 = vst [vmem:[#allocation3 + $0x10] sm:$0xff] %v686
    %v688 = vld [vmem:[#allocation4 + $0x48] sm:$0xff]
    %v689 = vld [vmem:[#allocation4 + $0x50] sm:$0xff]
    %v690 = vld [vmem:[#allocation4 + $0x58] sm:$0xff]
    %691 = vmatpush.msra.mxu0 %v201
    %692 = vmatpush.msra.mxu0 %v198
    %693 = vmatpush.msra.mxu0 %v195
    %694 = vmatpush.msra.mxu0 %v192
    %695 = vmatpush.msra.mxu0 %v189
    %696 = vmatpush.msra.mxu0 %v186
    %697 = vmatpush.msra.mxu0 %v183
    %698 = vmatpush.msra.mxu0 %v180
    %699 = vmatpush.msra.mxu0 %v177
    %700 = vmatpush.msra.mxu0 %v174
    %701 = vmatpush.msra.mxu0 %v171
    %702 = vmatpush.msra.mxu0 %v168
    %703 = vmatpush.msra.mxu0 %v165
    %704 = vmatpush.msra.mxu0 %v162
    %705 = vmatpush.msra.mxu0 %v159
    %706 = vmatpush.msra.mxu0 %v156
    %707 = vmatmul.f32.gmra.mxu0 %v686
    %v708 = vpop.f32.mrf.mxu0
    %v709 = vadd.f32 0.0, %v708
    %710 = vdwg.mxu0
    %711 = vmatpush.msra.mxu0 %v202
    %712 = vmatpush.msra.mxu0 %v199
    %713 = vmatpush.msra.mxu0 %v196
    %714 = vmatpush.msra.mxu0 %v193
    %715 = vmatpush.msra.mxu0 %v190
    %716 = vmatpush.msra.mxu0 %v187
    %717 = vmatpush.msra.mxu0 %v184
    %718 = vmatpush.msra.mxu0 %v181
    %719 = vmatpush.msra.mxu0 %v178
    %720 = vmatpush.msra.mxu0 %v175
    %721 = vmatpush.msra.mxu0 %v172
    %722 = vmatpush.msra.mxu0 %v169
    %723 = vmatpush.msra.mxu0 %v166
    %724 = vmatpush.msra.mxu0 %v163
    %725 = vmatpush.msra.mxu0 %v160
    %726 = vmatpush.msra.mxu0 %v157
    %727 = vmatmul.f32.gmra.mxu0 %v686
    %v728 = vpop.f32.mrf.mxu0
    %v729 = vadd.f32 0.0, %v728
    %730 = vdwg.mxu0
    %731 = vmatpush.msra.mxu0 %v203
    %732 = vmatpush.msra.mxu0 %v200
    %733 = vmatpush.msra.mxu0 %v197
    %734 = vmatpush.msra.mxu0 %v194
    %735 = vmatpush.msra.mxu0 %v191
    %736 = vmatpush.msra.mxu0 %v188
    %737 = vmatpush.msra.mxu0 %v185
    %738 = vmatpush.msra.mxu0 %v182
    %739 = vmatpush.msra.mxu0 %v179
    %740 = vmatpush.msra.mxu0 %v176
    %741 = vmatpush.msra.mxu0 %v173
    %742 = vmatpush.msra.mxu0 %v170
    %743 = vmatpush.msra.mxu0 %v167
    %744 = vmatpush.msra.mxu0 %v164
    %745 = vmatpush.msra.mxu0 %v161
    %746 = vmatpush.msra.mxu0 %v158
    %747 = vmatmul.f32.gmra.mxu0 %v686
    %v748 = vpop.f32.mrf.mxu0
    %v749 = vadd.f32 0.0, %v748
    %750 = vdwg.mxu0
    %v751 = vadd.f32 %v688, %v709
    %v752 = vxor.u32 %v751, 2147483648
    %v753 = vmul.f32 %v752, 1.442695
    %v754 = vpow.pop %v753
    %v755 = vadd.f32 %v754, 1.0
    %v756 = vrcp.pop %v755
    %v757 = vmul.f32 %v755, %v756
    %v758 = vsub.f32 1.0, %v757
    %v759 = vmul.f32 %v756, %v758
    %v760 = vadd.f32 %v756, %v759
    %vm761 = vweird.f32 %v755
    %vm762 = vweird.f32 %v756
    %vm763 = vmor %vm761, %vm762
    %v764 = vsel %vm763, %v756, %v760
    %v765 = vand.u32 2147483647, %v755
    %vm766 = vcmp.eq.f32.partialorder %v765, 8.507059e+37
    %v767 = vand.u32 %v755, 2147483648
    %v768 = vor.u32 1.1754944e-38, %v767
    %v769 = vsel %vm766, %v768, %v764
    %v770 = vmul.f32 1.0, %v769
    %v771 = vadd.f32 %v689, %v729
    %v772 = vxor.u32 %v771, 2147483648
    %v773 = vmul.f32 %v772, 1.442695
    %v774 = vpow.pop %v773
    %v775 = vadd.f32 %v774, 1.0
    %v776 = vrcp.pop %v775
    %v777 = vmul.f32 %v775, %v776
    %v778 = vsub.f32 1.0, %v777
    %v779 = vmul.f32 %v776, %v778
    %v780 = vadd.f32 %v776, %v779
    %vm781 = vweird.f32 %v775
    %vm782 = vweird.f32 %v776
    %vm783 = vmor %vm781, %vm782
    %v784 = vsel %vm783, %v776, %v780
    %v785 = vand.u32 2147483647, %v775
    %vm786 = vcmp.eq.f32.partialorder %v785, 8.507059e+37
    %v787 = vand.u32 %v775, 2147483648
    %v788 = vor.u32 1.1754944e-38, %v787
    %v789 = vsel %vm786, %v788, %v784
    %v790 = vmul.f32 1.0, %v789
    %v791 = vadd.f32 %v749, %v207
    %v792 = vmul.f32 %v770, %v791
    %v793 = vadd.f32 %v690, %v792
    %v794 = vtanh.pop %v793
    %v795 = vsub.f32 %v686, %v794
    %v796 = vmul.f32 %v790, %v795
    %v797 = vadd.f32 %v794, %v796
    %798 = vst [vmem:[#allocation3 + $0x18] sm:$0xff] %v797
    %v799 = vld [vmem:[#allocation4 + $0x60] sm:$0xff]
    %v800 = vld [vmem:[#allocation4 + $0x68] sm:$0xff]
    %v801 = vld [vmem:[#allocation4 + $0x70] sm:$0xff]
    %802 = vmatpush.msra.mxu0 %v201
    %803 = vmatpush.msra.mxu0 %v198
    %804 = vmatpush.msra.mxu0 %v195
    %805 = vmatpush.msra.mxu0 %v192
    %806 = vmatpush.msra.mxu0 %v189
    %807 = vmatpush.msra.mxu0 %v186
    %808 = vmatpush.msra.mxu0 %v183
    %809 = vmatpush.msra.mxu0 %v180
    %810 = vmatpush.msra.mxu0 %v177
    %811 = vmatpush.msra.mxu0 %v174
    %812 = vmatpush.msra.mxu0 %v171
    %813 = vmatpush.msra.mxu0 %v168
    %814 = vmatpush.msra.mxu0 %v165
    %815 = vmatpush.msra.mxu0 %v162
    %816 = vmatpush.msra.mxu0 %v159
    %817 = vmatpush.msra.mxu0 %v156
    %818 = vmatmul.f32.gmra.mxu0 %v797
    %v819 = vpop.f32.mrf.mxu0
    %v820 = vadd.f32 0.0, %v819
    %821 = vdwg.mxu0
    %822 = vmatpush.msra.mxu0 %v202
    %823 = vmatpush.msra.mxu0 %v199
    %824 = vmatpush.msra.mxu0 %v196
    %825 = vmatpush.msra.mxu0 %v193
    %826 = vmatpush.msra.mxu0 %v190
    %827 = vmatpush.msra.mxu0 %v187
    %828 = vmatpush.msra.mxu0 %v184
    %829 = vmatpush.msra.mxu0 %v181
    %830 = vmatpush.msra.mxu0 %v178
    %831 = vmatpush.msra.mxu0 %v175
    %832 = vmatpush.msra.mxu0 %v172
    %833 = vmatpush.msra.mxu0 %v169
    %834 = vmatpush.msra.mxu0 %v166
    %835 = vmatpush.msra.mxu0 %v163
    %836 = vmatpush.msra.mxu0 %v160
    %837 = vmatpush.msra.mxu0 %v157
    %838 = vmatmul.f32.gmra.mxu0 %v797
    %v839 = vpop.f32.mrf.mxu0
    %v840 = vadd.f32 0.0, %v839
    %841 = vdwg.mxu0
    %842 = vmatpush.msra.mxu0 %v203
    %843 = vmatpush.msra.mxu0 %v200
    %844 = vmatpush.msra.mxu0 %v197
    %845 = vmatpush.msra.mxu0 %v194
    %846 = vmatpush.msra.mxu0 %v191
    %847 = vmatpush.msra.mxu0 %v188
    %848 = vmatpush.msra.mxu0 %v185
    %849 = vmatpush.msra.mxu0 %v182
    %850 = vmatpush.msra.mxu0 %v179
    %851 = vmatpush.msra.mxu0 %v176
    %852 = vmatpush.msra.mxu0 %v173
    %853 = vmatpush.msra.mxu0 %v170
    %854 = vmatpush.msra.mxu0 %v167
    %855 = vmatpush.msra.mxu0 %v164
    %856 = vmatpush.msra.mxu0 %v161
    %857 = vmatpush.msra.mxu0 %v158
    %858 = vmatmul.f32.gmra.mxu0 %v797
    %v859 = vpop.f32.mrf.mxu0
    %v860 = vadd.f32 0.0, %v859
    %861 = vdwg.mxu0
    %v862 = vadd.f32 %v799, %v820
    %v863 = vxor.u32 %v862, 2147483648
    %v864 = vmul.f32 %v863, 1.442695
    %v865 = vpow.pop %v864
    %v866 = vadd.f32 %v865, 1.0
    %v867 = vrcp.pop %v866
    %v868 = vmul.f32 %v866, %v867
    %v869 = vsub.f32 1.0, %v868
    %v870 = vmul.f32 %v867, %v869
    %v871 = vadd.f32 %v867, %v870
    %vm872 = vweird.f32 %v866
    %vm873 = vweird.f32 %v867
    %vm874 = vmor %vm872, %vm873
    %v875 = vsel %vm874, %v867, %v871
    %v876 = vand.u32 2147483647, %v866
    %vm877 = vcmp.eq.f32.partialorder %v876, 8.507059e+37
    %v878 = vand.u32 %v866, 2147483648
    %v879 = vor.u32 1.1754944e-38, %v878
    %v880 = vsel %vm877, %v879, %v875
    %v881 = vmul.f32 1.0, %v880
    %v882 = vadd.f32 %v800, %v840
    %v883 = vxor.u32 %v882, 2147483648
    %v884 = vmul.f32 %v883, 1.442695
    %v885 = vpow.pop %v884
    %v886 = vadd.f32 %v885, 1.0
    %v887 = vrcp.pop %v886
    %v888 = vmul.f32 %v886, %v887
    %v889 = vsub.f32 1.0, %v888
    %v890 = vmul.f32 %v887, %v889
    %v891 = vadd.f32 %v887, %v890
    %vm892 = vweird.f32 %v886
    %vm893 = vweird.f32 %v887
    %vm894 = vmor %vm892, %vm893
    %v895 = vsel %vm894, %v887, %v891
    %v896 = vand.u32 2147483647, %v886
    %vm897 = vcmp.eq.f32.partialorder %v896, 8.507059e+37
    %v898 = vand.u32 %v886, 2147483648
    %v899 = vor.u32 1.1754944e-38, %v898
    %v900 = vsel %vm897, %v899, %v895
    %v901 = vmul.f32 1.0, %v900
    %v902 = vadd.f32 %v860, %v207
    %v903 = vmul.f32 %v881, %v902
    %v904 = vadd.f32 %v801, %v903
    %v905 = vtanh.pop %v904
    %v906 = vsub.f32 %v797, %v905
    %v907 = vmul.f32 %v901, %v906
    %v908 = vadd.f32 %v905, %v907
    %909 = vst [vmem:[#allocation3 + $0x20] sm:$0xff] %v908
    %v910 = vld [vmem:[#allocation4 + $0x78] sm:$0xff]
    %v911 = vld [vmem:[#allocation4 + $0x80] sm:$0xff]
    %v912 = vld [vmem:[#allocation4 + $0x88] sm:$0xff]
    %913 = vmatpush.msra.mxu0 %v201
    %914 = vmatpush.msra.mxu0 %v198
    %915 = vmatpush.msra.mxu0 %v195
    %916 = vmatpush.msra.mxu0 %v192
    %917 = vmatpush.msra.mxu0 %v189
    %918 = vmatpush.msra.mxu0 %v186
    %919 = vmatpush.msra.mxu0 %v183
    %920 = vmatpush.msra.mxu0 %v180
    %921 = vmatpush.msra.mxu0 %v177
    %922 = vmatpush.msra.mxu0 %v174
    %923 = vmatpush.msra.mxu0 %v171
    %924 = vmatpush.msra.mxu0 %v168
    %925 = vmatpush.msra.mxu0 %v165
    %926 = vmatpush.msra.mxu0 %v162
    %927 = vmatpush.msra.mxu0 %v159
    %928 = vmatpush.msra.mxu0 %v156
    %929 = vmatmul.f32.gmra.mxu0 %v908
    %v930 = vpop.f32.mrf.mxu0
    %v931 = vadd.f32 0.0, %v930
    %932 = vdwg.mxu0
    %933 = vmatpush.msra.mxu0 %v202
    %934 = vmatpush.msra.mxu0 %v199
    %935 = vmatpush.msra.mxu0 %v196
    %936 = vmatpush.msra.mxu0 %v193
    %937 = vmatpush.msra.mxu0 %v190
    %938 = vmatpush.msra.mxu0 %v187
    %939 = vmatpush.msra.mxu0 %v184
    %940 = vmatpush.msra.mxu0 %v181
    %941 = vmatpush.msra.mxu0 %v178
    %942 = vmatpush.msra.mxu0 %v175
    %943 = vmatpush.msra.mxu0 %v172
    %944 = vmatpush.msra.mxu0 %v169
    %945 = vmatpush.msra.mxu0 %v166
    %946 = vmatpush.msra.mxu0 %v163
    %947 = vmatpush.msra.mxu0 %v160
    %948 = vmatpush.msra.mxu0 %v157
    %949 = vmatmul.f32.gmra.mxu0 %v908
    %v950 = vpop.f32.mrf.mxu0
    %v951 = vadd.f32 0.0, %v950
    %952 = vdwg.mxu0
    %953 = vmatpush.msra.mxu0 %v203
    %954 = vmatpush.msra.mxu0 %v200
    %955 = vmatpush.msra.mxu0 %v197
    %956 = vmatpush.msra.mxu0 %v194
    %957 = vmatpush.msra.mxu0 %v191
    %958 = vmatpush.msra.mxu0 %v188
    %959 = vmatpush.msra.mxu0 %v185
    %960 = vmatpush.msra.mxu0 %v182
    %961 = vmatpush.msra.mxu0 %v179
    %962 = vmatpush.msra.mxu0 %v176
    %963 = vmatpush.msra.mxu0 %v173
    %964 = vmatpush.msra.mxu0 %v170
    %965 = vmatpush.msra.mxu0 %v167
    %966 = vmatpush.msra.mxu0 %v164
    %967 = vmatpush.msra.mxu0 %v161
    %968 = vmatpush.msra.mxu0 %v158
    %969 = vmatmul.f32.gmra.mxu0 %v908
    %v970 = vpop.f32.mrf.mxu0
    %v971 = vadd.f32 0.0, %v970
    %972 = vdwg.mxu0
    %v973 = vadd.f32 %v910, %v931
    %v974 = vxor.u32 %v973, 2147483648
    %v975 = vmul.f32 %v974, 1.442695
    %v976 = vpow.pop %v975
    %v977 = vadd.f32 %v976, 1.0
    %v978 = vrcp.pop %v977
    %v979 = vmul.f32 %v977, %v978
    %v980 = vsub.f32 1.0, %v979
    %v981 = vmul.f32 %v978, %v980
    %v982 = vadd.f32 %v978, %v981
    %vm983 = vweird.f32 %v977
    %vm984 = vweird.f32 %v978
    %vm985 = vmor %vm983, %vm984
    %v986 = vsel %vm985, %v978, %v982
    %v987 = vand.u32 2147483647, %v977
    %vm988 = vcmp.eq.f32.partialorder %v987, 8.507059e+37
    %v989 = vand.u32 %v977, 2147483648
    %v990 = vor.u32 1.1754944e-38, %v989
    %v991 = vsel %vm988, %v990, %v986
    %v992 = vmul.f32 1.0, %v991
    %v993 = vadd.f32 %v911, %v951
    %v994 = vxor.u32 %v993, 2147483648
    %v995 = vmul.f32 %v994, 1.442695
    %v996 = vpow.pop %v995
    %v997 = vadd.f32 %v996, 1.0
    %v998 = vrcp.pop %v997
    %v999 = vmul.f32 %v997, %v998
    %v1000 = vsub.f32 1.0, %v999
    %v1001 = vmul.f32 %v998, %v1000
    %v1002 = vadd.f32 %v998, %v1001
    %vm1003 = vweird.f32 %v997
    %vm1004 = vweird.f32 %v998
    %vm1005 = vmor %vm1003, %vm1004
    %v1006 = vsel %vm1005, %v998, %v1002
    %v1007 = vand.u32 2147483647, %v997
    %vm1008 = vcmp.eq.f32.partialorder %v1007, 8.507059e+37
    %v1009 = vand.u32 %v997, 2147483648
    %v1010 = vor.u32 1.1754944e-38, %v1009
    %v1011 = vsel %vm1008, %v1010, %v1006
    %v1012 = vmul.f32 1.0, %v1011
    %v1013 = vadd.f32 %v971, %v207
    %v1014 = vmul.f32 %v992, %v1013
    %v1015 = vadd.f32 %v912, %v1014
    %v1016 = vtanh.pop %v1015
    %v1017 = vsub.f32 %v908, %v1016
    %v1018 = vmul.f32 %v1012, %v1017
    %v1019 = vadd.f32 %v1016, %v1018
    %1020 = vst [vmem:[#allocation3 + $0x28] sm:$0xff] %v1019
    %v1021 = vld [vmem:[#allocation4 + $0x90] sm:$0xff]
    %v1022 = vld [vmem:[#allocation4 + $0x98] sm:$0xff]
    %v1023 = vld [vmem:[#allocation4 + $0xa0] sm:$0xff]
    %1024 = vmatpush.msra.mxu0 %v201
    %1025 = vmatpush.msra.mxu0 %v198
    %1026 = vmatpush.msra.mxu0 %v195
    %1027 = vmatpush.msra.mxu0 %v192
    %1028 = vmatpush.msra.mxu0 %v189
    %1029 = vmatpush.msra.mxu0 %v186
    %1030 = vmatpush.msra.mxu0 %v183
    %1031 = vmatpush.msra.mxu0 %v180
    %1032 = vmatpush.msra.mxu0 %v177
    %1033 = vmatpush.msra.mxu0 %v174
    %1034 = vmatpush.msra.mxu0 %v171
    %1035 = vmatpush.msra.mxu0 %v168
    %1036 = vmatpush.msra.mxu0 %v165
    %1037 = vmatpush.msra.mxu0 %v162
    %1038 = vmatpush.msra.mxu0 %v159
    %1039 = vmatpush.msra.mxu0 %v156
    %1040 = vmatmul.f32.gmra.mxu0 %v1019
    %v1041 = vpop.f32.mrf.mxu0
    %v1042 = vadd.f32 0.0, %v1041
    %1043 = vdwg.mxu0
    %1044 = vmatpush.msra.mxu0 %v202
    %1045 = vmatpush.msra.mxu0 %v199
    %1046 = vmatpush.msra.mxu0 %v196
    %1047 = vmatpush.msra.mxu0 %v193
    %1048 = vmatpush.msra.mxu0 %v190
    %1049 = vmatpush.msra.mxu0 %v187
    %1050 = vmatpush.msra.mxu0 %v184
    %1051 = vmatpush.msra.mxu0 %v181
    %1052 = vmatpush.msra.mxu0 %v178
    %1053 = vmatpush.msra.mxu0 %v175
    %1054 = vmatpush.msra.mxu0 %v172
    %1055 = vmatpush.msra.mxu0 %v169
    %1056 = vmatpush.msra.mxu0 %v166
    %1057 = vmatpush.msra.mxu0 %v163
    %1058 = vmatpush.msra.mxu0 %v160
    %1059 = vmatpush.msra.mxu0 %v157
    %1060 = vmatmul.f32.gmra.mxu0 %v1019
    %v1061 = vpop.f32.mrf.mxu0
    %v1062 = vadd.f32 0.0, %v1061
    %1063 = vdwg.mxu0
    %1064 = vmatpush.msra.mxu0 %v203
    %1065 = vmatpush.msra.mxu0 %v200
    %1066 = vmatpush.msra.mxu0 %v197
    %1067 = vmatpush.msra.mxu0 %v194
    %1068 = vmatpush.msra.mxu0 %v191
    %1069 = vmatpush.msra.mxu0 %v188
    %1070 = vmatpush.msra.mxu0 %v185
    %1071 = vmatpush.msra.mxu0 %v182
    %1072 = vmatpush.msra.mxu0 %v179
    %1073 = vmatpush.msra.mxu0 %v176
    %1074 = vmatpush.msra.mxu0 %v173
    %1075 = vmatpush.msra.mxu0 %v170
    %1076 = vmatpush.msra.mxu0 %v167
    %1077 = vmatpush.msra.mxu0 %v164
    %1078 = vmatpush.msra.mxu0 %v161
    %1079 = vmatpush.msra.mxu0 %v158
    %1080 = vmatmul.f32.gmra.mxu0 %v1019
    %v1081 = vpop.f32.mrf.mxu0
    %v1082 = vadd.f32 0.0, %v1081
    %1083 = vdwg.mxu0
    %v1084 = vadd.f32 %v1021, %v1042
    %v1085 = vxor.u32 %v1084, 2147483648
    %v1086 = vmul.f32 %v1085, 1.442695
    %v1087 = vpow.pop %v1086
    %v1088 = vadd.f32 %v1087, 1.0
    %v1089 = vrcp.pop %v1088
    %v1090 = vmul.f32 %v1088, %v1089
    %v1091 = vsub.f32 1.0, %v1090
    %v1092 = vmul.f32 %v1089, %v1091
    %v1093 = vadd.f32 %v1089, %v1092
    %vm1094 = vweird.f32 %v1088
    %vm1095 = vweird.f32 %v1089
    %vm1096 = vmor %vm1094, %vm1095
    %v1097 = vsel %vm1096, %v1089, %v1093
    %v1098 = vand.u32 2147483647, %v1088
    %vm1099 = vcmp.eq.f32.partialorder %v1098, 8.507059e+37
    %v1100 = vand.u32 %v1088, 2147483648
    %v1101 = vor.u32 1.1754944e-38, %v1100
    %v1102 = vsel %vm1099, %v1101, %v1097
    %v1103 = vmul.f32 1.0, %v1102
    %v1104 = vadd.f32 %v1022, %v1062
    %v1105 = vxor.u32 %v1104, 2147483648
    %v1106 = vmul.f32 %v1105, 1.442695
    %v1107 = vpow.pop %v1106
    %v1108 = vadd.f32 %v1107, 1.0
    %v1109 = vrcp.pop %v1108
    %v1110 = vmul.f32 %v1108, %v1109
    %v1111 = vsub.f32 1.0, %v1110
    %v1112 = vmul.f32 %v1109, %v1111
    %v1113 = vadd.f32 %v1109, %v1112
    %vm1114 = vweird.f32 %v1108
    %vm1115 = vweird.f32 %v1109
    %vm1116 = vmor %vm1114, %vm1115
    %v1117 = vsel %vm1116, %v1109, %v1113
    %v1118 = vand.u32 2147483647, %v1108
    %vm1119 = vcmp.eq.f32.partialorder %v1118, 8.507059e+37
    %v1120 = vand.u32 %v1108, 2147483648
    %v1121 = vor.u32 1.1754944e-38, %v1120
    %v1122 = vsel %vm1119, %v1121, %v1117
    %v1123 = vmul.f32 1.0, %v1122
    %v1124 = vadd.f32 %v1082, %v207
    %v1125 = vmul.f32 %v1103, %v1124
    %v1126 = vadd.f32 %v1023, %v1125
    %v1127 = vtanh.pop %v1126
    %v1128 = vsub.f32 %v1019, %v1127
    %v1129 = vmul.f32 %v1123, %v1128
    %v1130 = vadd.f32 %v1127, %v1129
    %1131 = vst [vmem:[#allocation3 + $0x30] sm:$0xff] %v1130
    %v1132 = vld [vmem:[#allocation4 + $0xa8] sm:$0xff]
    %v1133 = vld [vmem:[#allocation4 + $0xb0] sm:$0xff]
    %v1134 = vld [vmem:[#allocation4 + $0xb8] sm:$0xff]
    %1135 = vmatpush.msra.mxu0 %v201
    %1136 = vmatpush.msra.mxu0 %v198
    %1137 = vmatpush.msra.mxu0 %v195
    %1138 = vmatpush.msra.mxu0 %v192
    %1139 = vmatpush.msra.mxu0 %v189
    %1140 = vmatpush.msra.mxu0 %v186
    %1141 = vmatpush.msra.mxu0 %v183
    %1142 = vmatpush.msra.mxu0 %v180
    %1143 = vmatpush.msra.mxu0 %v177
    %1144 = vmatpush.msra.mxu0 %v174
    %1145 = vmatpush.msra.mxu0 %v171
    %1146 = vmatpush.msra.mxu0 %v168
    %1147 = vmatpush.msra.mxu0 %v165
    %1148 = vmatpush.msra.mxu0 %v162
    %1149 = vmatpush.msra.mxu0 %v159
    %1150 = vmatpush.msra.mxu0 %v156
    %1151 = vmatmul.f32.gmra.mxu0 %v1130
    %v1152 = vpop.f32.mrf.mxu0
    %v1153 = vadd.f32 0.0, %v1152
    %1154 = vdwg.mxu0
    %1155 = vmatpush.msra.mxu0 %v202
    %1156 = vmatpush.msra.mxu0 %v199
    %1157 = vmatpush.msra.mxu0 %v196
    %1158 = vmatpush.msra.mxu0 %v193
    %1159 = vmatpush.msra.mxu0 %v190
    %1160 = vmatpush.msra.mxu0 %v187
    %1161 = vmatpush.msra.mxu0 %v184
    %1162 = vmatpush.msra.mxu0 %v181
    %1163 = vmatpush.msra.mxu0 %v178
    %1164 = vmatpush.msra.mxu0 %v175
    %1165 = vmatpush.msra.mxu0 %v172
    %1166 = vmatpush.msra.mxu0 %v169
    %1167 = vmatpush.msra.mxu0 %v166
    %1168 = vmatpush.msra.mxu0 %v163
    %1169 = vmatpush.msra.mxu0 %v160
    %1170 = vmatpush.msra.mxu0 %v157
    %1171 = vmatmul.f32.gmra.mxu0 %v1130
    %v1172 = vpop.f32.mrf.mxu0
    %v1173 = vadd.f32 0.0, %v1172
    %1174 = vdwg.mxu0
    %1175 = vmatpush.msra.mxu0 %v203
    %1176 = vmatpush.msra.mxu0 %v200
    %1177 = vmatpush.msra.mxu0 %v197
    %1178 = vmatpush.msra.mxu0 %v194
    %1179 = vmatpush.msra.mxu0 %v191
    %1180 = vmatpush.msra.mxu0 %v188
    %1181 = vmatpush.msra.mxu0 %v185
    %1182 = vmatpush.msra.mxu0 %v182
    %1183 = vmatpush.msra.mxu0 %v179
    %1184 = vmatpush.msra.mxu0 %v176
    %1185 = vmatpush.msra.mxu0 %v173
    %1186 = vmatpush.msra.mxu0 %v170
    %1187 = vmatpush.msra.mxu0 %v167
    %1188 = vmatpush.msra.mxu0 %v164
    %1189 = vmatpush.msra.mxu0 %v161
    %1190 = vmatpush.msra.mxu0 %v158
    %1191 = vmatmul.f32.gmra.mxu0 %v1130
    %v1192 = vpop.f32.mrf.mxu0
    %v1193 = vadd.f32 0.0, %v1192
    %1194 = vdwg.mxu0
    %v1195 = vadd.f32 %v1132, %v1153
    %v1196 = vxor.u32 %v1195, 2147483648
    %v1197 = vmul.f32 %v1196, 1.442695
    %v1198 = vpow.pop %v1197
    %v1199 = vadd.f32 %v1198, 1.0
    %v1200 = vrcp.pop %v1199
    %v1201 = vmul.f32 %v1199, %v1200
    %v1202 = vsub.f32 1.0, %v1201
    %v1203 = vmul.f32 %v1200, %v1202
    %v1204 = vadd.f32 %v1200, %v1203
    %vm1205 = vweird.f32 %v1199
    %vm1206 = vweird.f32 %v1200
    %vm1207 = vmor %vm1205, %vm1206
    %v1208 = vsel %vm1207, %v1200, %v1204
    %v1209 = vand.u32 2147483647, %v1199
    %vm1210 = vcmp.eq.f32.partialorder %v1209, 8.507059e+37
    %v1211 = vand.u32 %v1199, 2147483648
    %v1212 = vor.u32 1.1754944e-38, %v1211
    %v1213 = vsel %vm1210, %v1212, %v1208
    %v1214 = vmul.f32 1.0, %v1213
    %v1215 = vadd.f32 %v1133, %v1173
    %v1216 = vxor.u32 %v1215, 2147483648
    %v1217 = vmul.f32 %v1216, 1.442695
    %v1218 = vpow.pop %v1217
    %v1219 = vadd.f32 %v1218, 1.0
    %v1220 = vrcp.pop %v1219
    %v1221 = vmul.f32 %v1219, %v1220
    %v1222 = vsub.f32 1.0, %v1221
    %v1223 = vmul.f32 %v1220, %v1222
    %v1224 = vadd.f32 %v1220, %v1223
    %vm1225 = vweird.f32 %v1219
    %vm1226 = vweird.f32 %v1220
    %vm1227 = vmor %vm1225, %vm1226
    %v1228 = vsel %vm1227, %v1220, %v1224
    %v1229 = vand.u32 2147483647, %v1219
    %vm1230 = vcmp.eq.f32.partialorder %v1229, 8.507059e+37
    %v1231 = vand.u32 %v1219, 2147483648
    %v1232 = vor.u32 1.1754944e-38, %v1231
    %v1233 = vsel %vm1230, %v1232, %v1228
    %v1234 = vmul.f32 1.0, %v1233
    %v1235 = vadd.f32 %v1193, %v207
    %v1236 = vmul.f32 %v1214, %v1235
    %v1237 = vadd.f32 %v1134, %v1236
    %v1238 = vtanh.pop %v1237
    %v1239 = vsub.f32 %v1130, %v1238
    %v1240 = vmul.f32 %v1234, %v1239
    %v1241 = vadd.f32 %v1238, %v1240
    %1242 = vst [vmem:[#allocation3 + $0x38] sm:$0xff] %v1241
    %1243 = vst [vmem:[#allocation15] sm:$0xff] %v1241
    %s1244 = scalar_lea.vmem [#allocation11], 384
    %v1245 = vld [vmem:[%s1244] sm:$0xff]
    %v1246 = vld [vmem:[%s1244 + $0x8] sm:$0xff]
    %v1247 = vld [vmem:[%s1244 + $0x10] sm:$0xff]
    %v1248 = vld [vmem:[%s1244 + $0x18] sm:$0xff]
    %v1249 = vld [vmem:[%s1244 + $0x20] sm:$0xff]
    %v1250 = vld [vmem:[%s1244 + $0x28] sm:$0xff]
    %v1251 = vld [vmem:[%s1244 + $0x30] sm:$0xff]
    %v1252 = vld [vmem:[%s1244 + $0x38] sm:$0xff]
    %v1253 = vld [vmem:[%s1244 + $0x40] sm:$0xff]
    %v1254 = vld [vmem:[%s1244 + $0x48] sm:$0xff]
    %v1255 = vld [vmem:[%s1244 + $0x50] sm:$0xff]
    %v1256 = vld [vmem:[%s1244 + $0x58] sm:$0xff]
    %v1257 = vld [vmem:[%s1244 + $0x60] sm:$0xff]
    %v1258 = vld [vmem:[%s1244 + $0x68] sm:$0xff]
    %v1259 = vld [vmem:[%s1244 + $0x70] sm:$0xff]
    %v1260 = vld [vmem:[%s1244 + $0x78] sm:$0xff]
    %v1261 = vld [vmem:[%s1244 + $0x80] sm:$0xff]
    %v1262 = vld [vmem:[%s1244 + $0x88] sm:$0xff]
    %v1263 = vld [vmem:[%s1244 + $0x90] sm:$0xff]
    %v1264 = vld [vmem:[%s1244 + $0x98] sm:$0xff]
    %v1265 = vld [vmem:[%s1244 + $0xa0] sm:$0xff]
    %v1266 = vld [vmem:[%s1244 + $0xa8] sm:$0xff]
    %v1267 = vld [vmem:[%s1244 + $0xb0] sm:$0xff]
    %v1268 = vld [vmem:[%s1244 + $0xb8] sm:$0xff]
    %v1269 = vld [vmem:[%s1244 + $0xc0] sm:$0xff]
    %v1270 = vld [vmem:[%s1244 + $0xc8] sm:$0xff]
    %v1271 = vld [vmem:[%s1244 + $0xd0] sm:$0xff]
    %v1272 = vld [vmem:[%s1244 + $0xd8] sm:$0xff]
    %v1273 = vld [vmem:[%s1244 + $0xe0] sm:$0xff]
    %v1274 = vld [vmem:[%s1244 + $0xe8] sm:$0xff]
    %v1275 = vld [vmem:[%s1244 + $0xf0] sm:$0xff]
    %v1276 = vld [vmem:[%s1244 + $0xf8] sm:$0xff]
    %v1277 = vld [vmem:[%s1244 + $0x100] sm:$0xff]
    %v1278 = vld [vmem:[%s1244 + $0x108] sm:$0xff]
    %v1279 = vld [vmem:[%s1244 + $0x110] sm:$0xff]
    %v1280 = vld [vmem:[%s1244 + $0x118] sm:$0xff]
    %v1281 = vld [vmem:[%s1244 + $0x120] sm:$0xff]
    %v1282 = vld [vmem:[%s1244 + $0x128] sm:$0xff]
    %v1283 = vld [vmem:[%s1244 + $0x130] sm:$0xff]
    %v1284 = vld [vmem:[%s1244 + $0x138] sm:$0xff]
    %v1285 = vld [vmem:[%s1244 + $0x140] sm:$0xff]
    %v1286 = vld [vmem:[%s1244 + $0x148] sm:$0xff]
    %v1287 = vld [vmem:[%s1244 + $0x150] sm:$0xff]
    %v1288 = vld [vmem:[%s1244 + $0x158] sm:$0xff]
    %v1289 = vld [vmem:[%s1244 + $0x160] sm:$0xff]
    %v1290 = vld [vmem:[%s1244 + $0x168] sm:$0xff]
    %v1291 = vld [vmem:[%s1244 + $0x170] sm:$0xff]
    %v1292 = vld [vmem:[%s1244 + $0x178] sm:$0xff]
    %s1293 = scalar_lea.vmem [#allocation13], 3
    %v1294 = vld [vmem:[%s1293] sm:$0x7]
    %s1295 = scalar_lea.vmem %s5, 1
    %v1296 = vld [vmem:[%s1295] sm:$0x1]
    %v1298 = vperm.slane %v1296, 0
    %v1300 = vld [vmem:[#allocation3] sm:$0xff]
    %v1301 = vld [vmem:[#allocation3 + $0x8] sm:$0xff]
    %v1302 = vld [vmem:[#allocation3 + $0x10] sm:$0xff]
    %v1303 = vld [vmem:[#allocation3 + $0x18] sm:$0xff]
    %v1304 = vld [vmem:[#allocation3 + $0x20] sm:$0xff]
    %v1305 = vld [vmem:[#allocation3 + $0x28] sm:$0xff]
    %v1306 = vld [vmem:[#allocation3 + $0x30] sm:$0xff]
    %v1307 = vld [vmem:[#allocation3 + $0x38] sm:$0xff]
    %v1308 = vld [vmem:[#allocation10] sm:$0xff]
    %v1309 = vld [vmem:[#allocation10 + $0x8] sm:$0xff]
    %v1310 = vld [vmem:[#allocation10 + $0x10] sm:$0xff]
    %v1311 = vld [vmem:[#allocation10 + $0x18] sm:$0xff]
    %v1312 = vld [vmem:[#allocation10 + $0x20] sm:$0xff]
    %v1313 = vld [vmem:[#allocation10 + $0x28] sm:$0xff]
    %v1314 = vld [vmem:[#allocation10 + $0x30] sm:$0xff]
    %v1315 = vld [vmem:[#allocation10 + $0x38] sm:$0xff]
    %v1316 = vld [vmem:[#allocation10 + $0x40] sm:$0xff]
    %v1317 = vld [vmem:[#allocation10 + $0x48] sm:$0xff]
    %v1318 = vld [vmem:[#allocation10 + $0x50] sm:$0xff]
    %v1319 = vld [vmem:[#allocation10 + $0x58] sm:$0xff]
    %v1320 = vld [vmem:[#allocation10 + $0x60] sm:$0xff]
    %v1321 = vld [vmem:[#allocation10 + $0x68] sm:$0xff]
    %v1322 = vld [vmem:[#allocation10 + $0x70] sm:$0xff]
    %v1323 = vld [vmem:[#allocation10 + $0x78] sm:$0xff]
    %v1324 = vld [vmem:[#allocation10 + $0x80] sm:$0xff]
    %v1325 = vld [vmem:[#allocation10 + $0x88] sm:$0xff]
    %v1326 = vld [vmem:[#allocation10 + $0x90] sm:$0xff]
    %v1327 = vld [vmem:[#allocation10 + $0x98] sm:$0xff]
    %v1328 = vld [vmem:[#allocation10 + $0xa0] sm:$0xff]
    %v1329 = vld [vmem:[#allocation10 + $0xa8] sm:$0xff]
    %v1330 = vld [vmem:[#allocation10 + $0xb0] sm:$0xff]
    %v1331 = vld [vmem:[#allocation10 + $0xb8] sm:$0xff]
    %v1332 = vld [vmem:[#allocation10 + $0xc0] sm:$0xff]
    %v1333 = vld [vmem:[#allocation10 + $0xc8] sm:$0xff]
    %v1334 = vld [vmem:[#allocation10 + $0xd0] sm:$0xff]
    %v1335 = vld [vmem:[#allocation10 + $0xd8] sm:$0xff]
    %v1336 = vld [vmem:[#allocation10 + $0xe0] sm:$0xff]
    %v1337 = vld [vmem:[#allocation10 + $0xe8] sm:$0xff]
    %v1338 = vld [vmem:[#allocation10 + $0xf0] sm:$0xff]
    %v1339 = vld [vmem:[#allocation10 + $0xf8] sm:$0xff]
    %v1340 = vld [vmem:[#allocation10 + $0x100] sm:$0xff]
    %v1341 = vld [vmem:[#allocation10 + $0x108] sm:$0xff]
    %v1342 = vld [vmem:[#allocation10 + $0x110] sm:$0xff]
    %v1343 = vld [vmem:[#allocation10 + $0x118] sm:$0xff]
    %v1344 = vld [vmem:[#allocation10 + $0x120] sm:$0xff]
    %v1345 = vld [vmem:[#allocation10 + $0x128] sm:$0xff]
    %v1346 = vld [vmem:[#allocation10 + $0x130] sm:$0xff]
    %v1347 = vld [vmem:[#allocation10 + $0x138] sm:$0xff]
    %v1348 = vld [vmem:[#allocation10 + $0x140] sm:$0xff]
    %v1349 = vld [vmem:[#allocation10 + $0x148] sm:$0xff]
    %v1350 = vld [vmem:[#allocation10 + $0x150] sm:$0xff]
    %v1351 = vld [vmem:[#allocation10 + $0x158] sm:$0xff]
    %v1352 = vld [vmem:[#allocation10 + $0x160] sm:$0xff]
    %v1353 = vld [vmem:[#allocation10 + $0x168] sm:$0xff]
    %v1354 = vld [vmem:[#allocation10 + $0x170] sm:$0xff]
    %v1355 = vld [vmem:[#allocation10 + $0x178] sm:$0xff]
    %v1357 = vperm.slane %v1294, 0
    %v1358 = vperm.slane %v1294, 1
    %v1359 = vperm.slane %v1294, 2
    %1363 = vmatpush.msra.mxu0 %v1353
    %1364 = vmatpush.msra.mxu0 %v1350
    %1365 = vmatpush.msra.mxu0 %v1347
    %1366 = vmatpush.msra.mxu0 %v1344
    %1367 = vmatpush.msra.mxu0 %v1341
    %1368 = vmatpush.msra.mxu0 %v1338
    %1369 = vmatpush.msra.mxu0 %v1335
    %1370 = vmatpush.msra.mxu0 %v1332
    %1371 = vmatpush.msra.mxu0 %v1329
    %1372 = vmatpush.msra.mxu0 %v1326
    %1373 = vmatpush.msra.mxu0 %v1323
    %1374 = vmatpush.msra.mxu0 %v1320
    %1375 = vmatpush.msra.mxu0 %v1317
    %1376 = vmatpush.msra.mxu0 %v1314
    %1377 = vmatpush.msra.mxu0 %v1311
    %1378 = vmatpush.msra.mxu0 %v1308
    %1379 = vmatmul.f32.gmra.mxu0 %v1300
    %v1380 = vpop.f32.mrf.mxu0
    %v1381 = vadd.f32 %v1357, %v1380
    %1382 = vmatmul.f32.gmra.mxu0 %v1301
    %v1383 = vpop.f32.mrf.mxu0
    %v1384 = vadd.f32 %v1357, %v1383
    %1385 = vmatmul.f32.gmra.mxu0 %v1302
    %v1386 = vpop.f32.mrf.mxu0
    %v1387 = vadd.f32 %v1357, %v1386
    %1388 = vmatmul.f32.gmra.mxu0 %v1303
    %v1389 = vpop.f32.mrf.mxu0
    %v1390 = vadd.f32 %v1357, %v1389
    %1391 = vmatmul.f32.gmra.mxu0 %v1304
    %v1392 = vpop.f32.mrf.mxu0
    %v1393 = vadd.f32 %v1357, %v1392
    %1394 = vmatmul.f32.gmra.mxu0 %v1305
    %v1395 = vpop.f32.mrf.mxu0
    %v1396 = vadd.f32 %v1357, %v1395
    %1397 = vmatmul.f32.gmra.mxu0 %v1306
    %v1398 = vpop.f32.mrf.mxu0
    %v1399 = vadd.f32 %v1357, %v1398
    %1400 = vmatmul.f32.gmra.mxu0 %v1307
    %v1401 = vpop.f32.mrf.mxu0
    %v1402 = vadd.f32 %v1357, %v1401
    %1403 = vdwg.mxu0
    %1404 = vmatpush.msra.mxu0 %v1354
    %1405 = vmatpush.msra.mxu0 %v1351
    %1406 = vmatpush.msra.mxu0 %v1348
    %1407 = vmatpush.msra.mxu0 %v1345
    %1408 = vmatpush.msra.mxu0 %v1342
    %1409 = vmatpush.msra.mxu0 %v1339
    %1410 = vmatpush.msra.mxu0 %v1336
    %1411 = vmatpush.msra.mxu0 %v1333
    %1412 = vmatpush.msra.mxu0 %v1330
    %1413 = vmatpush.msra.mxu0 %v1327
    %1414 = vmatpush.msra.mxu0 %v1324
    %1415 = vmatpush.msra.mxu0 %v1321
    %1416 = vmatpush.msra.mxu0 %v1318
    %1417 = vmatpush.msra.mxu0 %v1315
    %1418 = vmatpush.msra.mxu0 %v1312
    %1419 = vmatpush.msra.mxu0 %v1309
    %1420 = vmatmul.f32.gmra.mxu0 %v1300
    %v1421 = vpop.f32.mrf.mxu0
    %v1422 = vadd.f32 %v1358, %v1421
    %1423 = vmatmul.f32.gmra.mxu0 %v1301
    %v1424 = vpop.f32.mrf.mxu0
    %v1425 = vadd.f32 %v1358, %v1424
    %1426 = vmatmul.f32.gmra.mxu0 %v1302
    %v1427 = vpop.f32.mrf.mxu0
    %v1428 = vadd.f32 %v1358, %v1427
    %1429 = vmatmul.f32.gmra.mxu0 %v1303
    %v1430 = vpop.f32.mrf.mxu0
    %v1431 = vadd.f32 %v1358, %v1430
    %1432 = vmatmul.f32.gmra.mxu0 %v1304
    %v1433 = vpop.f32.mrf.mxu0
    %v1434 = vadd.f32 %v1358, %v1433
    %1435 = vmatmul.f32.gmra.mxu0 %v1305
    %v1436 = vpop.f32.mrf.mxu0
    %v1437 = vadd.f32 %v1358, %v1436
    %1438 = vmatmul.f32.gmra.mxu0 %v1306
    %v1439 = vpop.f32.mrf.mxu0
    %v1440 = vadd.f32 %v1358, %v1439
    %1441 = vmatmul.f32.gmra.mxu0 %v1307
    %v1442 = vpop.f32.mrf.mxu0
    %v1443 = vadd.f32 %v1358, %v1442
    %1444 = vdwg.mxu0
    %1445 = vmatpush.msra.mxu0 %v1355
    %1446 = vmatpush.msra.mxu0 %v1352
    %1447 = vmatpush.msra.mxu0 %v1349
    %1448 = vmatpush.msra.mxu0 %v1346
    %1449 = vmatpush.msra.mxu0 %v1343
    %1450 = vmatpush.msra.mxu0 %v1340
    %1451 = vmatpush.msra.mxu0 %v1337
    %1452 = vmatpush.msra.mxu0 %v1334
    %1453 = vmatpush.msra.mxu0 %v1331
    %1454 = vmatpush.msra.mxu0 %v1328
    %1455 = vmatpush.msra.mxu0 %v1325
    %1456 = vmatpush.msra.mxu0 %v1322
    %1457 = vmatpush.msra.mxu0 %v1319
    %1458 = vmatpush.msra.mxu0 %v1316
    %1459 = vmatpush.msra.mxu0 %v1313
    %1460 = vmatpush.msra.mxu0 %v1310
    %1461 = vmatmul.f32.gmra.mxu0 %v1300
    %v1462 = vpop.f32.mrf.mxu0
    %v1463 = vadd.f32 %v1359, %v1462
    %1464 = vmatmul.f32.gmra.mxu0 %v1301
    %v1465 = vpop.f32.mrf.mxu0
    %v1466 = vadd.f32 %v1359, %v1465
    %1467 = vmatmul.f32.gmra.mxu0 %v1302
    %v1468 = vpop.f32.mrf.mxu0
    %v1469 = vadd.f32 %v1359, %v1468
    %1470 = vmatmul.f32.gmra.mxu0 %v1303
    %v1471 = vpop.f32.mrf.mxu0
    %v1472 = vadd.f32 %v1359, %v1471
    %1473 = vmatmul.f32.gmra.mxu0 %v1304
    %v1474 = vpop.f32.mrf.mxu0
    %v1475 = vadd.f32 %v1359, %v1474
    %1476 = vmatmul.f32.gmra.mxu0 %v1305
    %v1477 = vpop.f32.mrf.mxu0
    %v1478 = vadd.f32 %v1359, %v1477
    %1479 = vmatmul.f32.gmra.mxu0 %v1306
    %v1480 = vpop.f32.mrf.mxu0
    %v1481 = vadd.f32 %v1359, %v1480
    %1482 = vmatmul.f32.gmra.mxu0 %v1307
    %v1483 = vpop.f32.mrf.mxu0
    %v1484 = vadd.f32 %v1359, %v1483
    %1485 = vdwg.mxu0
    %1486 = vst [vmem:[#allocation4] sm:$0xff] %v1381
    %1487 = vst [vmem:[#allocation4 + $0x8] sm:$0xff] %v1422
    %1488 = vst [vmem:[#allocation4 + $0x10] sm:$0xff] %v1463
    %1489 = vst [vmem:[#allocation4 + $0x18] sm:$0xff] %v1384
    %1490 = vst [vmem:[#allocation4 + $0x20] sm:$0xff] %v1425
    %1491 = vst [vmem:[#allocation4 + $0x28] sm:$0xff] %v1466
    %1492 = vst [vmem:[#allocation4 + $0x30] sm:$0xff] %v1387
    %1493 = vst [vmem:[#allocation4 + $0x38] sm:$0xff] %v1428
    %1494 = vst [vmem:[#allocation4 + $0x40] sm:$0xff] %v1469
    %1495 = vst [vmem:[#allocation4 + $0x48] sm:$0xff] %v1390
    %1496 = vst [vmem:[#allocation4 + $0x50] sm:$0xff] %v1431
    %1497 = vst [vmem:[#allocation4 + $0x58] sm:$0xff] %v1472
    %1498 = vst [vmem:[#allocation4 + $0x60] sm:$0xff] %v1393
    %1499 = vst [vmem:[#allocation4 + $0x68] sm:$0xff] %v1434
    %1500 = vst [vmem:[#allocation4 + $0x70] sm:$0xff] %v1475
    %1501 = vst [vmem:[#allocation4 + $0x78] sm:$0xff] %v1396
    %1502 = vst [vmem:[#allocation4 + $0x80] sm:$0xff] %v1437
    %1503 = vst [vmem:[#allocation4 + $0x88] sm:$0xff] %v1478
    %1504 = vst [vmem:[#allocation4 + $0x90] sm:$0xff] %v1399
    %1505 = vst [vmem:[#allocation4 + $0x98] sm:$0xff] %v1440
    %1506 = vst [vmem:[#allocation4 + $0xa0] sm:$0xff] %v1481
    %1507 = vst [vmem:[#allocation4 + $0xa8] sm:$0xff] %v1402
    %1508 = vst [vmem:[#allocation4 + $0xb0] sm:$0xff] %v1443
    %1509 = vst [vmem:[#allocation4 + $0xb8] sm:$0xff] %v1484
    %v1510 = vld [vmem:[#allocation4] sm:$0xff]
    %v1511 = vld [vmem:[#allocation4 + $0x8] sm:$0xff]
    %v1512 = vld [vmem:[#allocation4 + $0x10] sm:$0xff]
    %v1513 = vxor.u32 %v1510, 2147483648
    %v1514 = vmul.f32 %v1513, 1.442695
    %v1515 = vpow.pop %v1514
    %v1516 = vadd.f32 %v1515, 1.0
    %v1517 = vrcp.pop %v1516
    %v1518 = vmul.f32 %v1516, %v1517
    %v1519 = vsub.f32 1.0, %v1518
    %v1520 = vmul.f32 %v1517, %v1519
    %v1521 = vadd.f32 %v1517, %v1520
    %vm1522 = vweird.f32 %v1516
    %vm1523 = vweird.f32 %v1517
    %vm1524 = vmor %vm1522, %vm1523
    %v1525 = vsel %vm1524, %v1517, %v1521
    %v1526 = vand.u32 2147483647, %v1516
    %vm1527 = vcmp.eq.f32.partialorder %v1526, 8.507059e+37
    %v1528 = vand.u32 %v1516, 2147483648
    %v1529 = vor.u32 1.1754944e-38, %v1528
    %v1530 = vsel %vm1527, %v1529, %v1525
    %v1531 = vmul.f32 1.0, %v1530
    %v1532 = vxor.u32 %v1511, 2147483648
    %v1533 = vmul.f32 %v1532, 1.442695
    %v1534 = vpow.pop %v1533
    %v1535 = vadd.f32 %v1534, 1.0
    %v1536 = vrcp.pop %v1535
    %v1537 = vmul.f32 %v1535, %v1536
    %v1538 = vsub.f32 1.0, %v1537
    %v1539 = vmul.f32 %v1536, %v1538
    %v1540 = vadd.f32 %v1536, %v1539
    %vm1541 = vweird.f32 %v1535
    %vm1542 = vweird.f32 %v1536
    %vm1543 = vmor %vm1541, %vm1542
    %v1544 = vsel %vm1543, %v1536, %v1540
    %v1545 = vand.u32 2147483647, %v1535
    %vm1546 = vcmp.eq.f32.partialorder %v1545, 8.507059e+37
    %v1547 = vand.u32 %v1535, 2147483648
    %v1548 = vor.u32 1.1754944e-38, %v1547
    %v1549 = vsel %vm1546, %v1548, %v1544
    %v1550 = vmul.f32 1.0, %v1549
    %v1551 = vmul.f32 %v1531, %v1298
    %v1552 = vadd.f32 %v1512, %v1551
    %v1553 = vtanh.pop %v1552
    %v1554 = vmul.f32 %v1550, %v1553
    %v1555 = vsub.f32 %v1553, %v1554
    %1556 = vst [vmem:[#allocation14] sm:$0xff] %v1555
    %v1557 = vld [vmem:[#allocation4 + $0x18] sm:$0xff]
    %v1558 = vld [vmem:[#allocation4 + $0x20] sm:$0xff]
    %v1559 = vld [vmem:[#allocation4 + $0x28] sm:$0xff]
    %1560 = vmatpush.msra.mxu0 %v1290
    %1561 = vmatpush.msra.mxu0 %v1287
    %1562 = vmatpush.msra.mxu0 %v1284
    %1563 = vmatpush.msra.mxu0 %v1281
    %1564 = vmatpush.msra.mxu0 %v1278
    %1565 = vmatpush.msra.mxu0 %v1275
    %1566 = vmatpush.msra.mxu0 %v1272
    %1567 = vmatpush.msra.mxu0 %v1269
    %1568 = vmatpush.msra.mxu0 %v1266
    %1569 = vmatpush.msra.mxu0 %v1263
    %1570 = vmatpush.msra.mxu0 %v1260
    %1571 = vmatpush.msra.mxu0 %v1257
    %1572 = vmatpush.msra.mxu0 %v1254
    %1573 = vmatpush.msra.mxu0 %v1251
    %1574 = vmatpush.msra.mxu0 %v1248
    %1575 = vmatpush.msra.mxu0 %v1245
    %1576 = vmatmul.f32.gmra.mxu0 %v1555
    %v1577 = vpop.f32.mrf.mxu0
    %v1578 = vadd.f32 0.0, %v1577
    %1579 = vdwg.mxu0
    %1580 = vmatpush.msra.mxu0 %v1291
    %1581 = vmatpush.msra.mxu0 %v1288
    %1582 = vmatpush.msra.mxu0 %v1285
    %1583 = vmatpush.msra.mxu0 %v1282
    %1584 = vmatpush.msra.mxu0 %v1279
    %1585 = vmatpush.msra.mxu0 %v1276
    %1586 = vmatpush.msra.mxu0 %v1273
    %1587 = vmatpush.msra.mxu0 %v1270
    %1588 = vmatpush.msra.mxu0 %v1267
    %1589 = vmatpush.msra.mxu0 %v1264
    %1590 = vmatpush.msra.mxu0 %v1261
    %1591 = vmatpush.msra.mxu0 %v1258
    %1592 = vmatpush.msra.mxu0 %v1255
    %1593 = vmatpush.msra.mxu0 %v1252
    %1594 = vmatpush.msra.mxu0 %v1249
    %1595 = vmatpush.msra.mxu0 %v1246
    %1596 = vmatmul.f32.gmra.mxu0 %v1555
    %v1597 = vpop.f32.mrf.mxu0
    %v1598 = vadd.f32 0.0, %v1597
    %1599 = vdwg.mxu0
    %1600 = vmatpush.msra.mxu0 %v1292
    %1601 = vmatpush.msra.mxu0 %v1289
    %1602 = vmatpush.msra.mxu0 %v1286
    %1603 = vmatpush.msra.mxu0 %v1283
    %1604 = vmatpush.msra.mxu0 %v1280
    %1605 = vmatpush.msra.mxu0 %v1277
    %1606 = vmatpush.msra.mxu0 %v1274
    %1607 = vmatpush.msra.mxu0 %v1271
    %1608 = vmatpush.msra.mxu0 %v1268
    %1609 = vmatpush.msra.mxu0 %v1265
    %1610 = vmatpush.msra.mxu0 %v1262
    %1611 = vmatpush.msra.mxu0 %v1259
    %1612 = vmatpush.msra.mxu0 %v1256
    %1613 = vmatpush.msra.mxu0 %v1253
    %1614 = vmatpush.msra.mxu0 %v1250
    %1615 = vmatpush.msra.mxu0 %v1247
    %1616 = vmatmul.f32.gmra.mxu0 %v1555
    %v1617 = vpop.f32.mrf.mxu0
    %v1618 = vadd.f32 0.0, %v1617
    %1619 = vdwg.mxu0
    %v1620 = vadd.f32 %v1557, %v1578
    %v1621 = vxor.u32 %v1620, 2147483648
    %v1622 = vmul.f32 %v1621, 1.442695
    %v1623 = vpow.pop %v1622
    %v1624 = vadd.f32 %v1623, 1.0
    %v1625 = vrcp.pop %v1624
    %v1626 = vmul.f32 %v1624, %v1625
    %v1627 = vsub.f32 1.0, %v1626
    %v1628 = vmul.f32 %v1625, %v1627
    %v1629 = vadd.f32 %v1625, %v1628
    %vm1630 = vweird.f32 %v1624
    %vm1631 = vweird.f32 %v1625
    %vm1632 = vmor %vm1630, %vm1631
    %v1633 = vsel %vm1632, %v1625, %v1629
    %v1634 = vand.u32 2147483647, %v1624
    %vm1635 = vcmp.eq.f32.partialorder %v1634, 8.507059e+37
    %v1636 = vand.u32 %v1624, 2147483648
    %v1637 = vor.u32 1.1754944e-38, %v1636
    %v1638 = vsel %vm1635, %v1637, %v1633
    %v1639 = vmul.f32 1.0, %v1638
    %v1640 = vadd.f32 %v1558, %v1598
    %v1641 = vxor.u32 %v1640, 2147483648
    %v1642 = vmul.f32 %v1641, 1.442695
    %v1643 = vpow.pop %v1642
    %v1644 = vadd.f32 %v1643, 1.0
    %v1645 = vrcp.pop %v1644
    %v1646 = vmul.f32 %v1644, %v1645
    %v1647 = vsub.f32 1.0, %v1646
    %v1648 = vmul.f32 %v1645, %v1647
    %v1649 = vadd.f32 %v1645, %v1648
    %vm1650 = vweird.f32 %v1644
    %vm1651 = vweird.f32 %v1645
    %vm1652 = vmor %vm1650, %vm1651
    %v1653 = vsel %vm1652, %v1645, %v1649
    %v1654 = vand.u32 2147483647, %v1644
    %vm1655 = vcmp.eq.f32.partialorder %v1654, 8.507059e+37
    %v1656 = vand.u32 %v1644, 2147483648
    %v1657 = vor.u32 1.1754944e-38, %v1656
    %v1658 = vsel %vm1655, %v1657, %v1653
    %v1659 = vmul.f32 1.0, %v1658
    %v1660 = vadd.f32 %v1618, %v1298
    %v1661 = vmul.f32 %v1639, %v1660
    %v1662 = vadd.f32 %v1559, %v1661
    %v1663 = vtanh.pop %v1662
    %v1664 = vsub.f32 %v1555, %v1663
    %v1665 = vmul.f32 %v1659, %v1664
    %v1666 = vadd.f32 %v1663, %v1665
    %1667 = vst [vmem:[#allocation14 + $0x8] sm:$0xff] %v1666
    %v1668 = vld [vmem:[#allocation4 + $0x30] sm:$0xff]
    %v1669 = vld [vmem:[#allocation4 + $0x38] sm:$0xff]
    %v1670 = vld [vmem:[#allocation4 + $0x40] sm:$0xff]
    %1671 = vmatpush.msra.mxu0 %v1290
    %1672 = vmatpush.msra.mxu0 %v1287
    %1673 = vmatpush.msra.mxu0 %v1284
    %1674 = vmatpush.msra.mxu0 %v1281
    %1675 = vmatpush.msra.mxu0 %v1278
    %1676 = vmatpush.msra.mxu0 %v1275
    %1677 = vmatpush.msra.mxu0 %v1272
    %1678 = vmatpush.msra.mxu0 %v1269
    %1679 = vmatpush.msra.mxu0 %v1266
    %1680 = vmatpush.msra.mxu0 %v1263
    %1681 = vmatpush.msra.mxu0 %v1260
    %1682 = vmatpush.msra.mxu0 %v1257
    %1683 = vmatpush.msra.mxu0 %v1254
    %1684 = vmatpush.msra.mxu0 %v1251
    %1685 = vmatpush.msra.mxu0 %v1248
    %1686 = vmatpush.msra.mxu0 %v1245
    %1687 = vmatmul.f32.gmra.mxu0 %v1666
    %v1688 = vpop.f32.mrf.mxu0
    %v1689 = vadd.f32 0.0, %v1688
    %1690 = vdwg.mxu0
    %1691 = vmatpush.msra.mxu0 %v1291
    %1692 = vmatpush.msra.mxu0 %v1288
    %1693 = vmatpush.msra.mxu0 %v1285
    %1694 = vmatpush.msra.mxu0 %v1282
    %1695 = vmatpush.msra.mxu0 %v1279
    %1696 = vmatpush.msra.mxu0 %v1276
    %1697 = vmatpush.msra.mxu0 %v1273
    %1698 = vmatpush.msra.mxu0 %v1270
    %1699 = vmatpush.msra.mxu0 %v1267
    %1700 = vmatpush.msra.mxu0 %v1264
    %1701 = vmatpush.msra.mxu0 %v1261
    %1702 = vmatpush.msra.mxu0 %v1258
    %1703 = vmatpush.msra.mxu0 %v1255
    %1704 = vmatpush.msra.mxu0 %v1252
    %1705 = vmatpush.msra.mxu0 %v1249
    %1706 = vmatpush.msra.mxu0 %v1246
    %1707 = vmatmul.f32.gmra.mxu0 %v1666
    %v1708 = vpop.f32.mrf.mxu0
    %v1709 = vadd.f32 0.0, %v1708
    %1710 = vdwg.mxu0
    %1711 = vmatpush.msra.mxu0 %v1292
    %1712 = vmatpush.msra.mxu0 %v1289
    %1713 = vmatpush.msra.mxu0 %v1286
    %1714 = vmatpush.msra.mxu0 %v1283
    %1715 = vmatpush.msra.mxu0 %v1280
    %1716 = vmatpush.msra.mxu0 %v1277
    %1717 = vmatpush.msra.mxu0 %v1274
    %1718 = vmatpush.msra.mxu0 %v1271
    %1719 = vmatpush.msra.mxu0 %v1268
    %1720 = vmatpush.msra.mxu0 %v1265
    %1721 = vmatpush.msra.mxu0 %v1262
    %1722 = vmatpush.msra.mxu0 %v1259
    %1723 = vmatpush.msra.mxu0 %v1256
    %1724 = vmatpush.msra.mxu0 %v1253
    %1725 = vmatpush.msra.mxu0 %v1250
    %1726 = vmatpush.msra.mxu0 %v1247
    %1727 = vmatmul.f32.gmra.mxu0 %v1666
    %v1728 = vpop.f32.mrf.mxu0
    %v1729 = vadd.f32 0.0, %v1728
    %1730 = vdwg.mxu0
    %v1731 = vadd.f32 %v1668, %v1689
    %v1732 = vxor.u32 %v1731, 2147483648
    %v1733 = vmul.f32 %v1732, 1.442695
    %v1734 = vpow.pop %v1733
    %v1735 = vadd.f32 %v1734, 1.0
    %v1736 = vrcp.pop %v1735
    %v1737 = vmul.f32 %v1735, %v1736
    %v1738 = vsub.f32 1.0, %v1737
    %v1739 = vmul.f32 %v1736, %v1738
    %v1740 = vadd.f32 %v1736, %v1739
    %vm1741 = vweird.f32 %v1735
    %vm1742 = vweird.f32 %v1736
    %vm1743 = vmor %vm1741, %vm1742
    %v1744 = vsel %vm1743, %v1736, %v1740
    %v1745 = vand.u32 2147483647, %v1735
    %vm1746 = vcmp.eq.f32.partialorder %v1745, 8.507059e+37
    %v1747 = vand.u32 %v1735, 2147483648
    %v1748 = vor.u32 1.1754944e-38, %v1747
    %v1749 = vsel %vm1746, %v1748, %v1744
    %v1750 = vmul.f32 1.0, %v1749
    %v1751 = vadd.f32 %v1669, %v1709
    %v1752 = vxor.u32 %v1751, 2147483648
    %v1753 = vmul.f32 %v1752, 1.442695
    %v1754 = vpow.pop %v1753
    %v1755 = vadd.f32 %v1754, 1.0
    %v1756 = vrcp.pop %v1755
    %v1757 = vmul.f32 %v1755, %v1756
    %v1758 = vsub.f32 1.0, %v1757
    %v1759 = vmul.f32 %v1756, %v1758
    %v1760 = vadd.f32 %v1756, %v1759
    %vm1761 = vweird.f32 %v1755
    %vm1762 = vweird.f32 %v1756
    %vm1763 = vmor %vm1761, %vm1762
    %v1764 = vsel %vm1763, %v1756, %v1760
    %v1765 = vand.u32 2147483647, %v1755
    %vm1766 = vcmp.eq.f32.partialorder %v1765, 8.507059e+37
    %v1767 = vand.u32 %v1755, 2147483648
    %v1768 = vor.u32 1.1754944e-38, %v1767
    %v1769 = vsel %vm1766, %v1768, %v1764
    %v1770 = vmul.f32 1.0, %v1769
    %v1771 = vadd.f32 %v1729, %v1298
    %v1772 = vmul.f32 %v1750, %v1771
    %v1773 = vadd.f32 %v1670, %v1772
    %v1774 = vtanh.pop %v1773
    %v1775 = vsub.f32 %v1666, %v1774
    %v1776 = vmul.f32 %v1770, %v1775
    %v1777 = vadd.f32 %v1774, %v1776
    %1778 = vst [vmem:[#allocation14 + $0x10] sm:$0xff] %v1777
    %v1779 = vld [vmem:[#allocation4 + $0x48] sm:$0xff]
    %v1780 = vld [vmem:[#allocation4 + $0x50] sm:$0xff]
    %v1781 = vld [vmem:[#allocation4 + $0x58] sm:$0xff]
    %1782 = vmatpush.msra.mxu0 %v1290
    %1783 = vmatpush.msra.mxu0 %v1287
    %1784 = vmatpush.msra.mxu0 %v1284
    %1785 = vmatpush.msra.mxu0 %v1281
    %1786 = vmatpush.msra.mxu0 %v1278
    %1787 = vmatpush.msra.mxu0 %v1275
    %1788 = vmatpush.msra.mxu0 %v1272
    %1789 = vmatpush.msra.mxu0 %v1269
    %1790 = vmatpush.msra.mxu0 %v1266
    %1791 = vmatpush.msra.mxu0 %v1263
    %1792 = vmatpush.msra.mxu0 %v1260
    %1793 = vmatpush.msra.mxu0 %v1257
    %1794 = vmatpush.msra.mxu0 %v1254
    %1795 = vmatpush.msra.mxu0 %v1251
    %1796 = vmatpush.msra.mxu0 %v1248
    %1797 = vmatpush.msra.mxu0 %v1245
    %1798 = vmatmul.f32.gmra.mxu0 %v1777
    %v1799 = vpop.f32.mrf.mxu0
    %v1800 = vadd.f32 0.0, %v1799
    %1801 = vdwg.mxu0
    %1802 = vmatpush.msra.mxu0 %v1291
    %1803 = vmatpush.msra.mxu0 %v1288
    %1804 = vmatpush.msra.mxu0 %v1285
    %1805 = vmatpush.msra.mxu0 %v1282
    %1806 = vmatpush.msra.mxu0 %v1279
    %1807 = vmatpush.msra.mxu0 %v1276
    %1808 = vmatpush.msra.mxu0 %v1273
    %1809 = vmatpush.msra.mxu0 %v1270
    %1810 = vmatpush.msra.mxu0 %v1267
    %1811 = vmatpush.msra.mxu0 %v1264
    %1812 = vmatpush.msra.mxu0 %v1261
    %1813 = vmatpush.msra.mxu0 %v1258
    %1814 = vmatpush.msra.mxu0 %v1255
    %1815 = vmatpush.msra.mxu0 %v1252
    %1816 = vmatpush.msra.mxu0 %v1249
    %1817 = vmatpush.msra.mxu0 %v1246
    %1818 = vmatmul.f32.gmra.mxu0 %v1777
    %v1819 = vpop.f32.mrf.mxu0
    %v1820 = vadd.f32 0.0, %v1819
    %1821 = vdwg.mxu0
    %1822 = vmatpush.msra.mxu0 %v1292
    %1823 = vmatpush.msra.mxu0 %v1289
    %1824 = vmatpush.msra.mxu0 %v1286
    %1825 = vmatpush.msra.mxu0 %v1283
    %1826 = vmatpush.msra.mxu0 %v1280
    %1827 = vmatpush.msra.mxu0 %v1277
    %1828 = vmatpush.msra.mxu0 %v1274
    %1829 = vmatpush.msra.mxu0 %v1271
    %1830 = vmatpush.msra.mxu0 %v1268
    %1831 = vmatpush.msra.mxu0 %v1265
    %1832 = vmatpush.msra.mxu0 %v1262
    %1833 = vmatpush.msra.mxu0 %v1259
    %1834 = vmatpush.msra.mxu0 %v1256
    %1835 = vmatpush.msra.mxu0 %v1253
    %1836 = vmatpush.msra.mxu0 %v1250
    %1837 = vmatpush.msra.mxu0 %v1247
    %1838 = vmatmul.f32.gmra.mxu0 %v1777
    %v1839 = vpop.f32.mrf.mxu0
    %v1840 = vadd.f32 0.0, %v1839
    %1841 = vdwg.mxu0
    %v1842 = vadd.f32 %v1779, %v1800
    %v1843 = vxor.u32 %v1842, 2147483648
    %v1844 = vmul.f32 %v1843, 1.442695
    %v1845 = vpow.pop %v1844
    %v1846 = vadd.f32 %v1845, 1.0
    %v1847 = vrcp.pop %v1846
    %v1848 = vmul.f32 %v1846, %v1847
    %v1849 = vsub.f32 1.0, %v1848
    %v1850 = vmul.f32 %v1847, %v1849
    %v1851 = vadd.f32 %v1847, %v1850
    %vm1852 = vweird.f32 %v1846
    %vm1853 = vweird.f32 %v1847
    %vm1854 = vmor %vm1852, %vm1853
    %v1855 = vsel %vm1854, %v1847, %v1851
    %v1856 = vand.u32 2147483647, %v1846
    %vm1857 = vcmp.eq.f32.partialorder %v1856, 8.507059e+37
    %v1858 = vand.u32 %v1846, 2147483648
    %v1859 = vor.u32 1.1754944e-38, %v1858
    %v1860 = vsel %vm1857, %v1859, %v1855
    %v1861 = vmul.f32 1.0, %v1860
    %v1862 = vadd.f32 %v1780, %v1820
    %v1863 = vxor.u32 %v1862, 2147483648
    %v1864 = vmul.f32 %v1863, 1.442695
    %v1865 = vpow.pop %v1864
    %v1866 = vadd.f32 %v1865, 1.0
    %v1867 = vrcp.pop %v1866
    %v1868 = vmul.f32 %v1866, %v1867
    %v1869 = vsub.f32 1.0, %v1868
    %v1870 = vmul.f32 %v1867, %v1869
    %v1871 = vadd.f32 %v1867, %v1870
    %vm1872 = vweird.f32 %v1866
    %vm1873 = vweird.f32 %v1867
    %vm1874 = vmor %vm1872, %vm1873
    %v1875 = vsel %vm1874, %v1867, %v1871
    %v1876 = vand.u32 2147483647, %v1866
    %vm1877 = vcmp.eq.f32.partialorder %v1876, 8.507059e+37
    %v1878 = vand.u32 %v1866, 2147483648
    %v1879 = vor.u32 1.1754944e-38, %v1878
    %v1880 = vsel %vm1877, %v1879, %v1875
    %v1881 = vmul.f32 1.0, %v1880
    %v1882 = vadd.f32 %v1840, %v1298
    %v1883 = vmul.f32 %v1861, %v1882
    %v1884 = vadd.f32 %v1781, %v1883
    %v1885 = vtanh.pop %v1884
    %v1886 = vsub.f32 %v1777, %v1885
    %v1887 = vmul.f32 %v1881, %v1886
    %v1888 = vadd.f32 %v1885, %v1887
    %1889 = vst [vmem:[#allocation14 + $0x18] sm:$0xff] %v1888
    %v1890 = vld [vmem:[#allocation4 + $0x60] sm:$0xff]
    %v1891 = vld [vmem:[#allocation4 + $0x68] sm:$0xff]
    %v1892 = vld [vmem:[#allocation4 + $0x70] sm:$0xff]
    %1893 = vmatpush.msra.mxu0 %v1290
    %1894 = vmatpush.msra.mxu0 %v1287
    %1895 = vmatpush.msra.mxu0 %v1284
    %1896 = vmatpush.msra.mxu0 %v1281
    %1897 = vmatpush.msra.mxu0 %v1278
    %1898 = vmatpush.msra.mxu0 %v1275
    %1899 = vmatpush.msra.mxu0 %v1272
    %1900 = vmatpush.msra.mxu0 %v1269
    %1901 = vmatpush.msra.mxu0 %v1266
    %1902 = vmatpush.msra.mxu0 %v1263
    %1903 = vmatpush.msra.mxu0 %v1260
    %1904 = vmatpush.msra.mxu0 %v1257
    %1905 = vmatpush.msra.mxu0 %v1254
    %1906 = vmatpush.msra.mxu0 %v1251
    %1907 = vmatpush.msra.mxu0 %v1248
    %1908 = vmatpush.msra.mxu0 %v1245
    %1909 = vmatmul.f32.gmra.mxu0 %v1888
    %v1910 = vpop.f32.mrf.mxu0
    %v1911 = vadd.f32 0.0, %v1910
    %1912 = vdwg.mxu0
    %1913 = vmatpush.msra.mxu0 %v1291
    %1914 = vmatpush.msra.mxu0 %v1288
    %1915 = vmatpush.msra.mxu0 %v1285
    %1916 = vmatpush.msra.mxu0 %v1282
    %1917 = vmatpush.msra.mxu0 %v1279
    %1918 = vmatpush.msra.mxu0 %v1276
    %1919 = vmatpush.msra.mxu0 %v1273
    %1920 = vmatpush.msra.mxu0 %v1270
    %1921 = vmatpush.msra.mxu0 %v1267
    %1922 = vmatpush.msra.mxu0 %v1264
    %1923 = vmatpush.msra.mxu0 %v1261
    %1924 = vmatpush.msra.mxu0 %v1258
    %1925 = vmatpush.msra.mxu0 %v1255
    %1926 = vmatpush.msra.mxu0 %v1252
    %1927 = vmatpush.msra.mxu0 %v1249
    %1928 = vmatpush.msra.mxu0 %v1246
    %1929 = vmatmul.f32.gmra.mxu0 %v1888
    %v1930 = vpop.f32.mrf.mxu0
    %v1931 = vadd.f32 0.0, %v1930
    %1932 = vdwg.mxu0
    %1933 = vmatpush.msra.mxu0 %v1292
    %1934 = vmatpush.msra.mxu0 %v1289
    %1935 = vmatpush.msra.mxu0 %v1286
    %1936 = vmatpush.msra.mxu0 %v1283
    %1937 = vmatpush.msra.mxu0 %v1280
    %1938 = vmatpush.msra.mxu0 %v1277
    %1939 = vmatpush.msra.mxu0 %v1274
    %1940 = vmatpush.msra.mxu0 %v1271
    %1941 = vmatpush.msra.mxu0 %v1268
    %1942 = vmatpush.msra.mxu0 %v1265
    %1943 = vmatpush.msra.mxu0 %v1262
    %1944 = vmatpush.msra.mxu0 %v1259
    %1945 = vmatpush.msra.mxu0 %v1256
    %1946 = vmatpush.msra.mxu0 %v1253
    %1947 = vmatpush.msra.mxu0 %v1250
    %1948 = vmatpush.msra.mxu0 %v1247
    %1949 = vmatmul.f32.gmra.mxu0 %v1888
    %v1950 = vpop.f32.mrf.mxu0
    %v1951 = vadd.f32 0.0, %v1950
    %1952 = vdwg.mxu0
    %v1953 = vadd.f32 %v1890, %v1911
    %v1954 = vxor.u32 %v1953, 2147483648
    %v1955 = vmul.f32 %v1954, 1.442695
    %v1956 = vpow.pop %v1955
    %v1957 = vadd.f32 %v1956, 1.0
    %v1958 = vrcp.pop %v1957
    %v1959 = vmul.f32 %v1957, %v1958
    %v1960 = vsub.f32 1.0, %v1959
    %v1961 = vmul.f32 %v1958, %v1960
    %v1962 = vadd.f32 %v1958, %v1961
    %vm1963 = vweird.f32 %v1957
    %vm1964 = vweird.f32 %v1958
    %vm1965 = vmor %vm1963, %vm1964
    %v1966 = vsel %vm1965, %v1958, %v1962
    %v1967 = vand.u32 2147483647, %v1957
    %vm1968 = vcmp.eq.f32.partialorder %v1967, 8.507059e+37
    %v1969 = vand.u32 %v1957, 2147483648
    %v1970 = vor.u32 1.1754944e-38, %v1969
    %v1971 = vsel %vm1968, %v1970, %v1966
    %v1972 = vmul.f32 1.0, %v1971
    %v1973 = vadd.f32 %v1891, %v1931
    %v1974 = vxor.u32 %v1973, 2147483648
    %v1975 = vmul.f32 %v1974, 1.442695
    %v1976 = vpow.pop %v1975
    %v1977 = vadd.f32 %v1976, 1.0
    %v1978 = vrcp.pop %v1977
    %v1979 = vmul.f32 %v1977, %v1978
    %v1980 = vsub.f32 1.0, %v1979
    %v1981 = vmul.f32 %v1978, %v1980
    %v1982 = vadd.f32 %v1978, %v1981
    %vm1983 = vweird.f32 %v1977
    %vm1984 = vweird.f32 %v1978
    %vm1985 = vmor %vm1983, %vm1984
    %v1986 = vsel %vm1985, %v1978, %v1982
    %v1987 = vand.u32 2147483647, %v1977
    %vm1988 = vcmp.eq.f32.partialorder %v1987, 8.507059e+37
    %v1989 = vand.u32 %v1977, 2147483648
    %v1990 = vor.u32 1.1754944e-38, %v1989
    %v1991 = vsel %vm1988, %v1990, %v1986
    %v1992 = vmul.f32 1.0, %v1991
    %v1993 = vadd.f32 %v1951, %v1298
    %v1994 = vmul.f32 %v1972, %v1993
    %v1995 = vadd.f32 %v1892, %v1994
    %v1996 = vtanh.pop %v1995
    %v1997 = vsub.f32 %v1888, %v1996
    %v1998 = vmul.f32 %v1992, %v1997
    %v1999 = vadd.f32 %v1996, %v1998
    %2000 = vst [vmem:[#allocation14 + $0x20] sm:$0xff] %v1999
    %v2001 = vld [vmem:[#allocation4 + $0x78] sm:$0xff]
    %v2002 = vld [vmem:[#allocation4 + $0x80] sm:$0xff]
    %v2003 = vld [vmem:[#allocation4 + $0x88] sm:$0xff]
    %2004 = vmatpush.msra.mxu0 %v1290
    %2005 = vmatpush.msra.mxu0 %v1287
    %2006 = vmatpush.msra.mxu0 %v1284
    %2007 = vmatpush.msra.mxu0 %v1281
    %2008 = vmatpush.msra.mxu0 %v1278
    %2009 = vmatpush.msra.mxu0 %v1275
    %2010 = vmatpush.msra.mxu0 %v1272
    %2011 = vmatpush.msra.mxu0 %v1269
    %2012 = vmatpush.msra.mxu0 %v1266
    %2013 = vmatpush.msra.mxu0 %v1263
    %2014 = vmatpush.msra.mxu0 %v1260
    %2015 = vmatpush.msra.mxu0 %v1257
    %2016 = vmatpush.msra.mxu0 %v1254
    %2017 = vmatpush.msra.mxu0 %v1251
    %2018 = vmatpush.msra.mxu0 %v1248
    %2019 = vmatpush.msra.mxu0 %v1245
    %2020 = vmatmul.f32.gmra.mxu0 %v1999
    %v2021 = vpop.f32.mrf.mxu0
    %v2022 = vadd.f32 0.0, %v2021
    %2023 = vdwg.mxu0
    %2024 = vmatpush.msra.mxu0 %v1291
    %2025 = vmatpush.msra.mxu0 %v1288
    %2026 = vmatpush.msra.mxu0 %v1285
    %2027 = vmatpush.msra.mxu0 %v1282
    %2028 = vmatpush.msra.mxu0 %v1279
    %2029 = vmatpush.msra.mxu0 %v1276
    %2030 = vmatpush.msra.mxu0 %v1273
    %2031 = vmatpush.msra.mxu0 %v1270
    %2032 = vmatpush.msra.mxu0 %v1267
    %2033 = vmatpush.msra.mxu0 %v1264
    %2034 = vmatpush.msra.mxu0 %v1261
    %2035 = vmatpush.msra.mxu0 %v1258
    %2036 = vmatpush.msra.mxu0 %v1255
    %2037 = vmatpush.msra.mxu0 %v1252
    %2038 = vmatpush.msra.mxu0 %v1249
    %2039 = vmatpush.msra.mxu0 %v1246
    %2040 = vmatmul.f32.gmra.mxu0 %v1999
    %v2041 = vpop.f32.mrf.mxu0
    %v2042 = vadd.f32 0.0, %v2041
    %2043 = vdwg.mxu0
    %2044 = vmatpush.msra.mxu0 %v1292
    %2045 = vmatpush.msra.mxu0 %v1289
    %2046 = vmatpush.msra.mxu0 %v1286
    %2047 = vmatpush.msra.mxu0 %v1283
    %2048 = vmatpush.msra.mxu0 %v1280
    %2049 = vmatpush.msra.mxu0 %v1277
    %2050 = vmatpush.msra.mxu0 %v1274
    %2051 = vmatpush.msra.mxu0 %v1271
    %2052 = vmatpush.msra.mxu0 %v1268
    %2053 = vmatpush.msra.mxu0 %v1265
    %2054 = vmatpush.msra.mxu0 %v1262
    %2055 = vmatpush.msra.mxu0 %v1259
    %2056 = vmatpush.msra.mxu0 %v1256
    %2057 = vmatpush.msra.mxu0 %v1253
    %2058 = vmatpush.msra.mxu0 %v1250
    %2059 = vmatpush.msra.mxu0 %v1247
    %2060 = vmatmul.f32.gmra.mxu0 %v1999
    %v2061 = vpop.f32.mrf.mxu0
    %v2062 = vadd.f32 0.0, %v2061
    %2063 = vdwg.mxu0
    %v2064 = vadd.f32 %v2001, %v2022
    %v2065 = vxor.u32 %v2064, 2147483648
    %v2066 = vmul.f32 %v2065, 1.442695
    %v2067 = vpow.pop %v2066
    %v2068 = vadd.f32 %v2067, 1.0
    %v2069 = vrcp.pop %v2068
    %v2070 = vmul.f32 %v2068, %v2069
    %v2071 = vsub.f32 1.0, %v2070
    %v2072 = vmul.f32 %v2069, %v2071
    %v2073 = vadd.f32 %v2069, %v2072
    %vm2074 = vweird.f32 %v2068
    %vm2075 = vweird.f32 %v2069
    %vm2076 = vmor %vm2074, %vm2075
    %v2077 = vsel %vm2076, %v2069, %v2073
    %v2078 = vand.u32 2147483647, %v2068
    %vm2079 = vcmp.eq.f32.partialorder %v2078, 8.507059e+37
    %v2080 = vand.u32 %v2068, 2147483648
    %v2081 = vor.u32 1.1754944e-38, %v2080
    %v2082 = vsel %vm2079, %v2081, %v2077
    %v2083 = vmul.f32 1.0, %v2082
    %v2084 = vadd.f32 %v2002, %v2042
    %v2085 = vxor.u32 %v2084, 2147483648
    %v2086 = vmul.f32 %v2085, 1.442695
    %v2087 = vpow.pop %v2086
    %v2088 = vadd.f32 %v2087, 1.0
    %v2089 = vrcp.pop %v2088
    %v2090 = vmul.f32 %v2088, %v2089
    %v2091 = vsub.f32 1.0, %v2090
    %v2092 = vmul.f32 %v2089, %v2091
    %v2093 = vadd.f32 %v2089, %v2092
    %vm2094 = vweird.f32 %v2088
    %vm2095 = vweird.f32 %v2089
    %vm2096 = vmor %vm2094, %vm2095
    %v2097 = vsel %vm2096, %v2089, %v2093
    %v2098 = vand.u32 2147483647, %v2088
    %vm2099 = vcmp.eq.f32.partialorder %v2098, 8.507059e+37
    %v2100 = vand.u32 %v2088, 2147483648
    %v2101 = vor.u32 1.1754944e-38, %v2100
    %v2102 = vsel %vm2099, %v2101, %v2097
    %v2103 = vmul.f32 1.0, %v2102
    %v2104 = vadd.f32 %v2062, %v1298
    %v2105 = vmul.f32 %v2083, %v2104
    %v2106 = vadd.f32 %v2003, %v2105
    %v2107 = vtanh.pop %v2106
    %v2108 = vsub.f32 %v1999, %v2107
    %v2109 = vmul.f32 %v2103, %v2108
    %v2110 = vadd.f32 %v2107, %v2109
    %2111 = vst [vmem:[#allocation14 + $0x28] sm:$0xff] %v2110
    %v2112 = vld [vmem:[#allocation4 + $0x90] sm:$0xff]
    %v2113 = vld [vmem:[#allocation4 + $0x98] sm:$0xff]
    %v2114 = vld [vmem:[#allocation4 + $0xa0] sm:$0xff]
    %2115 = vmatpush.msra.mxu0 %v1290
    %2116 = vmatpush.msra.mxu0 %v1287
    %2117 = vmatpush.msra.mxu0 %v1284
    %2118 = vmatpush.msra.mxu0 %v1281
    %2119 = vmatpush.msra.mxu0 %v1278
    %2120 = vmatpush.msra.mxu0 %v1275
    %2121 = vmatpush.msra.mxu0 %v1272
    %2122 = vmatpush.msra.mxu0 %v1269
    %2123 = vmatpush.msra.mxu0 %v1266
    %2124 = vmatpush.msra.mxu0 %v1263
    %2125 = vmatpush.msra.mxu0 %v1260
    %2126 = vmatpush.msra.mxu0 %v1257
    %2127 = vmatpush.msra.mxu0 %v1254
    %2128 = vmatpush.msra.mxu0 %v1251
    %2129 = vmatpush.msra.mxu0 %v1248
    %2130 = vmatpush.msra.mxu0 %v1245
    %2131 = vmatmul.f32.gmra.mxu0 %v2110
    %v2132 = vpop.f32.mrf.mxu0
    %v2133 = vadd.f32 0.0, %v2132
    %2134 = vdwg.mxu0
    %2135 = vmatpush.msra.mxu0 %v1291
    %2136 = vmatpush.msra.mxu0 %v1288
    %2137 = vmatpush.msra.mxu0 %v1285
    %2138 = vmatpush.msra.mxu0 %v1282
    %2139 = vmatpush.msra.mxu0 %v1279
    %2140 = vmatpush.msra.mxu0 %v1276
    %2141 = vmatpush.msra.mxu0 %v1273
    %2142 = vmatpush.msra.mxu0 %v1270
    %2143 = vmatpush.msra.mxu0 %v1267
    %2144 = vmatpush.msra.mxu0 %v1264
    %2145 = vmatpush.msra.mxu0 %v1261
    %2146 = vmatpush.msra.mxu0 %v1258
    %2147 = vmatpush.msra.mxu0 %v1255
    %2148 = vmatpush.msra.mxu0 %v1252
    %2149 = vmatpush.msra.mxu0 %v1249
    %2150 = vmatpush.msra.mxu0 %v1246
    %2151 = vmatmul.f32.gmra.mxu0 %v2110
    %v2152 = vpop.f32.mrf.mxu0
    %v2153 = vadd.f32 0.0, %v2152
    %2154 = vdwg.mxu0
    %2155 = vmatpush.msra.mxu0 %v1292
    %2156 = vmatpush.msra.mxu0 %v1289
    %2157 = vmatpush.msra.mxu0 %v1286
    %2158 = vmatpush.msra.mxu0 %v1283
    %2159 = vmatpush.msra.mxu0 %v1280
    %2160 = vmatpush.msra.mxu0 %v1277
    %2161 = vmatpush.msra.mxu0 %v1274
    %2162 = vmatpush.msra.mxu0 %v1271
    %2163 = vmatpush.msra.mxu0 %v1268
    %2164 = vmatpush.msra.mxu0 %v1265
    %2165 = vmatpush.msra.mxu0 %v1262
    %2166 = vmatpush.msra.mxu0 %v1259
    %2167 = vmatpush.msra.mxu0 %v1256
    %2168 = vmatpush.msra.mxu0 %v1253
    %2169 = vmatpush.msra.mxu0 %v1250
    %2170 = vmatpush.msra.mxu0 %v1247
    %2171 = vmatmul.f32.gmra.mxu0 %v2110
    %v2172 = vpop.f32.mrf.mxu0
    %v2173 = vadd.f32 0.0, %v2172
    %2174 = vdwg.mxu0
    %v2175 = vadd.f32 %v2112, %v2133
    %v2176 = vxor.u32 %v2175, 2147483648
    %v2177 = vmul.f32 %v2176, 1.442695
    %v2178 = vpow.pop %v2177
    %v2179 = vadd.f32 %v2178, 1.0
    %v2180 = vrcp.pop %v2179
    %v2181 = vmul.f32 %v2179, %v2180
    %v2182 = vsub.f32 1.0, %v2181
    %v2183 = vmul.f32 %v2180, %v2182
    %v2184 = vadd.f32 %v2180, %v2183
    %vm2185 = vweird.f32 %v2179
    %vm2186 = vweird.f32 %v2180
    %vm2187 = vmor %vm2185, %vm2186
    %v2188 = vsel %vm2187, %v2180, %v2184
    %v2189 = vand.u32 2147483647, %v2179
    %vm2190 = vcmp.eq.f32.partialorder %v2189, 8.507059e+37
    %v2191 = vand.u32 %v2179, 2147483648
    %v2192 = vor.u32 1.1754944e-38, %v2191
    %v2193 = vsel %vm2190, %v2192, %v2188
    %v2194 = vmul.f32 1.0, %v2193
    %v2195 = vadd.f32 %v2113, %v2153
    %v2196 = vxor.u32 %v2195, 2147483648
    %v2197 = vmul.f32 %v2196, 1.442695
    %v2198 = vpow.pop %v2197
    %v2199 = vadd.f32 %v2198, 1.0
    %v2200 = vrcp.pop %v2199
    %v2201 = vmul.f32 %v2199, %v2200
    %v2202 = vsub.f32 1.0, %v2201
    %v2203 = vmul.f32 %v2200, %v2202
    %v2204 = vadd.f32 %v2200, %v2203
    %vm2205 = vweird.f32 %v2199
    %vm2206 = vweird.f32 %v2200
    %vm2207 = vmor %vm2205, %vm2206
    %v2208 = vsel %vm2207, %v2200, %v2204
    %v2209 = vand.u32 2147483647, %v2199
    %vm2210 = vcmp.eq.f32.partialorder %v2209, 8.507059e+37
    %v2211 = vand.u32 %v2199, 2147483648
    %v2212 = vor.u32 1.1754944e-38, %v2211
    %v2213 = vsel %vm2210, %v2212, %v2208
    %v2214 = vmul.f32 1.0, %v2213
    %v2215 = vadd.f32 %v2173, %v1298
    %v2216 = vmul.f32 %v2194, %v2215
    %v2217 = vadd.f32 %v2114, %v2216
    %v2218 = vtanh.pop %v2217
    %v2219 = vsub.f32 %v2110, %v2218
    %v2220 = vmul.f32 %v2214, %v2219
    %v2221 = vadd.f32 %v2218, %v2220
    %2222 = vst [vmem:[#allocation14 + $0x30] sm:$0xff] %v2221
    %v2223 = vld [vmem:[#allocation4 + $0xa8] sm:$0xff]
    %v2224 = vld [vmem:[#allocation4 + $0xb0] sm:$0xff]
    %v2225 = vld [vmem:[#allocation4 + $0xb8] sm:$0xff]
    %2226 = vmatpush.msra.mxu0 %v1290
    %2227 = vmatpush.msra.mxu0 %v1287
    %2228 = vmatpush.msra.mxu0 %v1284
    %2229 = vmatpush.msra.mxu0 %v1281
    %2230 = vmatpush.msra.mxu0 %v1278
    %2231 = vmatpush.msra.mxu0 %v1275
    %2232 = vmatpush.msra.mxu0 %v1272
    %2233 = vmatpush.msra.mxu0 %v1269
    %2234 = vmatpush.msra.mxu0 %v1266
    %2235 = vmatpush.msra.mxu0 %v1263
    %2236 = vmatpush.msra.mxu0 %v1260
    %2237 = vmatpush.msra.mxu0 %v1257
    %2238 = vmatpush.msra.mxu0 %v1254
    %2239 = vmatpush.msra.mxu0 %v1251
    %2240 = vmatpush.msra.mxu0 %v1248
    %2241 = vmatpush.msra.mxu0 %v1245
    %2242 = vmatmul.f32.gmra.mxu0 %v2221
    %v2243 = vpop.f32.mrf.mxu0
    %v2244 = vadd.f32 0.0, %v2243
    %2245 = vdwg.mxu0
    %2246 = vmatpush.msra.mxu0 %v1291
    %2247 = vmatpush.msra.mxu0 %v1288
    %2248 = vmatpush.msra.mxu0 %v1285
    %2249 = vmatpush.msra.mxu0 %v1282
    %2250 = vmatpush.msra.mxu0 %v1279
    %2251 = vmatpush.msra.mxu0 %v1276
    %2252 = vmatpush.msra.mxu0 %v1273
    %2253 = vmatpush.msra.mxu0 %v1270
    %2254 = vmatpush.msra.mxu0 %v1267
    %2255 = vmatpush.msra.mxu0 %v1264
    %2256 = vmatpush.msra.mxu0 %v1261
    %2257 = vmatpush.msra.mxu0 %v1258
    %2258 = vmatpush.msra.mxu0 %v1255
    %2259 = vmatpush.msra.mxu0 %v1252
    %2260 = vmatpush.msra.mxu0 %v1249
    %2261 = vmatpush.msra.mxu0 %v1246
    %2262 = vmatmul.f32.gmra.mxu0 %v2221
    %v2263 = vpop.f32.mrf.mxu0
    %v2264 = vadd.f32 0.0, %v2263
    %2265 = vdwg.mxu0
    %2266 = vmatpush.msra.mxu0 %v1292
    %2267 = vmatpush.msra.mxu0 %v1289
    %2268 = vmatpush.msra.mxu0 %v1286
    %2269 = vmatpush.msra.mxu0 %v1283
    %2270 = vmatpush.msra.mxu0 %v1280
    %2271 = vmatpush.msra.mxu0 %v1277
    %2272 = vmatpush.msra.mxu0 %v1274
    %2273 = vmatpush.msra.mxu0 %v1271
    %2274 = vmatpush.msra.mxu0 %v1268
    %2275 = vmatpush.msra.mxu0 %v1265
    %2276 = vmatpush.msra.mxu0 %v1262
    %2277 = vmatpush.msra.mxu0 %v1259
    %2278 = vmatpush.msra.mxu0 %v1256
    %2279 = vmatpush.msra.mxu0 %v1253
    %2280 = vmatpush.msra.mxu0 %v1250
    %2281 = vmatpush.msra.mxu0 %v1247
    %2282 = vmatmul.f32.gmra.mxu0 %v2221
    %v2283 = vpop.f32.mrf.mxu0
    %v2284 = vadd.f32 0.0, %v2283
    %2285 = vdwg.mxu0
    %v2286 = vadd.f32 %v2223, %v2244
    %v2287 = vxor.u32 %v2286, 2147483648
    %v2288 = vmul.f32 %v2287, 1.442695
    %v2289 = vpow.pop %v2288
    %v2290 = vadd.f32 %v2289, 1.0
    %v2291 = vrcp.pop %v2290
    %v2292 = vmul.f32 %v2290, %v2291
    %v2293 = vsub.f32 1.0, %v2292
    %v2294 = vmul.f32 %v2291, %v2293
    %v2295 = vadd.f32 %v2291, %v2294
    %vm2296 = vweird.f32 %v2290
    %vm2297 = vweird.f32 %v2291
    %vm2298 = vmor %vm2296, %vm2297
    %v2299 = vsel %vm2298, %v2291, %v2295
    %v2300 = vand.u32 2147483647, %v2290
    %vm2301 = vcmp.eq.f32.partialorder %v2300, 8.507059e+37
    %v2302 = vand.u32 %v2290, 2147483648
    %v2303 = vor.u32 1.1754944e-38, %v2302
    %v2304 = vsel %vm2301, %v2303, %v2299
    %v2305 = vmul.f32 1.0, %v2304
    %v2306 = vadd.f32 %v2224, %v2264
    %v2307 = vxor.u32 %v2306, 2147483648
    %v2308 = vmul.f32 %v2307, 1.442695
    %v2309 = vpow.pop %v2308
    %v2310 = vadd.f32 %v2309, 1.0
    %v2311 = vrcp.pop %v2310
    %v2312 = vmul.f32 %v2310, %v2311
    %v2313 = vsub.f32 1.0, %v2312
    %v2314 = vmul.f32 %v2311, %v2313
    %v2315 = vadd.f32 %v2311, %v2314
    %vm2316 = vweird.f32 %v2310
    %vm2317 = vweird.f32 %v2311
    %vm2318 = vmor %vm2316, %vm2317
    %v2319 = vsel %vm2318, %v2311, %v2315
    %v2320 = vand.u32 2147483647, %v2310
    %vm2321 = vcmp.eq.f32.partialorder %v2320, 8.507059e+37
    %v2322 = vand.u32 %v2310, 2147483648
    %v2323 = vor.u32 1.1754944e-38, %v2322
    %v2324 = vsel %vm2321, %v2323, %v2319
    %v2325 = vmul.f32 1.0, %v2324
    %v2326 = vadd.f32 %v2284, %v1298
    %v2327 = vmul.f32 %v2305, %v2326
    %v2328 = vadd.f32 %v2225, %v2327
    %v2329 = vtanh.pop %v2328
    %v2330 = vsub.f32 %v2221, %v2329
    %v2331 = vmul.f32 %v2325, %v2330
    %v2332 = vadd.f32 %v2329, %v2331
    %2333 = vst [vmem:[#allocation14 + $0x38] sm:$0xff] %v2332
    %s2334 = scalar_lea.vmem [#allocation15], 8
    %2335 = vst [vmem:[%s2334] sm:$0xff] %v2332
    // Predicated region
    $region46: #{tpu_custom_call.1} parent=1 // pred_check
      _
    $region47: #{tpu_custom_call.1} parent=1 // pred_check_branch
      %2337 = sbr.rel (0) target = $region49
    $region48: #{tpu_custom_call.1} parent=1 // pred_region
      %2339 = vsyncadd [#allocation7], 0
      %s2341 = sshll.u32 [#allocation14], 4
      %s2342 = int_to_ptr.vmem [resolvable:$true] %s2341
      %s2343 = sshll.u32 %s6, 4
      %s2344 = int_to_ptr.hbm [resolvable:$true] %s2343
      %2346 = dma.vmem_to_hbm [thread:$0]  %s2342, 1024, %s2344, [#allocation7]
    $region49: #{tpu_custom_call.1} parent=1 // pred_fallthru
      _
    // Predicated region
    $region50: #{tpu_custom_call.1} parent=1 // pred_check
      _
    $region51: #{tpu_custom_call.1} parent=1 // pred_check_branch
      %2348 = sbr.rel (0) target = $region53
    $region52: #{tpu_custom_call.1} parent=1 // pred_region
      %2350 = vsyncadd [#allocation16], 0
      %s2351 = sshll.u32 [#allocation15], 4
      %s2352 = int_to_ptr.vmem [resolvable:$true] %s2351
      %s2353 = sshll.u32 %s7, 4
      %s2354 = int_to_ptr.hbm [resolvable:$true] %s2353
      %2359 = dma.vmem_to_hbm [thread:$0]  %s2352, 256, %s2354, [#allocation16], 128, 128, 8
    $region53: #{tpu_custom_call.1} parent=1 // pred_fallthru
      _
    // Predicated region
    $region54: #{tpu_custom_call.1} parent=1 // pred_check
      _
    $region55: #{tpu_custom_call.1} parent=1 // pred_check_branch
      %2361 = sbr.rel (0) target = $region57
    $region56: #{tpu_custom_call.1} parent=1 // pred_region
      %2363 = dma.done [#allocation7], 1024
    $region57: #{tpu_custom_call.1} parent=1 // pred_fallthru
      _
    // Predicated region
    $region58: #{tpu_custom_call.1} parent=1 // pred_check
      _
    $region59: #{tpu_custom_call.1} parent=1 // pred_check_branch
      %2365 = sbr.rel (0) target = $region61
    $region60: #{tpu_custom_call.1} parent=1 // pred_region
      %2367 = dma.done [#allocation16], 256
    $region61: #{tpu_custom_call.1} parent=1 // pred_fallthru
      _
    %2368 = vsyncpa [#allocation6], 1
    %2369 = vsyncpa [#allocation9], 1
    %2370 = vsyncpa [#allocation12], 1
    %2371 = vsyncpa [#allocation7], 1
    %2372 = vsyncpa [#allocation16], 1

</llo_original>
